<compile_context>
chip_gen: v7x
topology: tpu7x:2x2x1
jax: 0.10.0
libtpu: 0.0.40
codegen_flags: <defaults>
</compile_context>

<pallas_src>
import numpy as np
import jax
import jax.numpy as jnp
from jax import lax
from jax.experimental import pallas as pl
from jax.experimental.pallas import tpu as pltpu

HIDDEN = 64     # hidden_layer_size
HP = 128        # per-gate lane slot width (vreg aligned); in the fused hidden
                # vector h_lstm occupies lanes [0,64) and h_gru lanes [64,128)
INPUT = 1       # input_size
OUTPUT = 1      # output_size


def lstm_gru_kernel(x_ref, wih_l_ref, b_l_ref, w_rec_ref,
                    wih_g_ref, bgi_ref, bhn_ref, wlin_ref, blin_ref,
                    out_ref):
    # x_ref:     (B, T)       input sequence, T on the lane axis
    # wih_l_ref: (1, 4*HP)    LSTM W_ih^T, gate k real in lanes [k*HP, k*HP+64)
    # b_l_ref:   (1, 4*HP)    LSTM b_ih + b_hh, same gate slots
    # w_rec_ref: (HP, 7*HP)   fused recurrent weight:
    #                           rows [0,64)   -> 4 LSTM gate slots (lane offset 0)
    #                           rows [64,128) -> 3 GRU  gate slots (lane offset 64)
    # wih_g_ref: (HP, 3*HP)   GRU W_ih^T (rows = h_lstm lanes), GRU slots (offset 64)
    # bgi_ref:   (1, 3*HP)    GRU biases: (b_ir+b_hr, b_iz+b_hz, b_in)
    # bhn_ref:   (1, HP)      GRU b_hn, kept separate: n = tanh(.. + r*(W_hn h + b_hn))
    # wlin_ref:  (HP, O)      Linear weight on the h_gru lanes
    # blin_ref:  (1, O)       Linear bias
    # out_ref:   (B, O)       predictions
    B, T = x_ref.shape
    HPk = w_rec_ref.shape[0]
    G4 = 4 * HPk
    sigmoid = jax.nn.sigmoid

    xv = x_ref[...]                                       # (B, T): tiny, one load
    iota_t = lax.broadcasted_iota(jnp.int32, (1, T), 1)   # hoisted out of the loop

    def step(t, carry):
        hh, c, h_g = carry                                 # each (B, HP)

        # x_t extraction (one-hot lane reduce).  Independent of the carry, so
        # the scheduler overlaps it with the recurrent matmul below.
        x_t = jnp.sum(jnp.where(iota_t == t, xv, 0.0), axis=1, keepdims=True)

        # ---- Fused recurrent matmul: [h_lstm | h_gru] (B, HP) @ (HP, 7*HP) ----
        # TODO(synk): bf16 MXU inputs and pltpu.matmul_push_rhs weight residency
        # would shave further per-step MXU latency but need a looser tolerance /
        # bundle-dump verification.
        rec = jnp.dot(hh, w_rec_ref[...], preferred_element_type=jnp.float32)

        # ---- LSTM cell (gate order i, f, g, o); slots lane-aligned. ----
        gates = x_t * wih_l_ref[...] + b_l_ref[...] + rec[:, 0:G4]
        i = sigmoid(gates[:, 0 * HPk:1 * HPk])
        f = sigmoid(gates[:, 1 * HPk:2 * HPk])
        g = jnp.tanh(gates[:, 2 * HPk:3 * HPk])
        o = sigmoid(gates[:, 3 * HPk:4 * HPk])
        c_new = f * c + i * g
        h_new = o * jnp.tanh(c_new)              # lanes [64,128) stay exactly 0

        # ---- GRU cell (gate order r, z, n); slots at lane offset 64. ----
        gh = rec[:, G4:7 * HPk]                                    # (B, 3*HP)
        gi = jnp.dot(h_new, wih_g_ref[...],
                     preferred_element_type=jnp.float32) + bgi_ref[...]
        r = sigmoid(gi[:, 0:HPk] + gh[:, 0:HPk])
        z = sigmoid(gi[:, HPk:2 * HPk] + gh[:, HPk:2 * HPk])
        n = jnp.tanh(gi[:, 2 * HPk:3 * HPk]
                     + r * (gh[:, 2 * HPk:3 * HPk] + bhn_ref[...]))
        h_g_new = (1.0 - z) * n + z * h_g        # lanes [0,64) stay exactly 0

        return h_new + h_g_new, c_new, h_g_new

    zeros = jnp.zeros((B, HPk), jnp.float32)
    unroll = True if T <= 16 else 8              # partial unroll for long seqs
    hh, _, _ = lax.fori_loop(0, T, step, (zeros, zeros, zeros), unroll=unroll)

    # Linear on the last-step GRU output (wlin rows on the h_lstm lanes are 0).
    out_ref[...] = (jnp.dot(hh, wlin_ref[...],
                            preferred_element_type=jnp.float32)
                    + blin_ref[...]).astype(out_ref.dtype)


def lstm_gru_forward(x, params):
    """x: (B, T, 1) batch-first, like the PyTorch module."""
    B, T, I = x.shape
    H, O = HIDDEN, OUTPUT
    assert I == INPUT

    # T on the lane axis.
    x_bt = x[:, :, 0].astype(jnp.float32)                           # (B, T)

    def place_gates(w_t, n_gates, offset):
        # (d_in, n_gates*H) -> (d_in, n_gates*HP); gate k's H real columns land
        # at [k*HP + offset, k*HP + offset + H); everything else exactly 0.
        d_in = w_t.shape[0]
        w3 = w_t.reshape(d_in, n_gates, H).astype(jnp.float32)
        out = jnp.zeros((d_in, n_gates, HP), jnp.float32)
        out = out.at[:, :, offset:offset + H].set(w3)
        return out.reshape(d_in, n_gates * HP)

    # LSTM params: gate slots at lane offset 0 (h_lstm lives in lanes [0,64)).
    wih_l = place_gates(params['lstm_w_ih'].T, 4, 0)                # (1, 4*HP)
    b_l = place_gates((params['lstm_b_ih'] + params['lstm_b_hh'])
                      .reshape(1, 4 * H), 4, 0)                     # (1, 4*HP)
    whh_l = place_gates(params['lstm_w_hh'].T, 4, 0)                # (H, 4*HP)

    # GRU params: gate slots at lane offset 64 (h_gru lives in lanes [64,128)).
    whh_g = place_gates(params['gru_w_hh'].T, 3, H)                 # (H, 3*HP)
    wih_g = place_gates(params['gru_w_ih'].T, 3, H)                 # (H, 3*HP)

    # Fused recurrent weight (K = 128): rows [0,64) contract with h_lstm, rows
    # [64,128) with h_gru.
    w_rec = jnp.zeros((HP, 7 * HP), jnp.float32)
    w_rec = w_rec.at[0:H, 0:4 * HP].set(whh_l)
    w_rec = w_rec.at[H:2 * H, 4 * HP:7 * HP].set(whh_g)

    # GRU input weight: rows [0,64) contract with h_new (its padded lanes are 0).
    wih_g_p = jnp.zeros((HP, 3 * HP), jnp.float32).at[0:H, :].set(wih_g)

    # GRU biases: fold b_hh into b_ih for r/z; keep b_hn separate for the n gate.
    b_rz = params['gru_b_ih'][:2 * H] + params['gru_b_hh'][:2 * H]
    b_in = params['gru_b_ih'][2 * H:3 * H]
    bgi = place_gates(jnp.concatenate([b_rz, b_in]).reshape(1, 3 * H), 3, H)
    bhn = jnp.zeros((1, HP), jnp.float32).at[:, H:2 * H].set(
        params['gru_b_hh'][2 * H:3 * H].astype(jnp.float32))

    wlin = jnp.zeros((HP, O), jnp.float32).at[H:2 * H, :].set(
        params['lin_w'].T.astype(jnp.float32))                      # (HP, O)
    blin = params['lin_b'].reshape(1, O).astype(jnp.float32)

    inputs = (x_bt, wih_l, b_l, w_rec, wih_g_p, bgi, bhn, wlin, blin)

    def full_spec(a):
        # Everything is tiny: one full-array block per input.
        return pl.BlockSpec(a.shape, lambda *_: (0,) * a.ndim)

    # TODO(synk): for very large T, stream x over an 'arbitrary' T-chunk grid
    # axis with the (hh, c, h_g) carry in persistent VMEM scratch and set
    # vmem_limit_bytes explicitly (matters most on v7x's 64 MiB VMEM).
    # TODO(synk): for batched deployments on v7x, add a leading 'parallel'
    # batch grid axis to use the second TensorCore.
    return pl.pallas_call(
        lstm_gru_kernel,
        out_shape=jax.ShapeDtypeStruct((B, O), jnp.float32),
        grid_spec=pltpu.PrefetchScalarGridSpec(
            num_scalar_prefetch=0,
            grid=(1,),
            in_specs=[full_spec(a) for a in inputs],
            out_specs=pl.BlockSpec((B, O), lambda *_: (0, 0))),
        compiler_params=pltpu.CompilerParams(
            dimension_semantics=("arbitrary",)),
    )(*inputs)


def init_params(key, H=HIDDEN, I=INPUT, O=OUTPUT):
    """Deterministic synthetic params, PyTorch-style U(-1/sqrt(H), 1/sqrt(H))."""
    ks = jax.random.split(key, 10)
    s = 1.0 / float(np.sqrt(H))

    def u(k, shape, scale):
        return jax.random.uniform(k, shape, jnp.float32, -scale, scale)

    return dict(
        lstm_w_ih=u(ks[0], (4 * H, I), s),
        lstm_w_hh=u(ks[1], (4 * H, H), s),
        lstm_b_ih=u(ks[2], (4 * H,), s),
        lstm_b_hh=u(ks[3], (4 * H,), s),
        gru_w_ih=u(ks[4], (3 * H, H), s),
        gru_w_hh=u(ks[5], (3 * H, H), s),
        gru_b_ih=u(ks[6], (3 * H,), s),
        gru_b_hh=u(ks[7], (3 * H,), s),
        lin_w=u(ks[8], (O, H), s),
        lin_b=u(ks[9], (O,), s),
    )


def reference_forward(x, params):
    """Pure-JAX reference with identical semantics (for correctness check)."""
    H = HIDDEN
    B = x.shape[0]

    def cell(carry, x_t):
        h_l, c_l, h_g = carry
        gates = (x_t @ params['lstm_w_ih'].T + params['lstm_b_ih']
                 + h_l @ params['lstm_w_hh'].T + params['lstm_b_hh'])
        i = jax.nn.sigmoid(gates[:, 0:H])
        f = jax.nn.sigmoid(gates[:, H:2 * H])
        g = jnp.tanh(gates[:, 2 * H:3 * H])
        o = jax.nn.sigmoid(gates[:, 3 * H:4 * H])
        c_new = f * c_l + i * g
        h_new = o * jnp.tanh(c_new)

        gi = h_new @ params['gru_w_ih'].T + params['gru_b_ih']
        gh = h_g @ params['gru_w_hh'].T + params['gru_b_hh']
        r = jax.nn.sigmoid(gi[:, 0:H] + gh[:, 0:H])
        z = jax.nn.sigmoid(gi[:, H:2 * H] + gh[:, H:2 * H])
        n = jnp.tanh(gi[:, 2 * H:3 * H] + r * gh[:, 2 * H:3 * H])
        h_g_new = (1.0 - z) * n + z * h_g
        return (h_new, c_new, h_g_new), None

    zeros = jnp.zeros((B, H), jnp.float32)
    (_, _, h_g), _ = lax.scan(cell, (zeros, zeros, zeros),
                              jnp.transpose(x, (1, 0, 2)))
    return h_g @ params['lin_w'].T + params['lin_b']


if __name__ == "__main__":
    key = jax.random.PRNGKey(0)
    pkey, xkey = jax.random.split(key)
    params = init_params(pkey)

    B, T = 2, 8
    x = jax.random.normal(xkey, (B, T, INPUT), jnp.float32)   # (batch, seq, 1)

    out = lstm_gru_forward(x, params)
    out = jax.block_until_ready(out)

    ref = reference_forward(x, params)
    np.testing.assert_allclose(np.asarray(out), np.asarray(ref),
                               rtol=1e-5, atol=1e-5)
    print("KERNEL_OK")
</pallas_src>

<mosaic_0001>
module attributes {stable_mosaic.version = 11 : i64} {
  func.func @lstm_gru_kernel(%arg0: i32, %arg1: memref<2x8xf32, #tpu.memory_space<vmem>>, %arg2: memref<1x512xf32, #tpu.memory_space<vmem>>, %arg3: memref<1x512xf32, #tpu.memory_space<vmem>>, %arg4: memref<128x896xf32, #tpu.memory_space<vmem>>, %arg5: memref<128x384xf32, #tpu.memory_space<vmem>>, %arg6: memref<1x384xf32, #tpu.memory_space<vmem>>, %arg7: memref<1x128xf32, #tpu.memory_space<vmem>>, %arg8: memref<128x1xf32, #tpu.memory_space<vmem>>, %arg9: memref<1x1xf32, #tpu.memory_space<vmem>>, %arg10: memref<2x1xf32, #tpu.memory_space<vmem>>) attributes {dimension_semantics = [#tpu.dimension_semantics<arbitrary>], iteration_bounds = array<i64: 1>, scalar_prefetch = 0 : i64, scratch_operands = 0 : i64, tpu.core_type = #tpu.core_type<tc>, window_params = [{pipeline_mode = #tpu.pipeline_mode<synchronous>, transform_indices = @transform_0, window_bounds = array<i64: 2, 8>}, {pipeline_mode = #tpu.pipeline_mode<synchronous>, transform_indices = @transform_1, window_bounds = array<i64: 1, 512>}, {pipeline_mode = #tpu.pipeline_mode<synchronous>, transform_indices = @transform_2, window_bounds = array<i64: 1, 512>}, {pipeline_mode = #tpu.pipeline_mode<synchronous>, transform_indices = @transform_3, window_bounds = array<i64: 128, 896>}, {pipeline_mode = #tpu.pipeline_mode<synchronous>, transform_indices = @transform_4, window_bounds = array<i64: 128, 384>}, {pipeline_mode = #tpu.pipeline_mode<synchronous>, transform_indices = @transform_5, window_bounds = array<i64: 1, 384>}, {pipeline_mode = #tpu.pipeline_mode<synchronous>, transform_indices = @transform_6, window_bounds = array<i64: 1, 128>}, {pipeline_mode = #tpu.pipeline_mode<synchronous>, transform_indices = @transform_7, window_bounds = array<i64: 128, 1>}, {pipeline_mode = #tpu.pipeline_mode<synchronous>, transform_indices = @transform_8, window_bounds = array<i64: 1, 1>}, {pipeline_mode = #tpu.pipeline_mode<synchronous>, transform_indices = @transform_9, window_bounds = array<i64: 2, 1>}]} {
    %c0 = arith.constant 0 : index
    %c0_0 = arith.constant 0 : index
    %0 = vector.load %arg1[%c0, %c0_0] : memref<2x8xf32, #tpu.memory_space<vmem>>, vector<2x8xf32>
    %1 = tpu.iota {dimensions = array<i32: 1>} : vector<1x8xi32>
    %cst = arith.constant 0.000000e+00 : f32
    %2 = vector.broadcast %cst : f32 to vector<2x128xf32>
    %c0_i32 = arith.constant 0 : i32
    %3 = vector.broadcast %c0_i32 : i32 to vector<1x8xi32>
    %4 = arith.cmpi eq, %1, %3 : vector<1x8xi32>
    %cst_1 = arith.constant 0.000000e+00 : f32
    %5 = vector.shape_cast %4 : vector<1x8xi1> to vector<1x8xi1>
    %6 = vector.broadcast %5 : vector<1x8xi1> to vector<2x8xi1>
    %7 = vector.broadcast %cst_1 : f32 to vector<2x8xf32>
    %8 = arith.select %6, %0, %7 : vector<2x8xi1>, vector<2x8xf32>
    %cst_2 = arith.constant dense<0.000000e+00> : vector<2xf32>
    %9 = vector.multi_reduction <add>, %8, %cst_2 [1] : vector<2x8xf32> to vector<2xf32>
    %10 = vector.shape_cast %9 : vector<2xf32> to vector<2x1xf32>
    %c0_3 = arith.constant 0 : index
    %c0_4 = arith.constant 0 : index
    %11 = vector.load %arg4[%c0_3, %c0_4] : memref<128x896xf32, #tpu.memory_space<vmem>>, vector<128x896xf32>
    %cst_5 = arith.constant dense<0.000000e+00> : vector<2x896xf32>
    %12 = tpu.matmul %2, %11, %cst_5 {dimension_numbers = #tpu.dot_dimension_numbers<[1], [0], [0], [1], [0, 0, 1, 1], [], []>} : vector<2x128xf32>, vector<128x896xf32>, vector<2x896xf32> -> vector<2x896xf32>
    %c0_6 = arith.constant 0 : index
    %c0_7 = arith.constant 0 : index
    %13 = vector.load %arg2[%c0_6, %c0_7] : memref<1x512xf32, #tpu.memory_space<vmem>>, vector<1x512xf32>
    %14 = vector.broadcast %10 : vector<2x1xf32> to vector<2x512xf32>
    %15 = vector.broadcast %13 : vector<1x512xf32> to vector<2x512xf32>
    %16 = arith.mulf %14, %15 : vector<2x512xf32>
    %c0_8 = arith.constant 0 : index
    %c0_9 = arith.constant 0 : index
    %17 = vector.load %arg3[%c0_8, %c0_9] : memref<1x512xf32, #tpu.memory_space<vmem>>, vector<1x512xf32>
    %18 = vector.broadcast %17 : vector<1x512xf32> to vector<2x512xf32>
    %19 = arith.addf %16, %18 : vector<2x512xf32>
    %20 = vector.extract_strided_slice %12 {offsets = [0, 0], sizes = [2, 512], strides = [1, 1]} : vector<2x896xf32> to vector<2x512xf32>
    %21 = arith.addf %19, %20 : vector<2x512xf32>
    %22 = vector.extract_strided_slice %21 {offsets = [0, 0], sizes = [2, 128], strides = [1, 1]} : vector<2x512xf32> to vector<2x128xf32>
    %23 = arith.negf %22 : vector<2x128xf32>
    %24 = math.exp %23 : vector<2x128xf32>
    %cst_10 = arith.constant 1.000000e+00 : f32
    %25 = vector.broadcast %cst_10 : f32 to vector<2x128xf32>
    %26 = arith.addf %25, %24 : vector<2x128xf32>
    %27 = arith.divf %25, %26 : vector<2x128xf32>
    %28 = vector.extract_strided_slice %21 {offsets = [0, 128], sizes = [2, 128], strides = [1, 1]} : vector<2x512xf32> to vector<2x128xf32>
    %29 = arith.negf %28 : vector<2x128xf32>
    %30 = math.exp %29 : vector<2x128xf32>
    %cst_11 = arith.constant 1.000000e+00 : f32
    %31 = vector.broadcast %cst_11 : f32 to vector<2x128xf32>
    %32 = arith.addf %31, %30 : vector<2x128xf32>
    %33 = arith.divf %31, %32 : vector<2x128xf32>
    %34 = vector.extract_strided_slice %21 {offsets = [0, 256], sizes = [2, 128], strides = [1, 1]} : vector<2x512xf32> to vector<2x128xf32>
    %35 = math.tanh %34 : vector<2x128xf32>
    %36 = vector.extract_strided_slice %21 {offsets = [0, 384], sizes = [2, 128], strides = [1, 1]} : vector<2x512xf32> to vector<2x128xf32>
    %37 = arith.negf %36 : vector<2x128xf32>
    %38 = math.exp %37 : vector<2x128xf32>
    %cst_12 = arith.constant 1.000000e+00 : f32
    %39 = vector.broadcast %cst_12 : f32 to vector<2x128xf32>
    %40 = arith.addf %39, %38 : vector<2x128xf32>
    %41 = arith.divf %39, %40 : vector<2x128xf32>
    %42 = arith.mulf %33, %2 : vector<2x128xf32>
    %43 = arith.mulf %27, %35 : vector<2x128xf32>
    %44 = arith.addf %42, %43 : vector<2x128xf32>
    %45 = math.tanh %44 : vector<2x128xf32>
    %46 = arith.mulf %41, %45 : vector<2x128xf32>
    %47 = vector.extract_strided_slice %12 {offsets = [0, 512], sizes = [2, 384], strides = [1, 1]} : vector<2x896xf32> to vector<2x384xf32>
    %c0_13 = arith.constant 0 : index
    %c0_14 = arith.constant 0 : index
    %48 = vector.load %arg5[%c0_13, %c0_14] : memref<128x384xf32, #tpu.memory_space<vmem>>, vector<128x384xf32>
    %cst_15 = arith.constant dense<0.000000e+00> : vector<2x384xf32>
    %49 = tpu.matmul %46, %48, %cst_15 {dimension_numbers = #tpu.dot_dimension_numbers<[1], [0], [0], [1], [0, 0, 1, 1], [], []>} : vector<2x128xf32>, vector<128x384xf32>, vector<2x384xf32> -> vector<2x384xf32>
    %c0_16 = arith.constant 0 : index
    %c0_17 = arith.constant 0 : index
    %50 = vector.load %arg6[%c0_16, %c0_17] : memref<1x384xf32, #tpu.memory_space<vmem>>, vector<1x384xf32>
    %51 = vector.broadcast %50 : vector<1x384xf32> to vector<2x384xf32>
    %52 = arith.addf %49, %51 : vector<2x384xf32>
    %53 = vector.extract_strided_slice %52 {offsets = [0, 0], sizes = [2, 128], strides = [1, 1]} : vector<2x384xf32> to vector<2x128xf32>
    %54 = vector.extract_strided_slice %47 {offsets = [0, 0], sizes = [2, 128], strides = [1, 1]} : vector<2x384xf32> to vector<2x128xf32>
    %55 = arith.addf %53, %54 : vector<2x128xf32>
    %56 = arith.negf %55 : vector<2x128xf32>
    %57 = math.exp %56 : vector<2x128xf32>
    %cst_18 = arith.constant 1.000000e+00 : f32
    %58 = vector.broadcast %cst_18 : f32 to vector<2x128xf32>
    %59 = arith.addf %58, %57 : vector<2x128xf32>
    %60 = arith.divf %58, %59 : vector<2x128xf32>
    %61 = vector.extract_strided_slice %52 {offsets = [0, 128], sizes = [2, 128], strides = [1, 1]} : vector<2x384xf32> to vector<2x128xf32>
    %62 = vector.extract_strided_slice %47 {offsets = [0, 128], sizes = [2, 128], strides = [1, 1]} : vector<2x384xf32> to vector<2x128xf32>
    %63 = arith.addf %61, %62 : vector<2x128xf32>
    %64 = arith.negf %63 : vector<2x128xf32>
    %65 = math.exp %64 : vector<2x128xf32>
    %cst_19 = arith.constant 1.000000e+00 : f32
    %66 = vector.broadcast %cst_19 : f32 to vector<2x128xf32>
    %67 = arith.addf %66, %65 : vector<2x128xf32>
    %68 = arith.divf %66, %67 : vector<2x128xf32>
    %69 = vector.extract_strided_slice %52 {offsets = [0, 256], sizes = [2, 128], strides = [1, 1]} : vector<2x384xf32> to vector<2x128xf32>
    %70 = vector.extract_strided_slice %47 {offsets = [0, 256], sizes = [2, 128], strides = [1, 1]} : vector<2x384xf32> to vector<2x128xf32>
    %c0_20 = arith.constant 0 : index
    %c0_21 = arith.constant 0 : index
    %71 = vector.load %arg7[%c0_20, %c0_21] : memref<1x128xf32, #tpu.memory_space<vmem>>, vector<1x128xf32>
    %72 = vector.broadcast %71 : vector<1x128xf32> to vector<2x128xf32>
    %73 = arith.addf %70, %72 : vector<2x128xf32>
    %74 = arith.mulf %60, %73 : vector<2x128xf32>
    %75 = arith.addf %69, %74 : vector<2x128xf32>
    %76 = math.tanh %75 : vector<2x128xf32>
    %cst_22 = arith.constant 1.000000e+00 : f32
    %77 = vector.broadcast %cst_22 : f32 to vector<2x128xf32>
    %78 = arith.subf %77, %68 : vector<2x128xf32>
    %79 = arith.mulf %78, %76 : vector<2x128xf32>
    %80 = arith.mulf %68, %2 : vector<2x128xf32>
    %81 = arith.addf %79, %80 : vector<2x128xf32>
    %82 = arith.addf %46, %81 : vector<2x128xf32>
    %c1_i32 = arith.constant 1 : i32
    %83 = vector.broadcast %c1_i32 : i32 to vector<1x8xi32>
    %84 = arith.cmpi eq, %1, %83 : vector<1x8xi32>
    %cst_23 = arith.constant 0.000000e+00 : f32
    %85 = vector.shape_cast %84 : vector<1x8xi1> to vector<1x8xi1>
    %86 = vector.broadcast %85 : vector<1x8xi1> to vector<2x8xi1>
    %87 = vector.broadcast %cst_23 : f32 to vector<2x8xf32>
    %88 = arith.select %86, %0, %87 : vector<2x8xi1>, vector<2x8xf32>
    %cst_24 = arith.constant dense<0.000000e+00> : vector<2xf32>
    %89 = vector.multi_reduction <add>, %88, %cst_24 [1] : vector<2x8xf32> to vector<2xf32>
    %90 = vector.shape_cast %89 : vector<2xf32> to vector<2x1xf32>
    %c0_25 = arith.constant 0 : index
    %c0_26 = arith.constant 0 : index
    %91 = vector.load %arg4[%c0_25, %c0_26] : memref<128x896xf32, #tpu.memory_space<vmem>>, vector<128x896xf32>
    %cst_27 = arith.constant dense<0.000000e+00> : vector<2x896xf32>
    %92 = tpu.matmul %82, %91, %cst_27 {dimension_numbers = #tpu.dot_dimension_numbers<[1], [0], [0], [1], [0, 0, 1, 1], [], []>} : vector<2x128xf32>, vector<128x896xf32>, vector<2x896xf32> -> vector<2x896xf32>
    %c0_28 = arith.constant 0 : index
    %c0_29 = arith.constant 0 : index
    %93 = vector.load %arg2[%c0_28, %c0_29] : memref<1x512xf32, #tpu.memory_space<vmem>>, vector<1x512xf32>
    %94 = vector.broadcast %90 : vector<2x1xf32> to vector<2x512xf32>
    %95 = vector.broadcast %93 : vector<1x512xf32> to vector<2x512xf32>
    %96 = arith.mulf %94, %95 : vector<2x512xf32>
    %c0_30 = arith.constant 0 : index
    %c0_31 = arith.constant 0 : index
    %97 = vector.load %arg3[%c0_30, %c0_31] : memref<1x512xf32, #tpu.memory_space<vmem>>, vector<1x512xf32>
    %98 = vector.broadcast %97 : vector<1x512xf32> to vector<2x512xf32>
    %99 = arith.addf %96, %98 : vector<2x512xf32>
    %100 = vector.extract_strided_slice %92 {offsets = [0, 0], sizes = [2, 512], strides = [1, 1]} : vector<2x896xf32> to vector<2x512xf32>
    %101 = arith.addf %99, %100 : vector<2x512xf32>
    %102 = vector.extract_strided_slice %101 {offsets = [0, 0], sizes = [2, 128], strides = [1, 1]} : vector<2x512xf32> to vector<2x128xf32>
    %103 = arith.negf %102 : vector<2x128xf32>
    %104 = math.exp %103 : vector<2x128xf32>
    %cst_32 = arith.constant 1.000000e+00 : f32
    %105 = vector.broadcast %cst_32 : f32 to vector<2x128xf32>
    %106 = arith.addf %105, %104 : vector<2x128xf32>
    %107 = arith.divf %105, %106 : vector<2x128xf32>
    %108 = vector.extract_strided_slice %101 {offsets = [0, 128], sizes = [2, 128], strides = [1, 1]} : vector<2x512xf32> to vector<2x128xf32>
    %109 = arith.negf %108 : vector<2x128xf32>
    %110 = math.exp %109 : vector<2x128xf32>
    %cst_33 = arith.constant 1.000000e+00 : f32
    %111 = vector.broadcast %cst_33 : f32 to vector<2x128xf32>
    %112 = arith.addf %111, %110 : vector<2x128xf32>
    %113 = arith.divf %111, %112 : vector<2x128xf32>
    %114 = vector.extract_strided_slice %101 {offsets = [0, 256], sizes = [2, 128], strides = [1, 1]} : vector<2x512xf32> to vector<2x128xf32>
    %115 = math.tanh %114 : vector<2x128xf32>
    %116 = vector.extract_strided_slice %101 {offsets = [0, 384], sizes = [2, 128], strides = [1, 1]} : vector<2x512xf32> to vector<2x128xf32>
    %117 = arith.negf %116 : vector<2x128xf32>
    %118 = math.exp %117 : vector<2x128xf32>
    %cst_34 = arith.constant 1.000000e+00 : f32
    %119 = vector.broadcast %cst_34 : f32 to vector<2x128xf32>
    %120 = arith.addf %119, %118 : vector<2x128xf32>
    %121 = arith.divf %119, %120 : vector<2x128xf32>
    %122 = arith.mulf %113, %44 : vector<2x128xf32>
    %123 = arith.mulf %107, %115 : vector<2x128xf32>
    %124 = arith.addf %122, %123 : vector<2x128xf32>
    %125 = math.tanh %124 : vector<2x128xf32>
    %126 = arith.mulf %121, %125 : vector<2x128xf32>
    %127 = vector.extract_strided_slice %92 {offsets = [0, 512], sizes = [2, 384], strides = [1, 1]} : vector<2x896xf32> to vector<2x384xf32>
    %c0_35 = arith.constant 0 : index
    %c0_36 = arith.constant 0 : index
    %128 = vector.load %arg5[%c0_35, %c0_36] : memref<128x384xf32, #tpu.memory_space<vmem>>, vector<128x384xf32>
    %cst_37 = arith.constant dense<0.000000e+00> : vector<2x384xf32>
    %129 = tpu.matmul %126, %128, %cst_37 {dimension_numbers = #tpu.dot_dimension_numbers<[1], [0], [0], [1], [0, 0, 1, 1], [], []>} : vector<2x128xf32>, vector<128x384xf32>, vector<2x384xf32> -> vector<2x384xf32>
    %c0_38 = arith.constant 0 : index
    %c0_39 = arith.constant 0 : index
    %130 = vector.load %arg6[%c0_38, %c0_39] : memref<1x384xf32, #tpu.memory_space<vmem>>, vector<1x384xf32>
    %131 = vector.broadcast %130 : vector<1x384xf32> to vector<2x384xf32>
    %132 = arith.addf %129, %131 : vector<2x384xf32>
    %133 = vector.extract_strided_slice %132 {offsets = [0, 0], sizes = [2, 128], strides = [1, 1]} : vector<2x384xf32> to vector<2x128xf32>
    %134 = vector.extract_strided_slice %127 {offsets = [0, 0], sizes = [2, 128], strides = [1, 1]} : vector<2x384xf32> to vector<2x128xf32>
    %135 = arith.addf %133, %134 : vector<2x128xf32>
    %136 = arith.negf %135 : vector<2x128xf32>
    %137 = math.exp %136 : vector<2x128xf32>
    %cst_40 = arith.constant 1.000000e+00 : f32
    %138 = vector.broadcast %cst_40 : f32 to vector<2x128xf32>
    %139 = arith.addf %138, %137 : vector<2x128xf32>
    %140 = arith.divf %138, %139 : vector<2x128xf32>
    %141 = vector.extract_strided_slice %132 {offsets = [0, 128], sizes = [2, 128], strides = [1, 1]} : vector<2x384xf32> to vector<2x128xf32>
    %142 = vector.extract_strided_slice %127 {offsets = [0, 128], sizes = [2, 128], strides = [1, 1]} : vector<2x384xf32> to vector<2x128xf32>
    %143 = arith.addf %141, %142 : vector<2x128xf32>
    %144 = arith.negf %143 : vector<2x128xf32>
    %145 = math.exp %144 : vector<2x128xf32>
    %cst_41 = arith.constant 1.000000e+00 : f32
    %146 = vector.broadcast %cst_41 : f32 to vector<2x128xf32>
    %147 = arith.addf %146, %145 : vector<2x128xf32>
    %148 = arith.divf %146, %147 : vector<2x128xf32>
    %149 = vector.extract_strided_slice %132 {offsets = [0, 256], sizes = [2, 128], strides = [1, 1]} : vector<2x384xf32> to vector<2x128xf32>
    %150 = vector.extract_strided_slice %127 {offsets = [0, 256], sizes = [2, 128], strides = [1, 1]} : vector<2x384xf32> to vector<2x128xf32>
    %c0_42 = arith.constant 0 : index
    %c0_43 = arith.constant 0 : index
    %151 = vector.load %arg7[%c0_42, %c0_43] : memref<1x128xf32, #tpu.memory_space<vmem>>, vector<1x128xf32>
    %152 = vector.broadcast %151 : vector<1x128xf32> to vector<2x128xf32>
    %153 = arith.addf %150, %152 : vector<2x128xf32>
    %154 = arith.mulf %140, %153 : vector<2x128xf32>
    %155 = arith.addf %149, %154 : vector<2x128xf32>
    %156 = math.tanh %155 : vector<2x128xf32>
    %cst_44 = arith.constant 1.000000e+00 : f32
    %157 = vector.broadcast %cst_44 : f32 to vector<2x128xf32>
    %158 = arith.subf %157, %148 : vector<2x128xf32>
    %159 = arith.mulf %158, %156 : vector<2x128xf32>
    %160 = arith.mulf %148, %81 : vector<2x128xf32>
    %161 = arith.addf %159, %160 : vector<2x128xf32>
    %162 = arith.addf %126, %161 : vector<2x128xf32>
    %c2_i32 = arith.constant 2 : i32
    %163 = vector.broadcast %c2_i32 : i32 to vector<1x8xi32>
    %164 = arith.cmpi eq, %1, %163 : vector<1x8xi32>
    %cst_45 = arith.constant 0.000000e+00 : f32
    %165 = vector.shape_cast %164 : vector<1x8xi1> to vector<1x8xi1>
    %166 = vector.broadcast %165 : vector<1x8xi1> to vector<2x8xi1>
    %167 = vector.broadcast %cst_45 : f32 to vector<2x8xf32>
    %168 = arith.select %166, %0, %167 : vector<2x8xi1>, vector<2x8xf32>
    %cst_46 = arith.constant dense<0.000000e+00> : vector<2xf32>
    %169 = vector.multi_reduction <add>, %168, %cst_46 [1] : vector<2x8xf32> to vector<2xf32>
    %170 = vector.shape_cast %169 : vector<2xf32> to vector<2x1xf32>
    %c0_47 = arith.constant 0 : index
    %c0_48 = arith.constant 0 : index
    %171 = vector.load %arg4[%c0_47, %c0_48] : memref<128x896xf32, #tpu.memory_space<vmem>>, vector<128x896xf32>
    %cst_49 = arith.constant dense<0.000000e+00> : vector<2x896xf32>
    %172 = tpu.matmul %162, %171, %cst_49 {dimension_numbers = #tpu.dot_dimension_numbers<[1], [0], [0], [1], [0, 0, 1, 1], [], []>} : vector<2x128xf32>, vector<128x896xf32>, vector<2x896xf32> -> vector<2x896xf32>
    %c0_50 = arith.constant 0 : index
    %c0_51 = arith.constant 0 : index
    %173 = vector.load %arg2[%c0_50, %c0_51] : memref<1x512xf32, #tpu.memory_space<vmem>>, vector<1x512xf32>
    %174 = vector.broadcast %170 : vector<2x1xf32> to vector<2x512xf32>
    %175 = vector.broadcast %173 : vector<1x512xf32> to vector<2x512xf32>
    %176 = arith.mulf %174, %175 : vector<2x512xf32>
    %c0_52 = arith.constant 0 : index
    %c0_53 = arith.constant 0 : index
    %177 = vector.load %arg3[%c0_52, %c0_53] : memref<1x512xf32, #tpu.memory_space<vmem>>, vector<1x512xf32>
    %178 = vector.broadcast %177 : vector<1x512xf32> to vector<2x512xf32>
    %179 = arith.addf %176, %178 : vector<2x512xf32>
    %180 = vector.extract_strided_slice %172 {offsets = [0, 0], sizes = [2, 512], strides = [1, 1]} : vector<2x896xf32> to vector<2x512xf32>
    %181 = arith.addf %179, %180 : vector<2x512xf32>
    %182 = vector.extract_strided_slice %181 {offsets = [0, 0], sizes = [2, 128], strides = [1, 1]} : vector<2x512xf32> to vector<2x128xf32>
    %183 = arith.negf %182 : vector<2x128xf32>
    %184 = math.exp %183 : vector<2x128xf32>
    %cst_54 = arith.constant 1.000000e+00 : f32
    %185 = vector.broadcast %cst_54 : f32 to vector<2x128xf32>
    %186 = arith.addf %185, %184 : vector<2x128xf32>
    %187 = arith.divf %185, %186 : vector<2x128xf32>
    %188 = vector.extract_strided_slice %181 {offsets = [0, 128], sizes = [2, 128], strides = [1, 1]} : vector<2x512xf32> to vector<2x128xf32>
    %189 = arith.negf %188 : vector<2x128xf32>
    %190 = math.exp %189 : vector<2x128xf32>
    %cst_55 = arith.constant 1.000000e+00 : f32
    %191 = vector.broadcast %cst_55 : f32 to vector<2x128xf32>
    %192 = arith.addf %191, %190 : vector<2x128xf32>
    %193 = arith.divf %191, %192 : vector<2x128xf32>
    %194 = vector.extract_strided_slice %181 {offsets = [0, 256], sizes = [2, 128], strides = [1, 1]} : vector<2x512xf32> to vector<2x128xf32>
    %195 = math.tanh %194 : vector<2x128xf32>
    %196 = vector.extract_strided_slice %181 {offsets = [0, 384], sizes = [2, 128], strides = [1, 1]} : vector<2x512xf32> to vector<2x128xf32>
    %197 = arith.negf %196 : vector<2x128xf32>
    %198 = math.exp %197 : vector<2x128xf32>
    %cst_56 = arith.constant 1.000000e+00 : f32
    %199 = vector.broadcast %cst_56 : f32 to vector<2x128xf32>
    %200 = arith.addf %199, %198 : vector<2x128xf32>
    %201 = arith.divf %199, %200 : vector<2x128xf32>
    %202 = arith.mulf %193, %124 : vector<2x128xf32>
    %203 = arith.mulf %187, %195 : vector<2x128xf32>
    %204 = arith.addf %202, %203 : vector<2x128xf32>
    %205 = math.tanh %204 : vector<2x128xf32>
    %206 = arith.mulf %201, %205 : vector<2x128xf32>
    %207 = vector.extract_strided_slice %172 {offsets = [0, 512], sizes = [2, 384], strides = [1, 1]} : vector<2x896xf32> to vector<2x384xf32>
    %c0_57 = arith.constant 0 : index
    %c0_58 = arith.constant 0 : index
    %208 = vector.load %arg5[%c0_57, %c0_58] : memref<128x384xf32, #tpu.memory_space<vmem>>, vector<128x384xf32>
    %cst_59 = arith.constant dense<0.000000e+00> : vector<2x384xf32>
    %209 = tpu.matmul %206, %208, %cst_59 {dimension_numbers = #tpu.dot_dimension_numbers<[1], [0], [0], [1], [0, 0, 1, 1], [], []>} : vector<2x128xf32>, vector<128x384xf32>, vector<2x384xf32> -> vector<2x384xf32>
    %c0_60 = arith.constant 0 : index
    %c0_61 = arith.constant 0 : index
    %210 = vector.load %arg6[%c0_60, %c0_61] : memref<1x384xf32, #tpu.memory_space<vmem>>, vector<1x384xf32>
    %211 = vector.broadcast %210 : vector<1x384xf32> to vector<2x384xf32>
    %212 = arith.addf %209, %211 : vector<2x384xf32>
    %213 = vector.extract_strided_slice %212 {offsets = [0, 0], sizes = [2, 128], strides = [1, 1]} : vector<2x384xf32> to vector<2x128xf32>
    %214 = vector.extract_strided_slice %207 {offsets = [0, 0], sizes = [2, 128], strides = [1, 1]} : vector<2x384xf32> to vector<2x128xf32>
    %215 = arith.addf %213, %214 : vector<2x128xf32>
    %216 = arith.negf %215 : vector<2x128xf32>
    %217 = math.exp %216 : vector<2x128xf32>
    %cst_62 = arith.constant 1.000000e+00 : f32
    %218 = vector.broadcast %cst_62 : f32 to vector<2x128xf32>
    %219 = arith.addf %218, %217 : vector<2x128xf32>
    %220 = arith.divf %218, %219 : vector<2x128xf32>
    %221 = vector.extract_strided_slice %212 {offsets = [0, 128], sizes = [2, 128], strides = [1, 1]} : vector<2x384xf32> to vector<2x128xf32>
    %222 = vector.extract_strided_slice %207 {offsets = [0, 128], sizes = [2, 128], strides = [1, 1]} : vector<2x384xf32> to vector<2x128xf32>
    %223 = arith.addf %221, %222 : vector<2x128xf32>
    %224 = arith.negf %223 : vector<2x128xf32>
    %225 = math.exp %224 : vector<2x128xf32>
    %cst_63 = arith.constant 1.000000e+00 : f32
    %226 = vector.broadcast %cst_63 : f32 to vector<2x128xf32>
    %227 = arith.addf %226, %225 : vector<2x128xf32>
    %228 = arith.divf %226, %227 : vector<2x128xf32>
    %229 = vector.extract_strided_slice %212 {offsets = [0, 256], sizes = [2, 128], strides = [1, 1]} : vector<2x384xf32> to vector<2x128xf32>
    %230 = vector.extract_strided_slice %207 {offsets = [0, 256], sizes = [2, 128], strides = [1, 1]} : vector<2x384xf32> to vector<2x128xf32>
    %c0_64 = arith.constant 0 : index
    %c0_65 = arith.constant 0 : index
    %231 = vector.load %arg7[%c0_64, %c0_65] : memref<1x128xf32, #tpu.memory_space<vmem>>, vector<1x128xf32>
    %232 = vector.broadcast %231 : vector<1x128xf32> to vector<2x128xf32>
    %233 = arith.addf %230, %232 : vector<2x128xf32>
    %234 = arith.mulf %220, %233 : vector<2x128xf32>
    %235 = arith.addf %229, %234 : vector<2x128xf32>
    %236 = math.tanh %235 : vector<2x128xf32>
    %cst_66 = arith.constant 1.000000e+00 : f32
    %237 = vector.broadcast %cst_66 : f32 to vector<2x128xf32>
    %238 = arith.subf %237, %228 : vector<2x128xf32>
    %239 = arith.mulf %238, %236 : vector<2x128xf32>
    %240 = arith.mulf %228, %161 : vector<2x128xf32>
    %241 = arith.addf %239, %240 : vector<2x128xf32>
    %242 = arith.addf %206, %241 : vector<2x128xf32>
    %c3_i32 = arith.constant 3 : i32
    %243 = vector.broadcast %c3_i32 : i32 to vector<1x8xi32>
    %244 = arith.cmpi eq, %1, %243 : vector<1x8xi32>
    %cst_67 = arith.constant 0.000000e+00 : f32
    %245 = vector.shape_cast %244 : vector<1x8xi1> to vector<1x8xi1>
    %246 = vector.broadcast %245 : vector<1x8xi1> to vector<2x8xi1>
    %247 = vector.broadcast %cst_67 : f32 to vector<2x8xf32>
    %248 = arith.select %246, %0, %247 : vector<2x8xi1>, vector<2x8xf32>
    %cst_68 = arith.constant dense<0.000000e+00> : vector<2xf32>
    %249 = vector.multi_reduction <add>, %248, %cst_68 [1] : vector<2x8xf32> to vector<2xf32>
    %250 = vector.shape_cast %249 : vector<2xf32> to vector<2x1xf32>
    %c0_69 = arith.constant 0 : index
    %c0_70 = arith.constant 0 : index
    %251 = vector.load %arg4[%c0_69, %c0_70] : memref<128x896xf32, #tpu.memory_space<vmem>>, vector<128x896xf32>
    %cst_71 = arith.constant dense<0.000000e+00> : vector<2x896xf32>
    %252 = tpu.matmul %242, %251, %cst_71 {dimension_numbers = #tpu.dot_dimension_numbers<[1], [0], [0], [1], [0, 0, 1, 1], [], []>} : vector<2x128xf32>, vector<128x896xf32>, vector<2x896xf32> -> vector<2x896xf32>
    %c0_72 = arith.constant 0 : index
    %c0_73 = arith.constant 0 : index
    %253 = vector.load %arg2[%c0_72, %c0_73] : memref<1x512xf32, #tpu.memory_space<vmem>>, vector<1x512xf32>
    %254 = vector.broadcast %250 : vector<2x1xf32> to vector<2x512xf32>
    %255 = vector.broadcast %253 : vector<1x512xf32> to vector<2x512xf32>
    %256 = arith.mulf %254, %255 : vector<2x512xf32>
    %c0_74 = arith.constant 0 : index
    %c0_75 = arith.constant 0 : index
    %257 = vector.load %arg3[%c0_74, %c0_75] : memref<1x512xf32, #tpu.memory_space<vmem>>, vector<1x512xf32>
    %258 = vector.broadcast %257 : vector<1x512xf32> to vector<2x512xf32>
    %259 = arith.addf %256, %258 : vector<2x512xf32>
    %260 = vector.extract_strided_slice %252 {offsets = [0, 0], sizes = [2, 512], strides = [1, 1]} : vector<2x896xf32> to vector<2x512xf32>
    %261 = arith.addf %259, %260 : vector<2x512xf32>
    %262 = vector.extract_strided_slice %261 {offsets = [0, 0], sizes = [2, 128], strides = [1, 1]} : vector<2x512xf32> to vector<2x128xf32>
    %263 = arith.negf %262 : vector<2x128xf32>
    %264 = math.exp %263 : vector<2x128xf32>
    %cst_76 = arith.constant 1.000000e+00 : f32
    %265 = vector.broadcast %cst_76 : f32 to vector<2x128xf32>
    %266 = arith.addf %265, %264 : vector<2x128xf32>
    %267 = arith.divf %265, %266 : vector<2x128xf32>
    %268 = vector.extract_strided_slice %261 {offsets = [0, 128], sizes = [2, 128], strides = [1, 1]} : vector<2x512xf32> to vector<2x128xf32>
    %269 = arith.negf %268 : vector<2x128xf32>
    %270 = math.exp %269 : vector<2x128xf32>
    %cst_77 = arith.constant 1.000000e+00 : f32
    %271 = vector.broadcast %cst_77 : f32 to vector<2x128xf32>
    %272 = arith.addf %271, %270 : vector<2x128xf32>
    %273 = arith.divf %271, %272 : vector<2x128xf32>
    %274 = vector.extract_strided_slice %261 {offsets = [0, 256], sizes = [2, 128], strides = [1, 1]} : vector<2x512xf32> to vector<2x128xf32>
    %275 = math.tanh %274 : vector<2x128xf32>
    %276 = vector.extract_strided_slice %261 {offsets = [0, 384], sizes = [2, 128], strides = [1, 1]} : vector<2x512xf32> to vector<2x128xf32>
    %277 = arith.negf %276 : vector<2x128xf32>
    %278 = math.exp %277 : vector<2x128xf32>
    %cst_78 = arith.constant 1.000000e+00 : f32
    %279 = vector.broadcast %cst_78 : f32 to vector<2x128xf32>
    %280 = arith.addf %279, %278 : vector<2x128xf32>
    %281 = arith.divf %279, %280 : vector<2x128xf32>
    %282 = arith.mulf %273, %204 : vector<2x128xf32>
    %283 = arith.mulf %267, %275 : vector<2x128xf32>
    %284 = arith.addf %282, %283 : vector<2x128xf32>
    %285 = math.tanh %284 : vector<2x128xf32>
    %286 = arith.mulf %281, %285 : vector<2x128xf32>
    %287 = vector.extract_strided_slice %252 {offsets = [0, 512], sizes = [2, 384], strides = [1, 1]} : vector<2x896xf32> to vector<2x384xf32>
    %c0_79 = arith.constant 0 : index
    %c0_80 = arith.constant 0 : index
    %288 = vector.load %arg5[%c0_79, %c0_80] : memref<128x384xf32, #tpu.memory_space<vmem>>, vector<128x384xf32>
    %cst_81 = arith.constant dense<0.000000e+00> : vector<2x384xf32>
    %289 = tpu.matmul %286, %288, %cst_81 {dimension_numbers = #tpu.dot_dimension_numbers<[1], [0], [0], [1], [0, 0, 1, 1], [], []>} : vector<2x128xf32>, vector<128x384xf32>, vector<2x384xf32> -> vector<2x384xf32>
    %c0_82 = arith.constant 0 : index
    %c0_83 = arith.constant 0 : index
    %290 = vector.load %arg6[%c0_82, %c0_83] : memref<1x384xf32, #tpu.memory_space<vmem>>, vector<1x384xf32>
    %291 = vector.broadcast %290 : vector<1x384xf32> to vector<2x384xf32>
    %292 = arith.addf %289, %291 : vector<2x384xf32>
    %293 = vector.extract_strided_slice %292 {offsets = [0, 0], sizes = [2, 128], strides = [1, 1]} : vector<2x384xf32> to vector<2x128xf32>
    %294 = vector.extract_strided_slice %287 {offsets = [0, 0], sizes = [2, 128], strides = [1, 1]} : vector<2x384xf32> to vector<2x128xf32>
    %295 = arith.addf %293, %294 : vector<2x128xf32>
    %296 = arith.negf %295 : vector<2x128xf32>
    %297 = math.exp %296 : vector<2x128xf32>
    %cst_84 = arith.constant 1.000000e+00 : f32
    %298 = vector.broadcast %cst_84 : f32 to vector<2x128xf32>
    %299 = arith.addf %298, %297 : vector<2x128xf32>
    %300 = arith.divf %298, %299 : vector<2x128xf32>
    %301 = vector.extract_strided_slice %292 {offsets = [0, 128], sizes = [2, 128], strides = [1, 1]} : vector<2x384xf32> to vector<2x128xf32>
    %302 = vector.extract_strided_slice %287 {offsets = [0, 128], sizes = [2, 128], strides = [1, 1]} : vector<2x384xf32> to vector<2x128xf32>
    %303 = arith.addf %301, %302 : vector<2x128xf32>
    %304 = arith.negf %303 : vector<2x128xf32>
    %305 = math.exp %304 : vector<2x128xf32>
    %cst_85 = arith.constant 1.000000e+00 : f32
    %306 = vector.broadcast %cst_85 : f32 to vector<2x128xf32>
    %307 = arith.addf %306, %305 : vector<2x128xf32>
    %308 = arith.divf %306, %307 : vector<2x128xf32>
    %309 = vector.extract_strided_slice %292 {offsets = [0, 256], sizes = [2, 128], strides = [1, 1]} : vector<2x384xf32> to vector<2x128xf32>
    %310 = vector.extract_strided_slice %287 {offsets = [0, 256], sizes = [2, 128], strides = [1, 1]} : vector<2x384xf32> to vector<2x128xf32>
    %c0_86 = arith.constant 0 : index
    %c0_87 = arith.constant 0 : index
    %311 = vector.load %arg7[%c0_86, %c0_87] : memref<1x128xf32, #tpu.memory_space<vmem>>, vector<1x128xf32>
    %312 = vector.broadcast %311 : vector<1x128xf32> to vector<2x128xf32>
    %313 = arith.addf %310, %312 : vector<2x128xf32>
    %314 = arith.mulf %300, %313 : vector<2x128xf32>
    %315 = arith.addf %309, %314 : vector<2x128xf32>
    %316 = math.tanh %315 : vector<2x128xf32>
    %cst_88 = arith.constant 1.000000e+00 : f32
    %317 = vector.broadcast %cst_88 : f32 to vector<2x128xf32>
    %318 = arith.subf %317, %308 : vector<2x128xf32>
    %319 = arith.mulf %318, %316 : vector<2x128xf32>
    %320 = arith.mulf %308, %241 : vector<2x128xf32>
    %321 = arith.addf %319, %320 : vector<2x128xf32>
    %322 = arith.addf %286, %321 : vector<2x128xf32>
    %c4_i32 = arith.constant 4 : i32
    %323 = vector.broadcast %c4_i32 : i32 to vector<1x8xi32>
    %324 = arith.cmpi eq, %1, %323 : vector<1x8xi32>
    %cst_89 = arith.constant 0.000000e+00 : f32
    %325 = vector.shape_cast %324 : vector<1x8xi1> to vector<1x8xi1>
    %326 = vector.broadcast %325 : vector<1x8xi1> to vector<2x8xi1>
    %327 = vector.broadcast %cst_89 : f32 to vector<2x8xf32>
    %328 = arith.select %326, %0, %327 : vector<2x8xi1>, vector<2x8xf32>
    %cst_90 = arith.constant dense<0.000000e+00> : vector<2xf32>
    %329 = vector.multi_reduction <add>, %328, %cst_90 [1] : vector<2x8xf32> to vector<2xf32>
    %330 = vector.shape_cast %329 : vector<2xf32> to vector<2x1xf32>
    %c0_91 = arith.constant 0 : index
    %c0_92 = arith.constant 0 : index
    %331 = vector.load %arg4[%c0_91, %c0_92] : memref<128x896xf32, #tpu.memory_space<vmem>>, vector<128x896xf32>
    %cst_93 = arith.constant dense<0.000000e+00> : vector<2x896xf32>
    %332 = tpu.matmul %322, %331, %cst_93 {dimension_numbers = #tpu.dot_dimension_numbers<[1], [0], [0], [1], [0, 0, 1, 1], [], []>} : vector<2x128xf32>, vector<128x896xf32>, vector<2x896xf32> -> vector<2x896xf32>
    %c0_94 = arith.constant 0 : index
    %c0_95 = arith.constant 0 : index
    %333 = vector.load %arg2[%c0_94, %c0_95] : memref<1x512xf32, #tpu.memory_space<vmem>>, vector<1x512xf32>
    %334 = vector.broadcast %330 : vector<2x1xf32> to vector<2x512xf32>
    %335 = vector.broadcast %333 : vector<1x512xf32> to vector<2x512xf32>
    %336 = arith.mulf %334, %335 : vector<2x512xf32>
    %c0_96 = arith.constant 0 : index
    %c0_97 = arith.constant 0 : index
    %337 = vector.load %arg3[%c0_96, %c0_97] : memref<1x512xf32, #tpu.memory_space<vmem>>, vector<1x512xf32>
    %338 = vector.broadcast %337 : vector<1x512xf32> to vector<2x512xf32>
    %339 = arith.addf %336, %338 : vector<2x512xf32>
    %340 = vector.extract_strided_slice %332 {offsets = [0, 0], sizes = [2, 512], strides = [1, 1]} : vector<2x896xf32> to vector<2x512xf32>
    %341 = arith.addf %339, %340 : vector<2x512xf32>
    %342 = vector.extract_strided_slice %341 {offsets = [0, 0], sizes = [2, 128], strides = [1, 1]} : vector<2x512xf32> to vector<2x128xf32>
    %343 = arith.negf %342 : vector<2x128xf32>
    %344 = math.exp %343 : vector<2x128xf32>
    %cst_98 = arith.constant 1.000000e+00 : f32
    %345 = vector.broadcast %cst_98 : f32 to vector<2x128xf32>
    %346 = arith.addf %345, %344 : vector<2x128xf32>
    %347 = arith.divf %345, %346 : vector<2x128xf32>
    %348 = vector.extract_strided_slice %341 {offsets = [0, 128], sizes = [2, 128], strides = [1, 1]} : vector<2x512xf32> to vector<2x128xf32>
    %349 = arith.negf %348 : vector<2x128xf32>
    %350 = math.exp %349 : vector<2x128xf32>
    %cst_99 = arith.constant 1.000000e+00 : f32
    %351 = vector.broadcast %cst_99 : f32 to vector<2x128xf32>
    %352 = arith.addf %351, %350 : vector<2x128xf32>
    %353 = arith.divf %351, %352 : vector<2x128xf32>
    %354 = vector.extract_strided_slice %341 {offsets = [0, 256], sizes = [2, 128], strides = [1, 1]} : vector<2x512xf32> to vector<2x128xf32>
    %355 = math.tanh %354 : vector<2x128xf32>
    %356 = vector.extract_strided_slice %341 {offsets = [0, 384], sizes = [2, 128], strides = [1, 1]} : vector<2x512xf32> to vector<2x128xf32>
    %357 = arith.negf %356 : vector<2x128xf32>
    %358 = math.exp %357 : vector<2x128xf32>
    %cst_100 = arith.constant 1.000000e+00 : f32
    %359 = vector.broadcast %cst_100 : f32 to vector<2x128xf32>
    %360 = arith.addf %359, %358 : vector<2x128xf32>
    %361 = arith.divf %359, %360 : vector<2x128xf32>
    %362 = arith.mulf %353, %284 : vector<2x128xf32>
    %363 = arith.mulf %347, %355 : vector<2x128xf32>
    %364 = arith.addf %362, %363 : vector<2x128xf32>
    %365 = math.tanh %364 : vector<2x128xf32>
    %366 = arith.mulf %361, %365 : vector<2x128xf32>
    %367 = vector.extract_strided_slice %332 {offsets = [0, 512], sizes = [2, 384], strides = [1, 1]} : vector<2x896xf32> to vector<2x384xf32>
    %c0_101 = arith.constant 0 : index
    %c0_102 = arith.constant 0 : index
    %368 = vector.load %arg5[%c0_101, %c0_102] : memref<128x384xf32, #tpu.memory_space<vmem>>, vector<128x384xf32>
    %cst_103 = arith.constant dense<0.000000e+00> : vector<2x384xf32>
    %369 = tpu.matmul %366, %368, %cst_103 {dimension_numbers = #tpu.dot_dimension_numbers<[1], [0], [0], [1], [0, 0, 1, 1], [], []>} : vector<2x128xf32>, vector<128x384xf32>, vector<2x384xf32> -> vector<2x384xf32>
    %c0_104 = arith.constant 0 : index
    %c0_105 = arith.constant 0 : index
    %370 = vector.load %arg6[%c0_104, %c0_105] : memref<1x384xf32, #tpu.memory_space<vmem>>, vector<1x384xf32>
    %371 = vector.broadcast %370 : vector<1x384xf32> to vector<2x384xf32>
    %372 = arith.addf %369, %371 : vector<2x384xf32>
    %373 = vector.extract_strided_slice %372 {offsets = [0, 0], sizes = [2, 128], strides = [1, 1]} : vector<2x384xf32> to vector<2x128xf32>
    %374 = vector.extract_strided_slice %367 {offsets = [0, 0], sizes = [2, 128], strides = [1, 1]} : vector<2x384xf32> to vector<2x128xf32>
    %375 = arith.addf %373, %374 : vector<2x128xf32>
    %376 = arith.negf %375 : vector<2x128xf32>
    %377 = math.exp %376 : vector<2x128xf32>
    %cst_106 = arith.constant 1.000000e+00 : f32
    %378 = vector.broadcast %cst_106 : f32 to vector<2x128xf32>
    %379 = arith.addf %378, %377 : vector<2x128xf32>
    %380 = arith.divf %378, %379 : vector<2x128xf32>
    %381 = vector.extract_strided_slice %372 {offsets = [0, 128], sizes = [2, 128], strides = [1, 1]} : vector<2x384xf32> to vector<2x128xf32>
    %382 = vector.extract_strided_slice %367 {offsets = [0, 128], sizes = [2, 128], strides = [1, 1]} : vector<2x384xf32> to vector<2x128xf32>
    %383 = arith.addf %381, %382 : vector<2x128xf32>
    %384 = arith.negf %383 : vector<2x128xf32>
    %385 = math.exp %384 : vector<2x128xf32>
    %cst_107 = arith.constant 1.000000e+00 : f32
    %386 = vector.broadcast %cst_107 : f32 to vector<2x128xf32>
    %387 = arith.addf %386, %385 : vector<2x128xf32>
    %388 = arith.divf %386, %387 : vector<2x128xf32>
    %389 = vector.extract_strided_slice %372 {offsets = [0, 256], sizes = [2, 128], strides = [1, 1]} : vector<2x384xf32> to vector<2x128xf32>
    %390 = vector.extract_strided_slice %367 {offsets = [0, 256], sizes = [2, 128], strides = [1, 1]} : vector<2x384xf32> to vector<2x128xf32>
    %c0_108 = arith.constant 0 : index
    %c0_109 = arith.constant 0 : index
    %391 = vector.load %arg7[%c0_108, %c0_109] : memref<1x128xf32, #tpu.memory_space<vmem>>, vector<1x128xf32>
    %392 = vector.broadcast %391 : vector<1x128xf32> to vector<2x128xf32>
    %393 = arith.addf %390, %392 : vector<2x128xf32>
    %394 = arith.mulf %380, %393 : vector<2x128xf32>
    %395 = arith.addf %389, %394 : vector<2x128xf32>
    %396 = math.tanh %395 : vector<2x128xf32>
    %cst_110 = arith.constant 1.000000e+00 : f32
    %397 = vector.broadcast %cst_110 : f32 to vector<2x128xf32>
    %398 = arith.subf %397, %388 : vector<2x128xf32>
    %399 = arith.mulf %398, %396 : vector<2x128xf32>
    %400 = arith.mulf %388, %321 : vector<2x128xf32>
    %401 = arith.addf %399, %400 : vector<2x128xf32>
    %402 = arith.addf %366, %401 : vector<2x128xf32>
    %c5_i32 = arith.constant 5 : i32
    %403 = vector.broadcast %c5_i32 : i32 to vector<1x8xi32>
    %404 = arith.cmpi eq, %1, %403 : vector<1x8xi32>
    %cst_111 = arith.constant 0.000000e+00 : f32
    %405 = vector.shape_cast %404 : vector<1x8xi1> to vector<1x8xi1>
    %406 = vector.broadcast %405 : vector<1x8xi1> to vector<2x8xi1>
    %407 = vector.broadcast %cst_111 : f32 to vector<2x8xf32>
    %408 = arith.select %406, %0, %407 : vector<2x8xi1>, vector<2x8xf32>
    %cst_112 = arith.constant dense<0.000000e+00> : vector<2xf32>
    %409 = vector.multi_reduction <add>, %408, %cst_112 [1] : vector<2x8xf32> to vector<2xf32>
    %410 = vector.shape_cast %409 : vector<2xf32> to vector<2x1xf32>
    %c0_113 = arith.constant 0 : index
    %c0_114 = arith.constant 0 : index
    %411 = vector.load %arg4[%c0_113, %c0_114] : memref<128x896xf32, #tpu.memory_space<vmem>>, vector<128x896xf32>
    %cst_115 = arith.constant dense<0.000000e+00> : vector<2x896xf32>
    %412 = tpu.matmul %402, %411, %cst_115 {dimension_numbers = #tpu.dot_dimension_numbers<[1], [0], [0], [1], [0, 0, 1, 1], [], []>} : vector<2x128xf32>, vector<128x896xf32>, vector<2x896xf32> -> vector<2x896xf32>
    %c0_116 = arith.constant 0 : index
    %c0_117 = arith.constant 0 : index
    %413 = vector.load %arg2[%c0_116, %c0_117] : memref<1x512xf32, #tpu.memory_space<vmem>>, vector<1x512xf32>
    %414 = vector.broadcast %410 : vector<2x1xf32> to vector<2x512xf32>
    %415 = vector.broadcast %413 : vector<1x512xf32> to vector<2x512xf32>
    %416 = arith.mulf %414, %415 : vector<2x512xf32>
    %c0_118 = arith.constant 0 : index
    %c0_119 = arith.constant 0 : index
    %417 = vector.load %arg3[%c0_118, %c0_119] : memref<1x512xf32, #tpu.memory_space<vmem>>, vector<1x512xf32>
    %418 = vector.broadcast %417 : vector<1x512xf32> to vector<2x512xf32>
    %419 = arith.addf %416, %418 : vector<2x512xf32>
    %420 = vector.extract_strided_slice %412 {offsets = [0, 0], sizes = [2, 512], strides = [1, 1]} : vector<2x896xf32> to vector<2x512xf32>
    %421 = arith.addf %419, %420 : vector<2x512xf32>
    %422 = vector.extract_strided_slice %421 {offsets = [0, 0], sizes = [2, 128], strides = [1, 1]} : vector<2x512xf32> to vector<2x128xf32>
    %423 = arith.negf %422 : vector<2x128xf32>
    %424 = math.exp %423 : vector<2x128xf32>
    %cst_120 = arith.constant 1.000000e+00 : f32
    %425 = vector.broadcast %cst_120 : f32 to vector<2x128xf32>
    %426 = arith.addf %425, %424 : vector<2x128xf32>
    %427 = arith.divf %425, %426 : vector<2x128xf32>
    %428 = vector.extract_strided_slice %421 {offsets = [0, 128], sizes = [2, 128], strides = [1, 1]} : vector<2x512xf32> to vector<2x128xf32>
    %429 = arith.negf %428 : vector<2x128xf32>
    %430 = math.exp %429 : vector<2x128xf32>
    %cst_121 = arith.constant 1.000000e+00 : f32
    %431 = vector.broadcast %cst_121 : f32 to vector<2x128xf32>
    %432 = arith.addf %431, %430 : vector<2x128xf32>
    %433 = arith.divf %431, %432 : vector<2x128xf32>
    %434 = vector.extract_strided_slice %421 {offsets = [0, 256], sizes = [2, 128], strides = [1, 1]} : vector<2x512xf32> to vector<2x128xf32>
    %435 = math.tanh %434 : vector<2x128xf32>
    %436 = vector.extract_strided_slice %421 {offsets = [0, 384], sizes = [2, 128], strides = [1, 1]} : vector<2x512xf32> to vector<2x128xf32>
    %437 = arith.negf %436 : vector<2x128xf32>
    %438 = math.exp %437 : vector<2x128xf32>
    %cst_122 = arith.constant 1.000000e+00 : f32
    %439 = vector.broadcast %cst_122 : f32 to vector<2x128xf32>
    %440 = arith.addf %439, %438 : vector<2x128xf32>
    %441 = arith.divf %439, %440 : vector<2x128xf32>
    %442 = arith.mulf %433, %364 : vector<2x128xf32>
    %443 = arith.mulf %427, %435 : vector<2x128xf32>
    %444 = arith.addf %442, %443 : vector<2x128xf32>
    %445 = math.tanh %444 : vector<2x128xf32>
    %446 = arith.mulf %441, %445 : vector<2x128xf32>
    %447 = vector.extract_strided_slice %412 {offsets = [0, 512], sizes = [2, 384], strides = [1, 1]} : vector<2x896xf32> to vector<2x384xf32>
    %c0_123 = arith.constant 0 : index
    %c0_124 = arith.constant 0 : index
    %448 = vector.load %arg5[%c0_123, %c0_124] : memref<128x384xf32, #tpu.memory_space<vmem>>, vector<128x384xf32>
    %cst_125 = arith.constant dense<0.000000e+00> : vector<2x384xf32>
    %449 = tpu.matmul %446, %448, %cst_125 {dimension_numbers = #tpu.dot_dimension_numbers<[1], [0], [0], [1], [0, 0, 1, 1], [], []>} : vector<2x128xf32>, vector<128x384xf32>, vector<2x384xf32> -> vector<2x384xf32>
    %c0_126 = arith.constant 0 : index
    %c0_127 = arith.constant 0 : index
    %450 = vector.load %arg6[%c0_126, %c0_127] : memref<1x384xf32, #tpu.memory_space<vmem>>, vector<1x384xf32>
    %451 = vector.broadcast %450 : vector<1x384xf32> to vector<2x384xf32>
    %452 = arith.addf %449, %451 : vector<2x384xf32>
    %453 = vector.extract_strided_slice %452 {offsets = [0, 0], sizes = [2, 128], strides = [1, 1]} : vector<2x384xf32> to vector<2x128xf32>
    %454 = vector.extract_strided_slice %447 {offsets = [0, 0], sizes = [2, 128], strides = [1, 1]} : vector<2x384xf32> to vector<2x128xf32>
    %455 = arith.addf %453, %454 : vector<2x128xf32>
    %456 = arith.negf %455 : vector<2x128xf32>
    %457 = math.exp %456 : vector<2x128xf32>
    %cst_128 = arith.constant 1.000000e+00 : f32
    %458 = vector.broadcast %cst_128 : f32 to vector<2x128xf32>
    %459 = arith.addf %458, %457 : vector<2x128xf32>
    %460 = arith.divf %458, %459 : vector<2x128xf32>
    %461 = vector.extract_strided_slice %452 {offsets = [0, 128], sizes = [2, 128], strides = [1, 1]} : vector<2x384xf32> to vector<2x128xf32>
    %462 = vector.extract_strided_slice %447 {offsets = [0, 128], sizes = [2, 128], strides = [1, 1]} : vector<2x384xf32> to vector<2x128xf32>
    %463 = arith.addf %461, %462 : vector<2x128xf32>
    %464 = arith.negf %463 : vector<2x128xf32>
    %465 = math.exp %464 : vector<2x128xf32>
    %cst_129 = arith.constant 1.000000e+00 : f32
    %466 = vector.broadcast %cst_129 : f32 to vector<2x128xf32>
    %467 = arith.addf %466, %465 : vector<2x128xf32>
    %468 = arith.divf %466, %467 : vector<2x128xf32>
    %469 = vector.extract_strided_slice %452 {offsets = [0, 256], sizes = [2, 128], strides = [1, 1]} : vector<2x384xf32> to vector<2x128xf32>
    %470 = vector.extract_strided_slice %447 {offsets = [0, 256], sizes = [2, 128], strides = [1, 1]} : vector<2x384xf32> to vector<2x128xf32>
    %c0_130 = arith.constant 0 : index
    %c0_131 = arith.constant 0 : index
    %471 = vector.load %arg7[%c0_130, %c0_131] : memref<1x128xf32, #tpu.memory_space<vmem>>, vector<1x128xf32>
    %472 = vector.broadcast %471 : vector<1x128xf32> to vector<2x128xf32>
    %473 = arith.addf %470, %472 : vector<2x128xf32>
    %474 = arith.mulf %460, %473 : vector<2x128xf32>
    %475 = arith.addf %469, %474 : vector<2x128xf32>
    %476 = math.tanh %475 : vector<2x128xf32>
    %cst_132 = arith.constant 1.000000e+00 : f32
    %477 = vector.broadcast %cst_132 : f32 to vector<2x128xf32>
    %478 = arith.subf %477, %468 : vector<2x128xf32>
    %479 = arith.mulf %478, %476 : vector<2x128xf32>
    %480 = arith.mulf %468, %401 : vector<2x128xf32>
    %481 = arith.addf %479, %480 : vector<2x128xf32>
    %482 = arith.addf %446, %481 : vector<2x128xf32>
    %c6_i32 = arith.constant 6 : i32
    %483 = vector.broadcast %c6_i32 : i32 to vector<1x8xi32>
    %484 = arith.cmpi eq, %1, %483 : vector<1x8xi32>
    %cst_133 = arith.constant 0.000000e+00 : f32
    %485 = vector.shape_cast %484 : vector<1x8xi1> to vector<1x8xi1>
    %486 = vector.broadcast %485 : vector<1x8xi1> to vector<2x8xi1>
    %487 = vector.broadcast %cst_133 : f32 to vector<2x8xf32>
    %488 = arith.select %486, %0, %487 : vector<2x8xi1>, vector<2x8xf32>
    %cst_134 = arith.constant dense<0.000000e+00> : vector<2xf32>
    %489 = vector.multi_reduction <add>, %488, %cst_134 [1] : vector<2x8xf32> to vector<2xf32>
    %490 = vector.shape_cast %489 : vector<2xf32> to vector<2x1xf32>
    %c0_135 = arith.constant 0 : index
    %c0_136 = arith.constant 0 : index
    %491 = vector.load %arg4[%c0_135, %c0_136] : memref<128x896xf32, #tpu.memory_space<vmem>>, vector<128x896xf32>
    %cst_137 = arith.constant dense<0.000000e+00> : vector<2x896xf32>
    %492 = tpu.matmul %482, %491, %cst_137 {dimension_numbers = #tpu.dot_dimension_numbers<[1], [0], [0], [1], [0, 0, 1, 1], [], []>} : vector<2x128xf32>, vector<128x896xf32>, vector<2x896xf32> -> vector<2x896xf32>
    %c0_138 = arith.constant 0 : index
    %c0_139 = arith.constant 0 : index
    %493 = vector.load %arg2[%c0_138, %c0_139] : memref<1x512xf32, #tpu.memory_space<vmem>>, vector<1x512xf32>
    %494 = vector.broadcast %490 : vector<2x1xf32> to vector<2x512xf32>
    %495 = vector.broadcast %493 : vector<1x512xf32> to vector<2x512xf32>
    %496 = arith.mulf %494, %495 : vector<2x512xf32>
    %c0_140 = arith.constant 0 : index
    %c0_141 = arith.constant 0 : index
    %497 = vector.load %arg3[%c0_140, %c0_141] : memref<1x512xf32, #tpu.memory_space<vmem>>, vector<1x512xf32>
    %498 = vector.broadcast %497 : vector<1x512xf32> to vector<2x512xf32>
    %499 = arith.addf %496, %498 : vector<2x512xf32>
    %500 = vector.extract_strided_slice %492 {offsets = [0, 0], sizes = [2, 512], strides = [1, 1]} : vector<2x896xf32> to vector<2x512xf32>
    %501 = arith.addf %499, %500 : vector<2x512xf32>
    %502 = vector.extract_strided_slice %501 {offsets = [0, 0], sizes = [2, 128], strides = [1, 1]} : vector<2x512xf32> to vector<2x128xf32>
    %503 = arith.negf %502 : vector<2x128xf32>
    %504 = math.exp %503 : vector<2x128xf32>
    %cst_142 = arith.constant 1.000000e+00 : f32
    %505 = vector.broadcast %cst_142 : f32 to vector<2x128xf32>
    %506 = arith.addf %505, %504 : vector<2x128xf32>
    %507 = arith.divf %505, %506 : vector<2x128xf32>
    %508 = vector.extract_strided_slice %501 {offsets = [0, 128], sizes = [2, 128], strides = [1, 1]} : vector<2x512xf32> to vector<2x128xf32>
    %509 = arith.negf %508 : vector<2x128xf32>
    %510 = math.exp %509 : vector<2x128xf32>
    %cst_143 = arith.constant 1.000000e+00 : f32
    %511 = vector.broadcast %cst_143 : f32 to vector<2x128xf32>
    %512 = arith.addf %511, %510 : vector<2x128xf32>
    %513 = arith.divf %511, %512 : vector<2x128xf32>
    %514 = vector.extract_strided_slice %501 {offsets = [0, 256], sizes = [2, 128], strides = [1, 1]} : vector<2x512xf32> to vector<2x128xf32>
    %515 = math.tanh %514 : vector<2x128xf32>
    %516 = vector.extract_strided_slice %501 {offsets = [0, 384], sizes = [2, 128], strides = [1, 1]} : vector<2x512xf32> to vector<2x128xf32>
    %517 = arith.negf %516 : vector<2x128xf32>
    %518 = math.exp %517 : vector<2x128xf32>
    %cst_144 = arith.constant 1.000000e+00 : f32
    %519 = vector.broadcast %cst_144 : f32 to vector<2x128xf32>
    %520 = arith.addf %519, %518 : vector<2x128xf32>
    %521 = arith.divf %519, %520 : vector<2x128xf32>
    %522 = arith.mulf %513, %444 : vector<2x128xf32>
    %523 = arith.mulf %507, %515 : vector<2x128xf32>
    %524 = arith.addf %522, %523 : vector<2x128xf32>
    %525 = math.tanh %524 : vector<2x128xf32>
    %526 = arith.mulf %521, %525 : vector<2x128xf32>
    %527 = vector.extract_strided_slice %492 {offsets = [0, 512], sizes = [2, 384], strides = [1, 1]} : vector<2x896xf32> to vector<2x384xf32>
    %c0_145 = arith.constant 0 : index
    %c0_146 = arith.constant 0 : index
    %528 = vector.load %arg5[%c0_145, %c0_146] : memref<128x384xf32, #tpu.memory_space<vmem>>, vector<128x384xf32>
    %cst_147 = arith.constant dense<0.000000e+00> : vector<2x384xf32>
    %529 = tpu.matmul %526, %528, %cst_147 {dimension_numbers = #tpu.dot_dimension_numbers<[1], [0], [0], [1], [0, 0, 1, 1], [], []>} : vector<2x128xf32>, vector<128x384xf32>, vector<2x384xf32> -> vector<2x384xf32>
    %c0_148 = arith.constant 0 : index
    %c0_149 = arith.constant 0 : index
    %530 = vector.load %arg6[%c0_148, %c0_149] : memref<1x384xf32, #tpu.memory_space<vmem>>, vector<1x384xf32>
    %531 = vector.broadcast %530 : vector<1x384xf32> to vector<2x384xf32>
    %532 = arith.addf %529, %531 : vector<2x384xf32>
    %533 = vector.extract_strided_slice %532 {offsets = [0, 0], sizes = [2, 128], strides = [1, 1]} : vector<2x384xf32> to vector<2x128xf32>
    %534 = vector.extract_strided_slice %527 {offsets = [0, 0], sizes = [2, 128], strides = [1, 1]} : vector<2x384xf32> to vector<2x128xf32>
    %535 = arith.addf %533, %534 : vector<2x128xf32>
    %536 = arith.negf %535 : vector<2x128xf32>
    %537 = math.exp %536 : vector<2x128xf32>
    %cst_150 = arith.constant 1.000000e+00 : f32
    %538 = vector.broadcast %cst_150 : f32 to vector<2x128xf32>
    %539 = arith.addf %538, %537 : vector<2x128xf32>
    %540 = arith.divf %538, %539 : vector<2x128xf32>
    %541 = vector.extract_strided_slice %532 {offsets = [0, 128], sizes = [2, 128], strides = [1, 1]} : vector<2x384xf32> to vector<2x128xf32>
    %542 = vector.extract_strided_slice %527 {offsets = [0, 128], sizes = [2, 128], strides = [1, 1]} : vector<2x384xf32> to vector<2x128xf32>
    %543 = arith.addf %541, %542 : vector<2x128xf32>
    %544 = arith.negf %543 : vector<2x128xf32>
    %545 = math.exp %544 : vector<2x128xf32>
    %cst_151 = arith.constant 1.000000e+00 : f32
    %546 = vector.broadcast %cst_151 : f32 to vector<2x128xf32>
    %547 = arith.addf %546, %545 : vector<2x128xf32>
    %548 = arith.divf %546, %547 : vector<2x128xf32>
    %549 = vector.extract_strided_slice %532 {offsets = [0, 256], sizes = [2, 128], strides = [1, 1]} : vector<2x384xf32> to vector<2x128xf32>
    %550 = vector.extract_strided_slice %527 {offsets = [0, 256], sizes = [2, 128], strides = [1, 1]} : vector<2x384xf32> to vector<2x128xf32>
    %c0_152 = arith.constant 0 : index
    %c0_153 = arith.constant 0 : index
    %551 = vector.load %arg7[%c0_152, %c0_153] : memref<1x128xf32, #tpu.memory_space<vmem>>, vector<1x128xf32>
    %552 = vector.broadcast %551 : vector<1x128xf32> to vector<2x128xf32>
    %553 = arith.addf %550, %552 : vector<2x128xf32>
    %554 = arith.mulf %540, %553 : vector<2x128xf32>
    %555 = arith.addf %549, %554 : vector<2x128xf32>
    %556 = math.tanh %555 : vector<2x128xf32>
    %cst_154 = arith.constant 1.000000e+00 : f32
    %557 = vector.broadcast %cst_154 : f32 to vector<2x128xf32>
    %558 = arith.subf %557, %548 : vector<2x128xf32>
    %559 = arith.mulf %558, %556 : vector<2x128xf32>
    %560 = arith.mulf %548, %481 : vector<2x128xf32>
    %561 = arith.addf %559, %560 : vector<2x128xf32>
    %562 = arith.addf %526, %561 : vector<2x128xf32>
    %c7_i32 = arith.constant 7 : i32
    %563 = vector.broadcast %c7_i32 : i32 to vector<1x8xi32>
    %564 = arith.cmpi eq, %1, %563 : vector<1x8xi32>
    %cst_155 = arith.constant 0.000000e+00 : f32
    %565 = vector.shape_cast %564 : vector<1x8xi1> to vector<1x8xi1>
    %566 = vector.broadcast %565 : vector<1x8xi1> to vector<2x8xi1>
    %567 = vector.broadcast %cst_155 : f32 to vector<2x8xf32>
    %568 = arith.select %566, %0, %567 : vector<2x8xi1>, vector<2x8xf32>
    %cst_156 = arith.constant dense<0.000000e+00> : vector<2xf32>
    %569 = vector.multi_reduction <add>, %568, %cst_156 [1] : vector<2x8xf32> to vector<2xf32>
    %570 = vector.shape_cast %569 : vector<2xf32> to vector<2x1xf32>
    %c0_157 = arith.constant 0 : index
    %c0_158 = arith.constant 0 : index
    %571 = vector.load %arg4[%c0_157, %c0_158] : memref<128x896xf32, #tpu.memory_space<vmem>>, vector<128x896xf32>
    %cst_159 = arith.constant dense<0.000000e+00> : vector<2x896xf32>
    %572 = tpu.matmul %562, %571, %cst_159 {dimension_numbers = #tpu.dot_dimension_numbers<[1], [0], [0], [1], [0, 0, 1, 1], [], []>} : vector<2x128xf32>, vector<128x896xf32>, vector<2x896xf32> -> vector<2x896xf32>
    %c0_160 = arith.constant 0 : index
    %c0_161 = arith.constant 0 : index
    %573 = vector.load %arg2[%c0_160, %c0_161] : memref<1x512xf32, #tpu.memory_space<vmem>>, vector<1x512xf32>
    %574 = vector.broadcast %570 : vector<2x1xf32> to vector<2x512xf32>
    %575 = vector.broadcast %573 : vector<1x512xf32> to vector<2x512xf32>
    %576 = arith.mulf %574, %575 : vector<2x512xf32>
    %c0_162 = arith.constant 0 : index
    %c0_163 = arith.constant 0 : index
    %577 = vector.load %arg3[%c0_162, %c0_163] : memref<1x512xf32, #tpu.memory_space<vmem>>, vector<1x512xf32>
    %578 = vector.broadcast %577 : vector<1x512xf32> to vector<2x512xf32>
    %579 = arith.addf %576, %578 : vector<2x512xf32>
    %580 = vector.extract_strided_slice %572 {offsets = [0, 0], sizes = [2, 512], strides = [1, 1]} : vector<2x896xf32> to vector<2x512xf32>
    %581 = arith.addf %579, %580 : vector<2x512xf32>
    %582 = vector.extract_strided_slice %581 {offsets = [0, 0], sizes = [2, 128], strides = [1, 1]} : vector<2x512xf32> to vector<2x128xf32>
    %583 = arith.negf %582 : vector<2x128xf32>
    %584 = math.exp %583 : vector<2x128xf32>
    %cst_164 = arith.constant 1.000000e+00 : f32
    %585 = vector.broadcast %cst_164 : f32 to vector<2x128xf32>
    %586 = arith.addf %585, %584 : vector<2x128xf32>
    %587 = arith.divf %585, %586 : vector<2x128xf32>
    %588 = vector.extract_strided_slice %581 {offsets = [0, 128], sizes = [2, 128], strides = [1, 1]} : vector<2x512xf32> to vector<2x128xf32>
    %589 = arith.negf %588 : vector<2x128xf32>
    %590 = math.exp %589 : vector<2x128xf32>
    %cst_165 = arith.constant 1.000000e+00 : f32
    %591 = vector.broadcast %cst_165 : f32 to vector<2x128xf32>
    %592 = arith.addf %591, %590 : vector<2x128xf32>
    %593 = arith.divf %591, %592 : vector<2x128xf32>
    %594 = vector.extract_strided_slice %581 {offsets = [0, 256], sizes = [2, 128], strides = [1, 1]} : vector<2x512xf32> to vector<2x128xf32>
    %595 = math.tanh %594 : vector<2x128xf32>
    %596 = vector.extract_strided_slice %581 {offsets = [0, 384], sizes = [2, 128], strides = [1, 1]} : vector<2x512xf32> to vector<2x128xf32>
    %597 = arith.negf %596 : vector<2x128xf32>
    %598 = math.exp %597 : vector<2x128xf32>
    %cst_166 = arith.constant 1.000000e+00 : f32
    %599 = vector.broadcast %cst_166 : f32 to vector<2x128xf32>
    %600 = arith.addf %599, %598 : vector<2x128xf32>
    %601 = arith.divf %599, %600 : vector<2x128xf32>
    %602 = arith.mulf %593, %524 : vector<2x128xf32>
    %603 = arith.mulf %587, %595 : vector<2x128xf32>
    %604 = arith.addf %602, %603 : vector<2x128xf32>
    %605 = math.tanh %604 : vector<2x128xf32>
    %606 = arith.mulf %601, %605 : vector<2x128xf32>
    %607 = vector.extract_strided_slice %572 {offsets = [0, 512], sizes = [2, 384], strides = [1, 1]} : vector<2x896xf32> to vector<2x384xf32>
    %c0_167 = arith.constant 0 : index
    %c0_168 = arith.constant 0 : index
    %608 = vector.load %arg5[%c0_167, %c0_168] : memref<128x384xf32, #tpu.memory_space<vmem>>, vector<128x384xf32>
    %cst_169 = arith.constant dense<0.000000e+00> : vector<2x384xf32>
    %609 = tpu.matmul %606, %608, %cst_169 {dimension_numbers = #tpu.dot_dimension_numbers<[1], [0], [0], [1], [0, 0, 1, 1], [], []>} : vector<2x128xf32>, vector<128x384xf32>, vector<2x384xf32> -> vector<2x384xf32>
    %c0_170 = arith.constant 0 : index
    %c0_171 = arith.constant 0 : index
    %610 = vector.load %arg6[%c0_170, %c0_171] : memref<1x384xf32, #tpu.memory_space<vmem>>, vector<1x384xf32>
    %611 = vector.broadcast %610 : vector<1x384xf32> to vector<2x384xf32>
    %612 = arith.addf %609, %611 : vector<2x384xf32>
    %613 = vector.extract_strided_slice %612 {offsets = [0, 0], sizes = [2, 128], strides = [1, 1]} : vector<2x384xf32> to vector<2x128xf32>
    %614 = vector.extract_strided_slice %607 {offsets = [0, 0], sizes = [2, 128], strides = [1, 1]} : vector<2x384xf32> to vector<2x128xf32>
    %615 = arith.addf %613, %614 : vector<2x128xf32>
    %616 = arith.negf %615 : vector<2x128xf32>
    %617 = math.exp %616 : vector<2x128xf32>
    %cst_172 = arith.constant 1.000000e+00 : f32
    %618 = vector.broadcast %cst_172 : f32 to vector<2x128xf32>
    %619 = arith.addf %618, %617 : vector<2x128xf32>
    %620 = arith.divf %618, %619 : vector<2x128xf32>
    %621 = vector.extract_strided_slice %612 {offsets = [0, 128], sizes = [2, 128], strides = [1, 1]} : vector<2x384xf32> to vector<2x128xf32>
    %622 = vector.extract_strided_slice %607 {offsets = [0, 128], sizes = [2, 128], strides = [1, 1]} : vector<2x384xf32> to vector<2x128xf32>
    %623 = arith.addf %621, %622 : vector<2x128xf32>
    %624 = arith.negf %623 : vector<2x128xf32>
    %625 = math.exp %624 : vector<2x128xf32>
    %cst_173 = arith.constant 1.000000e+00 : f32
    %626 = vector.broadcast %cst_173 : f32 to vector<2x128xf32>
    %627 = arith.addf %626, %625 : vector<2x128xf32>
    %628 = arith.divf %626, %627 : vector<2x128xf32>
    %629 = vector.extract_strided_slice %612 {offsets = [0, 256], sizes = [2, 128], strides = [1, 1]} : vector<2x384xf32> to vector<2x128xf32>
    %630 = vector.extract_strided_slice %607 {offsets = [0, 256], sizes = [2, 128], strides = [1, 1]} : vector<2x384xf32> to vector<2x128xf32>
    %c0_174 = arith.constant 0 : index
    %c0_175 = arith.constant 0 : index
    %631 = vector.load %arg7[%c0_174, %c0_175] : memref<1x128xf32, #tpu.memory_space<vmem>>, vector<1x128xf32>
    %632 = vector.broadcast %631 : vector<1x128xf32> to vector<2x128xf32>
    %633 = arith.addf %630, %632 : vector<2x128xf32>
    %634 = arith.mulf %620, %633 : vector<2x128xf32>
    %635 = arith.addf %629, %634 : vector<2x128xf32>
    %636 = math.tanh %635 : vector<2x128xf32>
    %cst_176 = arith.constant 1.000000e+00 : f32
    %637 = vector.broadcast %cst_176 : f32 to vector<2x128xf32>
    %638 = arith.subf %637, %628 : vector<2x128xf32>
    %639 = arith.mulf %638, %636 : vector<2x128xf32>
    %640 = arith.mulf %628, %561 : vector<2x128xf32>
    %641 = arith.addf %639, %640 : vector<2x128xf32>
    %642 = arith.addf %606, %641 : vector<2x128xf32>
    %c8_i32 = arith.constant 8 : i32
    %c0_177 = arith.constant 0 : index
    %c0_178 = arith.constant 0 : index
    %643 = vector.load %arg8[%c0_177, %c0_178] : memref<128x1xf32, #tpu.memory_space<vmem>>, vector<128x1xf32>
    %cst_179 = arith.constant dense<0.000000e+00> : vector<2x1xf32>
    %644 = tpu.matmul %642, %643, %cst_179 {dimension_numbers = #tpu.dot_dimension_numbers<[1], [0], [0], [1], [0, 0, 1, 1], [], []>} : vector<2x128xf32>, vector<128x1xf32>, vector<2x1xf32> -> vector<2x1xf32>
    %c0_180 = arith.constant 0 : index
    %c0_181 = arith.constant 0 : index
    %645 = vector.load %arg9[%c0_180, %c0_181] : memref<1x1xf32, #tpu.memory_space<vmem>>, vector<1x1xf32>
    %646 = vector.broadcast %645 : vector<1x1xf32> to vector<2x1xf32>
    %647 = arith.addf %644, %646 : vector<2x1xf32>
    %c0_182 = arith.constant 0 : index
    %c0_183 = arith.constant 0 : index
    %648 = vector.load %arg10[%c0_182, %c0_183] : memref<2x1xf32, #tpu.memory_space<vmem>>, vector<2x1xf32>
    tpu.vector_store %arg10[%c0_182, %c0_183], %647 {strides = array<i32>} : memref<2x1xf32, #tpu.memory_space<vmem>>, vector<2x1xf32>,
    return
  }
  func.func @transform_0(%arg0: i32) -> (i32, i32) {
    %c0_i32 = arith.constant 0 : i32
    %c0_i32_0 = arith.constant 0 : i32
    %c0_i32_1 = arith.constant 0 : i32
    return %c0_i32, %c0_i32_0 : i32, i32
  }
  func.func @transform_1(%arg0: i32) -> (i32, i32) {
    %c0_i32 = arith.constant 0 : i32
    %c0_i32_0 = arith.constant 0 : i32
    %c0_i32_1 = arith.constant 0 : i32
    return %c0_i32, %c0_i32_0 : i32, i32
  }
  func.func @transform_2(%arg0: i32) -> (i32, i32) {
    %c0_i32 = arith.constant 0 : i32
    %c0_i32_0 = arith.constant 0 : i32
    %c0_i32_1 = arith.constant 0 : i32
    return %c0_i32, %c0_i32_0 : i32, i32
  }
  func.func @transform_3(%arg0: i32) -> (i32, i32) {
    %c0_i32 = arith.constant 0 : i32
    %c0_i32_0 = arith.constant 0 : i32
    %c0_i32_1 = arith.constant 0 : i32
    return %c0_i32, %c0_i32_0 : i32, i32
  }
  func.func @transform_4(%arg0: i32) -> (i32, i32) {
    %c0_i32 = arith.constant 0 : i32
    %c0_i32_0 = arith.constant 0 : i32
    %c0_i32_1 = arith.constant 0 : i32
    return %c0_i32, %c0_i32_0 : i32, i32
  }
  func.func @transform_5(%arg0: i32) -> (i32, i32) {
    %c0_i32 = arith.constant 0 : i32
    %c0_i32_0 = arith.constant 0 : i32
    %c0_i32_1 = arith.constant 0 : i32
    return %c0_i32, %c0_i32_0 : i32, i32
  }
  func.func @transform_6(%arg0: i32) -> (i32, i32) {
    %c0_i32 = arith.constant 0 : i32
    %c0_i32_0 = arith.constant 0 : i32
    %c0_i32_1 = arith.constant 0 : i32
    return %c0_i32, %c0_i32_0 : i32, i32
  }
  func.func @transform_7(%arg0: i32) -> (i32, i32) {
    %c0_i32 = arith.constant 0 : i32
    %c0_i32_0 = arith.constant 0 : i32
    %c0_i32_1 = arith.constant 0 : i32
    return %c0_i32, %c0_i32_0 : i32, i32
  }
  func.func @transform_8(%arg0: i32) -> (i32, i32) {
    %c0_i32 = arith.constant 0 : i32
    %c0_i32_0 = arith.constant 0 : i32
    %c0_i32_1 = arith.constant 0 : i32
    return %c0_i32, %c0_i32_0 : i32, i32
  }
  func.func @transform_9(%arg0: i32) -> (i32, i32) {
    %c0_i32 = arith.constant 0 : i32
    %c0_i32_0 = arith.constant 0 : i32
    %c0_i32_1 = arith.constant 0 : i32
    return %c0_i32, %c0_i32_0 : i32, i32
  }
}

</mosaic_0001>

<llo_original>
// kernel: tpu_custom_call.1
$region0: #{tpu_custom_call.1}
  #allocation0 [shape = 'u32[]', space=smem, size = 0x4, offset = 0x4, fixed_abs, tag = 'smem constant byte address 0x4 - core index']
  #allocation1 [shape = 'u32[144,128]{1,0:T(1,128)}', space=vmem, size = 0x12000, scoped, tag = 'internal scratch']
  #allocation2 [shape = 'f32[1,1]{1,0:T(1,128)S(1)}', space=vmem, size = 0x200, scoped, tag = 'scoped memory for tpu_custom_call.1']
  %s0 = inlined_call_operand.vmem [shape: f32[2,8], index: 0, kind: input, shape index: {}]
  %s1 = inlined_call_operand.vmem [shape: f32[1,512], index: 1, kind: input, shape index: {}]
  %s2 = inlined_call_operand.vmem [shape: f32[1,512], index: 2, kind: input, shape index: {}]
  %s3 = inlined_call_operand.hbm [shape: f32[128,896], index: 3, kind: input, shape index: {}]
  %s4 = inlined_call_operand.hbm [shape: f32[128,384], index: 4, kind: input, shape index: {}]
  %s5 = inlined_call_operand.vmem [shape: f32[1,384], index: 5, kind: input, shape index: {}]
  %s6 = inlined_call_operand.vmem [shape: f32[1,128], index: 6, kind: input, shape index: {}]
  %s7 = inlined_call_operand.vmem [shape: f32[128,1], index: 7, kind: input, shape index: {}]
  %s8 = inlined_call_operand.<no memory space> [shape: f32[1,1], index: 8, kind: input, shape index: {}]
  %s9 = inlined_call_operand.vmem [shape: f32[2,1], index: 9, kind: output, shape index: {}]
  %s10 = sld [smem:[#allocation0]]
  $region54: #{tpu_custom_call.1} parent=0
    _
  %s12 = ssub.s32 1, %s10
  %s13 = scalar_select 0, %s12, %s10
  %v14 = vstv %s8
  %15 = vst [vmem:[#allocation2] sm:$0x1] %v14
  $region1: #{tpu_custom_call.1} parent=0
    #allocation3 [shape = 'u8[458752]{0}', space=vmem, size = 0x70000, scoped, tag = 'input window, operand 3, single buffered']
    #allocation4 [shape = 's32[1]{0}', space=sflag, size = 0x4, scoped, tag = 'scoped memory for tpu_custom_call.1']
    #allocation5 [shape = 'u8[196608]{0}', space=vmem, size = 0x30000, scoped, tag = 'input window, operand 4, single buffered']
    #allocation6 [shape = 's32[1]{0}', space=sflag, size = 0x4, scoped, tag = 'scoped memory for tpu_custom_call.1']
    %16 = vsyncpa [#allocation4], 0
    %17 = vsyncpa [#allocation6], 0
    // Predicated region
    $region2: #{tpu_custom_call.1} parent=1 // pred_check
      _
    $region3: #{tpu_custom_call.1} parent=1 // pred_check_branch
      %19 = sbr.rel (0) target = $region5
    $region4: #{tpu_custom_call.1} parent=1 // pred_region
      _
    $region5: #{tpu_custom_call.1} parent=1 // pred_fallthru
      _
    // Predicated region
    $region6: #{tpu_custom_call.1} parent=1 // pred_check
      _
    $region7: #{tpu_custom_call.1} parent=1 // pred_check_branch
      %21 = sbr.rel (0) target = $region9
    $region8: #{tpu_custom_call.1} parent=1 // pred_region
      _
    $region9: #{tpu_custom_call.1} parent=1 // pred_fallthru
      _
    // Predicated region
    $region10: #{tpu_custom_call.1} parent=1 // pred_check
      _
    $region11: #{tpu_custom_call.1} parent=1 // pred_check_branch
      %23 = sbr.rel (0) target = $region13
    $region12: #{tpu_custom_call.1} parent=1 // pred_region
      _
    $region13: #{tpu_custom_call.1} parent=1 // pred_fallthru
      _
    // Predicated region
    $region14: #{tpu_custom_call.1} parent=1 // pred_check
      _
    $region15: #{tpu_custom_call.1} parent=1 // pred_check_branch
      %25 = sbr.rel (0) target = $region17
    $region16: #{tpu_custom_call.1} parent=1 // pred_region
      %s27 = ssub.s32 14336, 14336
      %28 = vsyncadd [#allocation4], %s27
      %s29 = sshll.u32 [#allocation3], 4
      %s30 = int_to_ptr.vmem [resolvable:$true] %s29
      %35 = dma.hbm_to_vmem [thread:$0]  %s3, 14336, %s30, [#allocation4], 896, 896, 56
    $region17: #{tpu_custom_call.1} parent=1 // pred_fallthru
      _
    // Predicated region
    $region18: #{tpu_custom_call.1} parent=1 // pred_check
      _
    $region19: #{tpu_custom_call.1} parent=1 // pred_check_branch
      %37 = sbr.rel (0) target = $region21
    $region20: #{tpu_custom_call.1} parent=1 // pred_region
      %s39 = ssub.s32 6144, 6144
      %40 = vsyncadd [#allocation6], %s39
      %s41 = sshll.u32 [#allocation5], 4
      %s42 = int_to_ptr.vmem [resolvable:$true] %s41
      %47 = dma.hbm_to_vmem [thread:$0]  %s4, 6144, %s42, [#allocation6], 384, 384, 24
    $region21: #{tpu_custom_call.1} parent=1 // pred_fallthru
      _
    // Predicated region
    $region22: #{tpu_custom_call.1} parent=1 // pred_check
      _
    $region23: #{tpu_custom_call.1} parent=1 // pred_check_branch
      %49 = sbr.rel (0) target = $region25
    $region24: #{tpu_custom_call.1} parent=1 // pred_region
      _
    $region25: #{tpu_custom_call.1} parent=1 // pred_fallthru
      _
    // Predicated region
    $region26: #{tpu_custom_call.1} parent=1 // pred_check
      _
    $region27: #{tpu_custom_call.1} parent=1 // pred_check_branch
      %51 = sbr.rel (0) target = $region29
    $region28: #{tpu_custom_call.1} parent=1 // pred_region
      _
    $region29: #{tpu_custom_call.1} parent=1 // pred_fallthru
      _
    // Predicated region
    $region30: #{tpu_custom_call.1} parent=1 // pred_check
      _
    $region31: #{tpu_custom_call.1} parent=1 // pred_check_branch
      %53 = sbr.rel (0) target = $region33
    $region32: #{tpu_custom_call.1} parent=1 // pred_region
      _
    $region33: #{tpu_custom_call.1} parent=1 // pred_fallthru
      _
    // Predicated region
    $region34: #{tpu_custom_call.1} parent=1 // pred_check
      _
    $region35: #{tpu_custom_call.1} parent=1 // pred_check_branch
      %55 = sbr.rel (0) target = $region37
    $region36: #{tpu_custom_call.1} parent=1 // pred_region
      _
    $region37: #{tpu_custom_call.1} parent=1 // pred_fallthru
      _
    // Predicated region
    $region38: #{tpu_custom_call.1} parent=1 // pred_check
      _
    $region39: #{tpu_custom_call.1} parent=1 // pred_check_branch
      %57 = sbr.rel (0) target = $region41
    $region40: #{tpu_custom_call.1} parent=1 // pred_region
      %58 = dma.done [#allocation4], 14336
    $region41: #{tpu_custom_call.1} parent=1 // pred_fallthru
      _
    // Predicated region
    $region42: #{tpu_custom_call.1} parent=1 // pred_check
      _
    $region43: #{tpu_custom_call.1} parent=1 // pred_check_branch
      %60 = sbr.rel (0) target = $region45
    $region44: #{tpu_custom_call.1} parent=1 // pred_region
      %61 = dma.done [#allocation6], 6144
    $region45: #{tpu_custom_call.1} parent=1 // pred_fallthru
      _
    %v62 = vld [vmem:[%s0] sm:$0x3]
    %v63 = vlaneseq
    %v64 = vand.u32 %v63, 127
    %vm65 = vcmp.eq.s32.totalorder %v64, 0
    %v66 = vsel %vm65, 1, 0
    %vm67 = vcmp.eq.s32.totalorder %v66, 1
    %v68 = vsel %vm67, %v62, 0.0
    %vm69 = vcmask 58368
    %v70 = vsel %vm69, %v68, 0.0
    %71 = vadd.xlane.f32.xlu0 %v70
    %v72 = vpop.xlane.xlu0 %71
    %v73 = vld [vmem:[#allocation3] sm:$0xff]
    %v74 = vld [vmem:[#allocation3 + $0x8] sm:$0xff]
    %v75 = vld [vmem:[#allocation3 + $0x10] sm:$0xff]
    %v76 = vld [vmem:[#allocation3 + $0x18] sm:$0xff]
    %v77 = vld [vmem:[#allocation3 + $0x20] sm:$0xff]
    %v78 = vld [vmem:[#allocation3 + $0x28] sm:$0xff]
    %v79 = vld [vmem:[#allocation3 + $0x30] sm:$0xff]
    %v80 = vld [vmem:[#allocation3 + $0x38] sm:$0xff]
    %v81 = vld [vmem:[#allocation3 + $0x40] sm:$0xff]
    %v82 = vld [vmem:[#allocation3 + $0x48] sm:$0xff]
    %v83 = vld [vmem:[#allocation3 + $0x50] sm:$0xff]
    %v84 = vld [vmem:[#allocation3 + $0x58] sm:$0xff]
    %v85 = vld [vmem:[#allocation3 + $0x60] sm:$0xff]
    %v86 = vld [vmem:[#allocation3 + $0x68] sm:$0xff]
    %v87 = vld [vmem:[#allocation3 + $0x70] sm:$0xff]
    %v88 = vld [vmem:[#allocation3 + $0x78] sm:$0xff]
    %v89 = vld [vmem:[#allocation3 + $0x80] sm:$0xff]
    %v90 = vld [vmem:[#allocation3 + $0x88] sm:$0xff]
    %v91 = vld [vmem:[#allocation3 + $0x90] sm:$0xff]
    %v92 = vld [vmem:[#allocation3 + $0x98] sm:$0xff]
    %v93 = vld [vmem:[#allocation3 + $0xa0] sm:$0xff]
    %v94 = vld [vmem:[#allocation3 + $0xa8] sm:$0xff]
    %v95 = vld [vmem:[#allocation3 + $0xb0] sm:$0xff]
    %v96 = vld [vmem:[#allocation3 + $0xb8] sm:$0xff]
    %v97 = vld [vmem:[#allocation3 + $0xc0] sm:$0xff]
    %v98 = vld [vmem:[#allocation3 + $0xc8] sm:$0xff]
    %v99 = vld [vmem:[#allocation3 + $0xd0] sm:$0xff]
    %v100 = vld [vmem:[#allocation3 + $0xd8] sm:$0xff]
    %v101 = vld [vmem:[#allocation3 + $0xe0] sm:$0xff]
    %v102 = vld [vmem:[#allocation3 + $0xe8] sm:$0xff]
    %v103 = vld [vmem:[#allocation3 + $0xf0] sm:$0xff]
    %v104 = vld [vmem:[#allocation3 + $0xf8] sm:$0xff]
    %v105 = vld [vmem:[#allocation3 + $0x100] sm:$0xff]
    %v106 = vld [vmem:[#allocation3 + $0x108] sm:$0xff]
    %v107 = vld [vmem:[#allocation3 + $0x110] sm:$0xff]
    %v108 = vld [vmem:[#allocation3 + $0x118] sm:$0xff]
    %v109 = vld [vmem:[#allocation3 + $0x120] sm:$0xff]
    %v110 = vld [vmem:[#allocation3 + $0x128] sm:$0xff]
    %v111 = vld [vmem:[#allocation3 + $0x130] sm:$0xff]
    %v112 = vld [vmem:[#allocation3 + $0x138] sm:$0xff]
    %v113 = vld [vmem:[#allocation3 + $0x140] sm:$0xff]
    %v114 = vld [vmem:[#allocation3 + $0x148] sm:$0xff]
    %v115 = vld [vmem:[#allocation3 + $0x150] sm:$0xff]
    %v116 = vld [vmem:[#allocation3 + $0x158] sm:$0xff]
    %v117 = vld [vmem:[#allocation3 + $0x160] sm:$0xff]
    %v118 = vld [vmem:[#allocation3 + $0x168] sm:$0xff]
    %v119 = vld [vmem:[#allocation3 + $0x170] sm:$0xff]
    %v120 = vld [vmem:[#allocation3 + $0x178] sm:$0xff]
    %v121 = vld [vmem:[#allocation3 + $0x180] sm:$0xff]
    %v122 = vld [vmem:[#allocation3 + $0x188] sm:$0xff]
    %v123 = vld [vmem:[#allocation3 + $0x190] sm:$0xff]
    %v124 = vld [vmem:[#allocation3 + $0x198] sm:$0xff]
    %v125 = vld [vmem:[#allocation3 + $0x1a0] sm:$0xff]
    %v126 = vld [vmem:[#allocation3 + $0x1a8] sm:$0xff]
    %v127 = vld [vmem:[#allocation3 + $0x1b0] sm:$0xff]
    %v128 = vld [vmem:[#allocation3 + $0x1b8] sm:$0xff]
    %v129 = vld [vmem:[#allocation3 + $0x1c0] sm:$0xff]
    %v130 = vld [vmem:[#allocation3 + $0x1c8] sm:$0xff]
    %v131 = vld [vmem:[#allocation3 + $0x1d0] sm:$0xff]
    %v132 = vld [vmem:[#allocation3 + $0x1d8] sm:$0xff]
    %v133 = vld [vmem:[#allocation3 + $0x1e0] sm:$0xff]
    %v134 = vld [vmem:[#allocation3 + $0x1e8] sm:$0xff]
    %v135 = vld [vmem:[#allocation3 + $0x1f0] sm:$0xff]
    %v136 = vld [vmem:[#allocation3 + $0x1f8] sm:$0xff]
    %v137 = vld [vmem:[#allocation3 + $0x200] sm:$0xff]
    %v138 = vld [vmem:[#allocation3 + $0x208] sm:$0xff]
    %v139 = vld [vmem:[#allocation3 + $0x210] sm:$0xff]
    %v140 = vld [vmem:[#allocation3 + $0x218] sm:$0xff]
    %v141 = vld [vmem:[#allocation3 + $0x220] sm:$0xff]
    %v142 = vld [vmem:[#allocation3 + $0x228] sm:$0xff]
    %v143 = vld [vmem:[#allocation3 + $0x230] sm:$0xff]
    %v144 = vld [vmem:[#allocation3 + $0x238] sm:$0xff]
    %v145 = vld [vmem:[#allocation3 + $0x240] sm:$0xff]
    %v146 = vld [vmem:[#allocation3 + $0x248] sm:$0xff]
    %v147 = vld [vmem:[#allocation3 + $0x250] sm:$0xff]
    %v148 = vld [vmem:[#allocation3 + $0x258] sm:$0xff]
    %v149 = vld [vmem:[#allocation3 + $0x260] sm:$0xff]
    %v150 = vld [vmem:[#allocation3 + $0x268] sm:$0xff]
    %v151 = vld [vmem:[#allocation3 + $0x270] sm:$0xff]
    %v152 = vld [vmem:[#allocation3 + $0x278] sm:$0xff]
    %v153 = vld [vmem:[#allocation3 + $0x280] sm:$0xff]
    %v154 = vld [vmem:[#allocation3 + $0x288] sm:$0xff]
    %v155 = vld [vmem:[#allocation3 + $0x290] sm:$0xff]
    %v156 = vld [vmem:[#allocation3 + $0x298] sm:$0xff]
    %v157 = vld [vmem:[#allocation3 + $0x2a0] sm:$0xff]
    %v158 = vld [vmem:[#allocation3 + $0x2a8] sm:$0xff]
    %v159 = vld [vmem:[#allocation3 + $0x2b0] sm:$0xff]
    %v160 = vld [vmem:[#allocation3 + $0x2b8] sm:$0xff]
    %v161 = vld [vmem:[#allocation3 + $0x2c0] sm:$0xff]
    %v162 = vld [vmem:[#allocation3 + $0x2c8] sm:$0xff]
    %v163 = vld [vmem:[#allocation3 + $0x2d0] sm:$0xff]
    %v164 = vld [vmem:[#allocation3 + $0x2d8] sm:$0xff]
    %v165 = vld [vmem:[#allocation3 + $0x2e0] sm:$0xff]
    %v166 = vld [vmem:[#allocation3 + $0x2e8] sm:$0xff]
    %v167 = vld [vmem:[#allocation3 + $0x2f0] sm:$0xff]
    %v168 = vld [vmem:[#allocation3 + $0x2f8] sm:$0xff]
    %v169 = vld [vmem:[#allocation3 + $0x300] sm:$0xff]
    %v170 = vld [vmem:[#allocation3 + $0x308] sm:$0xff]
    %v171 = vld [vmem:[#allocation3 + $0x310] sm:$0xff]
    %v172 = vld [vmem:[#allocation3 + $0x318] sm:$0xff]
    %v173 = vld [vmem:[#allocation3 + $0x320] sm:$0xff]
    %v174 = vld [vmem:[#allocation3 + $0x328] sm:$0xff]
    %v175 = vld [vmem:[#allocation3 + $0x330] sm:$0xff]
    %v176 = vld [vmem:[#allocation3 + $0x338] sm:$0xff]
    %v177 = vld [vmem:[#allocation3 + $0x340] sm:$0xff]
    %v178 = vld [vmem:[#allocation3 + $0x348] sm:$0xff]
    %v179 = vld [vmem:[#allocation3 + $0x350] sm:$0xff]
    %v180 = vld [vmem:[#allocation3 + $0x358] sm:$0xff]
    %v181 = vld [vmem:[#allocation3 + $0x360] sm:$0xff]
    %v182 = vld [vmem:[#allocation3 + $0x368] sm:$0xff]
    %v183 = vld [vmem:[#allocation3 + $0x370] sm:$0xff]
    %v184 = vld [vmem:[#allocation3 + $0x378] sm:$0xff]
    %185 = vmatprep.subr.mxu0 %v74
    %186 = vmatpush1.msra.mxu0 %v73
    %187 = vmatprep.subr.mxu0 %v81
    %188 = vmatpush1.msra.mxu0 %v80
    %189 = vmatprep.subr.mxu0 %v88
    %190 = vmatpush1.msra.mxu0 %v87
    %191 = vmatprep.subr.mxu0 %v95
    %192 = vmatpush1.msra.mxu0 %v94
    %193 = vmatprep.subr.mxu0 %v102
    %194 = vmatpush1.msra.mxu0 %v101
    %195 = vmatprep.subr.mxu0 %v109
    %196 = vmatpush1.msra.mxu0 %v108
    %197 = vmatprep.subr.mxu0 %v116
    %198 = vmatpush1.msra.mxu0 %v115
    %199 = vmatprep.subr.mxu0 %v123
    %200 = vmatpush1.msra.mxu0 %v122
    %201 = vmatprep.subr.mxu0 %v130
    %202 = vmatpush1.msra.mxu0 %v129
    %203 = vmatprep.subr.mxu0 %v137
    %204 = vmatpush1.msra.mxu0 %v136
    %205 = vmatprep.subr.mxu0 %v144
    %206 = vmatpush1.msra.mxu0 %v143
    %207 = vmatprep.subr.mxu0 %v151
    %208 = vmatpush1.msra.mxu0 %v150
    %209 = vmatprep.subr.mxu0 %v158
    %210 = vmatpush1.msra.mxu0 %v157
    %211 = vmatprep.subr.mxu0 %v165
    %212 = vmatpush1.msra.mxu0 %v164
    %213 = vmatprep.subr.mxu0 %v172
    %214 = vmatpush1.msra.mxu0 %v171
    %215 = vmatprep.subr.mxu0 %v179
    %216 = vmatpush1.msra.mxu0 %v178
    %217 = vmatprep.subr.mxu0 0.0
    %218 = vmatpush1.msra.mxu0 0.0
    %219 = vmatprep.subr.mxu0 0.0
    %220 = vmatpush1.msra.mxu0 0.0
    %221 = vmatprep.subr.mxu0 0.0
    %222 = vmatpush1.msra.mxu0 0.0
    %223 = vmatprep.subr.mxu0 0.0
    %224 = vmatpush1.msra.mxu0 0.0
    %225 = vmatprep.subr.mxu0 0.0
    %226 = vmatpush1.msra.mxu0 0.0
    %227 = vmatprep.subr.mxu0 0.0
    %228 = vmatpush1.msra.mxu0 0.0
    %229 = vmatprep.subr.mxu0 0.0
    %230 = vmatpush1.msra.mxu0 0.0
    %231 = vmatprep.subr.mxu0 0.0
    %232 = vmatpush1.msra.mxu0 0.0
    %233 = vmatprep.subr.mxu0 0.0
    %234 = vmatpush1.msra.mxu0 0.0
    %235 = vmatprep.subr.mxu0 0.0
    %236 = vmatpush1.msra.mxu0 0.0
    %237 = vmatprep.subr.mxu0 0.0
    %238 = vmatpush1.msra.mxu0 0.0
    %239 = vmatprep.subr.mxu0 0.0
    %240 = vmatpush1.msra.mxu0 0.0
    %241 = vmatprep.subr.mxu0 0.0
    %242 = vmatpush1.msra.mxu0 0.0
    %243 = vmatprep.subr.mxu0 0.0
    %244 = vmatpush1.msra.mxu0 0.0
    %245 = vmatprep.subr.mxu0 0.0
    %246 = vmatpush1.msra.mxu0 0.0
    %247 = vmatprep.subr.mxu0 0.0
    %248 = vmatpush1.msra.mxu0 0.0
    %249 = vmatprep.mubr.f32.mxu0 0.0
    %250 = vmatmul.mubr.f32.gmra.mrb[0].mxu0 0.0
    %v251 = vpop.f32.mrb[0].mxu0
    %v252 = vadd.f32 0.0, %v251
    %v253 = vpop.f32.mrb[0].mxu0
    %v254 = vadd.f32 0.0, %v253
    %255 = vdwg.mxu0
    %256 = vmatprep.subr.mxu0 %v76
    %257 = vmatpush1.msra.mxu0 %v75
    %258 = vmatprep.subr.mxu0 %v83
    %259 = vmatpush1.msra.mxu0 %v82
    %260 = vmatprep.subr.mxu0 %v90
    %261 = vmatpush1.msra.mxu0 %v89
    %262 = vmatprep.subr.mxu0 %v97
    %263 = vmatpush1.msra.mxu0 %v96
    %264 = vmatprep.subr.mxu0 %v104
    %265 = vmatpush1.msra.mxu0 %v103
    %266 = vmatprep.subr.mxu0 %v111
    %267 = vmatpush1.msra.mxu0 %v110
    %268 = vmatprep.subr.mxu0 %v118
    %269 = vmatpush1.msra.mxu0 %v117
    %270 = vmatprep.subr.mxu0 %v125
    %271 = vmatpush1.msra.mxu0 %v124
    %272 = vmatprep.subr.mxu0 %v132
    %273 = vmatpush1.msra.mxu0 %v131
    %274 = vmatprep.subr.mxu0 %v139
    %275 = vmatpush1.msra.mxu0 %v138
    %276 = vmatprep.subr.mxu0 %v146
    %277 = vmatpush1.msra.mxu0 %v145
    %278 = vmatprep.subr.mxu0 %v153
    %279 = vmatpush1.msra.mxu0 %v152
    %280 = vmatprep.subr.mxu0 %v160
    %281 = vmatpush1.msra.mxu0 %v159
    %282 = vmatprep.subr.mxu0 %v167
    %283 = vmatpush1.msra.mxu0 %v166
    %284 = vmatprep.subr.mxu0 %v174
    %285 = vmatpush1.msra.mxu0 %v173
    %286 = vmatprep.subr.mxu0 %v181
    %287 = vmatpush1.msra.mxu0 %v180
    %288 = vmatprep.subr.mxu0 0.0
    %289 = vmatpush1.msra.mxu0 0.0
    %290 = vmatprep.subr.mxu0 0.0
    %291 = vmatpush1.msra.mxu0 0.0
    %292 = vmatprep.subr.mxu0 0.0
    %293 = vmatpush1.msra.mxu0 0.0
    %294 = vmatprep.subr.mxu0 0.0
    %295 = vmatpush1.msra.mxu0 0.0
    %296 = vmatprep.subr.mxu0 0.0
    %297 = vmatpush1.msra.mxu0 0.0
    %298 = vmatprep.subr.mxu0 0.0
    %299 = vmatpush1.msra.mxu0 0.0
    %300 = vmatprep.subr.mxu0 0.0
    %301 = vmatpush1.msra.mxu0 0.0
    %302 = vmatprep.subr.mxu0 0.0
    %303 = vmatpush1.msra.mxu0 0.0
    %304 = vmatprep.subr.mxu0 0.0
    %305 = vmatpush1.msra.mxu0 0.0
    %306 = vmatprep.subr.mxu0 0.0
    %307 = vmatpush1.msra.mxu0 0.0
    %308 = vmatprep.subr.mxu0 0.0
    %309 = vmatpush1.msra.mxu0 0.0
    %310 = vmatprep.subr.mxu0 0.0
    %311 = vmatpush1.msra.mxu0 0.0
    %312 = vmatprep.subr.mxu0 0.0
    %313 = vmatpush1.msra.mxu0 0.0
    %314 = vmatprep.subr.mxu0 0.0
    %315 = vmatpush1.msra.mxu0 0.0
    %316 = vmatprep.subr.mxu0 0.0
    %317 = vmatpush1.msra.mxu0 0.0
    %318 = vmatprep.subr.mxu0 0.0
    %319 = vmatpush1.msra.mxu0 0.0
    %320 = vmatprep.mubr.f32.mxu0 0.0
    %321 = vmatmul.mubr.f32.gmra.mrb[0].mxu0 0.0
    %v322 = vpop.f32.mrb[0].mxu0
    %v323 = vadd.f32 0.0, %v322
    %v324 = vpop.f32.mrb[0].mxu0
    %v325 = vadd.f32 0.0, %v324
    %326 = vdwg.mxu0
    %327 = vmatprep.subr.mxu0 %v78
    %328 = vmatpush1.msra.mxu0 %v77
    %329 = vmatprep.subr.mxu0 %v85
    %330 = vmatpush1.msra.mxu0 %v84
    %331 = vmatprep.subr.mxu0 %v92
    %332 = vmatpush1.msra.mxu0 %v91
    %333 = vmatprep.subr.mxu0 %v99
    %334 = vmatpush1.msra.mxu0 %v98
    %335 = vmatprep.subr.mxu0 %v106
    %336 = vmatpush1.msra.mxu0 %v105
    %337 = vmatprep.subr.mxu0 %v113
    %338 = vmatpush1.msra.mxu0 %v112
    %339 = vmatprep.subr.mxu0 %v120
    %340 = vmatpush1.msra.mxu0 %v119
    %341 = vmatprep.subr.mxu0 %v127
    %342 = vmatpush1.msra.mxu0 %v126
    %343 = vmatprep.subr.mxu0 %v134
    %344 = vmatpush1.msra.mxu0 %v133
    %345 = vmatprep.subr.mxu0 %v141
    %346 = vmatpush1.msra.mxu0 %v140
    %347 = vmatprep.subr.mxu0 %v148
    %348 = vmatpush1.msra.mxu0 %v147
    %349 = vmatprep.subr.mxu0 %v155
    %350 = vmatpush1.msra.mxu0 %v154
    %351 = vmatprep.subr.mxu0 %v162
    %352 = vmatpush1.msra.mxu0 %v161
    %353 = vmatprep.subr.mxu0 %v169
    %354 = vmatpush1.msra.mxu0 %v168
    %355 = vmatprep.subr.mxu0 %v176
    %356 = vmatpush1.msra.mxu0 %v175
    %357 = vmatprep.subr.mxu0 %v183
    %358 = vmatpush1.msra.mxu0 %v182
    %359 = vmatprep.subr.mxu0 0.0
    %360 = vmatpush1.msra.mxu0 0.0
    %361 = vmatprep.subr.mxu0 0.0
    %362 = vmatpush1.msra.mxu0 0.0
    %363 = vmatprep.subr.mxu0 0.0
    %364 = vmatpush1.msra.mxu0 0.0
    %365 = vmatprep.subr.mxu0 0.0
    %366 = vmatpush1.msra.mxu0 0.0
    %367 = vmatprep.subr.mxu0 0.0
    %368 = vmatpush1.msra.mxu0 0.0
    %369 = vmatprep.subr.mxu0 0.0
    %370 = vmatpush1.msra.mxu0 0.0
    %371 = vmatprep.subr.mxu0 0.0
    %372 = vmatpush1.msra.mxu0 0.0
    %373 = vmatprep.subr.mxu0 0.0
    %374 = vmatpush1.msra.mxu0 0.0
    %375 = vmatprep.subr.mxu0 0.0
    %376 = vmatpush1.msra.mxu0 0.0
    %377 = vmatprep.subr.mxu0 0.0
    %378 = vmatpush1.msra.mxu0 0.0
    %379 = vmatprep.subr.mxu0 0.0
    %380 = vmatpush1.msra.mxu0 0.0
    %381 = vmatprep.subr.mxu0 0.0
    %382 = vmatpush1.msra.mxu0 0.0
    %383 = vmatprep.subr.mxu0 0.0
    %384 = vmatpush1.msra.mxu0 0.0
    %385 = vmatprep.subr.mxu0 0.0
    %386 = vmatpush1.msra.mxu0 0.0
    %387 = vmatprep.subr.mxu0 0.0
    %388 = vmatpush1.msra.mxu0 0.0
    %389 = vmatprep.subr.mxu0 0.0
    %390 = vmatpush1.msra.mxu0 0.0
    %391 = vmatprep.mubr.f32.mxu0 0.0
    %392 = vmatmul.mubr.f32.gmra.mrb[0].mxu0 0.0
    %v393 = vpop.f32.mrb[0].mxu0
    %v394 = vadd.f32 0.0, %v393
    %v395 = vpop.f32.mrb[0].mxu0
    %v396 = vadd.f32 0.0, %v395
    %397 = vdwg.mxu0
    %398 = vmatprep.subr.mxu0 0.0
    %399 = vmatpush1.msra.mxu0 %v79
    %400 = vmatprep.subr.mxu0 0.0
    %401 = vmatpush1.msra.mxu0 %v86
    %402 = vmatprep.subr.mxu0 0.0
    %403 = vmatpush1.msra.mxu0 %v93
    %404 = vmatprep.subr.mxu0 0.0
    %405 = vmatpush1.msra.mxu0 %v100
    %406 = vmatprep.subr.mxu0 0.0
    %407 = vmatpush1.msra.mxu0 %v107
    %408 = vmatprep.subr.mxu0 0.0
    %409 = vmatpush1.msra.mxu0 %v114
    %410 = vmatprep.subr.mxu0 0.0
    %411 = vmatpush1.msra.mxu0 %v121
    %412 = vmatprep.subr.mxu0 0.0
    %413 = vmatpush1.msra.mxu0 %v128
    %414 = vmatprep.subr.mxu0 0.0
    %415 = vmatpush1.msra.mxu0 %v135
    %416 = vmatprep.subr.mxu0 0.0
    %417 = vmatpush1.msra.mxu0 %v142
    %418 = vmatprep.subr.mxu0 0.0
    %419 = vmatpush1.msra.mxu0 %v149
    %420 = vmatprep.subr.mxu0 0.0
    %421 = vmatpush1.msra.mxu0 %v156
    %422 = vmatprep.subr.mxu0 0.0
    %423 = vmatpush1.msra.mxu0 %v163
    %424 = vmatprep.subr.mxu0 0.0
    %425 = vmatpush1.msra.mxu0 %v170
    %426 = vmatprep.subr.mxu0 0.0
    %427 = vmatpush1.msra.mxu0 %v177
    %428 = vmatprep.subr.mxu0 0.0
    %429 = vmatpush1.msra.mxu0 %v184
    %430 = vmatprep.subr.mxu0 0.0
    %431 = vmatpush1.msra.mxu0 0.0
    %432 = vmatprep.subr.mxu0 0.0
    %433 = vmatpush1.msra.mxu0 0.0
    %434 = vmatprep.subr.mxu0 0.0
    %435 = vmatpush1.msra.mxu0 0.0
    %436 = vmatprep.subr.mxu0 0.0
    %437 = vmatpush1.msra.mxu0 0.0
    %438 = vmatprep.subr.mxu0 0.0
    %439 = vmatpush1.msra.mxu0 0.0
    %440 = vmatprep.subr.mxu0 0.0
    %441 = vmatpush1.msra.mxu0 0.0
    %442 = vmatprep.subr.mxu0 0.0
    %443 = vmatpush1.msra.mxu0 0.0
    %444 = vmatprep.subr.mxu0 0.0
    %445 = vmatpush1.msra.mxu0 0.0
    %446 = vmatprep.subr.mxu0 0.0
    %447 = vmatpush1.msra.mxu0 0.0
    %448 = vmatprep.subr.mxu0 0.0
    %449 = vmatpush1.msra.mxu0 0.0
    %450 = vmatprep.subr.mxu0 0.0
    %451 = vmatpush1.msra.mxu0 0.0
    %452 = vmatprep.subr.mxu0 0.0
    %453 = vmatpush1.msra.mxu0 0.0
    %454 = vmatprep.subr.mxu0 0.0
    %455 = vmatpush1.msra.mxu0 0.0
    %456 = vmatprep.subr.mxu0 0.0
    %457 = vmatpush1.msra.mxu0 0.0
    %458 = vmatprep.subr.mxu0 0.0
    %459 = vmatpush1.msra.mxu0 0.0
    %460 = vmatprep.subr.mxu0 0.0
    %461 = vmatpush1.msra.mxu0 0.0
    %462 = vmatprep.mubr.f32.mxu0 0.0
    %463 = vmatmul.mubr.f32.gmra.mrb[0].mxu0 0.0
    %v464 = vpop.f32.mrb[0].mxu0
    %v465 = vadd.f32 0.0, %v464
    %v466 = vpop.f32.mrb[0].mxu0
    %467 = vdwg.mxu0
    %v468 = vld [vmem:[%s1] sm:$0xf]
    %v470 = vlaneseq
    %v471 = vshrl.u32 %v470, 7
    %v472 = vsub.s32 0, %v471
    %v473 = vrot.slane %v468, %v472
    %v474 = vlaneseq
    %v475 = vshrl.u32 %v474, 7
    %v476 = vsub.s32 1, %v475
    %v477 = vrot.slane %v468, %v476
    %v478 = vlaneseq
    %v479 = vshrl.u32 %v478, 7
    %v480 = vsub.s32 2, %v479
    %v481 = vrot.slane %v468, %v480
    %v482 = vlaneseq
    %v483 = vshrl.u32 %v482, 7
    %v484 = vsub.s32 3, %v483
    %v485 = vrot.slane %v468, %v484
    %v490 = vmul.f32 %v72, %v473
    %v491 = vmul.f32 %v72, %v477
    %v492 = vmul.f32 %v72, %v481
    %v493 = vmul.f32 %v72, %v485
    %v494 = vld [vmem:[%s2] sm:$0xf]
    %v496 = vlaneseq
    %v497 = vshrl.u32 %v496, 7
    %v498 = vsub.s32 0, %v497
    %v499 = vrot.slane %v494, %v498
    %v500 = vlaneseq
    %v501 = vshrl.u32 %v500, 7
    %v502 = vsub.s32 1, %v501
    %v503 = vrot.slane %v494, %v502
    %v504 = vlaneseq
    %v505 = vshrl.u32 %v504, 7
    %v506 = vsub.s32 2, %v505
    %v507 = vrot.slane %v494, %v506
    %v508 = vlaneseq
    %v509 = vshrl.u32 %v508, 7
    %v510 = vsub.s32 3, %v509
    %v511 = vrot.slane %v494, %v510
    %v516 = vadd.f32 %v490, %v499
    %v517 = vadd.f32 %v491, %v503
    %v518 = vadd.f32 %v492, %v507
    %v519 = vadd.f32 %v493, %v511
    %v520 = vadd.f32 %v516, %v252
    %v521 = vadd.f32 %v517, %v254
    %v522 = vadd.f32 %v518, %v323
    %v523 = vadd.f32 %v519, %v325
    %v524 = vxor.u32 %v520, 2147483648
    %v525 = vmul.f32 %v524, 1.442695
    %v526 = vpow.pop %v525
    %v527 = vadd.f32 %v526, 1.0
    %v528 = vrcp.pop %v527
    %v529 = vmul.f32 1.0, %v528
    %v530 = vxor.u32 %v521, 2147483648
    %v531 = vmul.f32 %v530, 1.442695
    %v532 = vpow.pop %v531
    %v533 = vadd.f32 %v532, 1.0
    %v534 = vrcp.pop %v533
    %v535 = vmul.f32 1.0, %v534
    %v536 = vtanh.pop %v522
    %v537 = vxor.u32 %v523, 2147483648
    %v538 = vmul.f32 %v537, 1.442695
    %v539 = vpow.pop %v538
    %v540 = vadd.f32 %v539, 1.0
    %v541 = vrcp.pop %v540
    %v542 = vmul.f32 1.0, %v541
    %v543 = vmul.f32 %v535, 0.0
    %v544 = vmul.f32 %v529, %v536
    %v545 = vadd.f32 %v543, %v544
    %v546 = vtanh.pop %v545
    %v547 = vmul.f32 %v542, %v546
    %v548 = vld [vmem:[#allocation5] sm:$0xff]
    %v549 = vld [vmem:[#allocation5 + $0x8] sm:$0xff]
    %v550 = vld [vmem:[#allocation5 + $0x10] sm:$0xff]
    %v551 = vld [vmem:[#allocation5 + $0x18] sm:$0xff]
    %v552 = vld [vmem:[#allocation5 + $0x20] sm:$0xff]
    %v553 = vld [vmem:[#allocation5 + $0x28] sm:$0xff]
    %v554 = vld [vmem:[#allocation5 + $0x30] sm:$0xff]
    %v555 = vld [vmem:[#allocation5 + $0x38] sm:$0xff]
    %v556 = vld [vmem:[#allocation5 + $0x40] sm:$0xff]
    %v557 = vld [vmem:[#allocation5 + $0x48] sm:$0xff]
    %v558 = vld [vmem:[#allocation5 + $0x50] sm:$0xff]
    %v559 = vld [vmem:[#allocation5 + $0x58] sm:$0xff]
    %v560 = vld [vmem:[#allocation5 + $0x60] sm:$0xff]
    %v561 = vld [vmem:[#allocation5 + $0x68] sm:$0xff]
    %v562 = vld [vmem:[#allocation5 + $0x70] sm:$0xff]
    %v563 = vld [vmem:[#allocation5 + $0x78] sm:$0xff]
    %v564 = vld [vmem:[#allocation5 + $0x80] sm:$0xff]
    %v565 = vld [vmem:[#allocation5 + $0x88] sm:$0xff]
    %v566 = vld [vmem:[#allocation5 + $0x90] sm:$0xff]
    %v567 = vld [vmem:[#allocation5 + $0x98] sm:$0xff]
    %v568 = vld [vmem:[#allocation5 + $0xa0] sm:$0xff]
    %v569 = vld [vmem:[#allocation5 + $0xa8] sm:$0xff]
    %v570 = vld [vmem:[#allocation5 + $0xb0] sm:$0xff]
    %v571 = vld [vmem:[#allocation5 + $0xb8] sm:$0xff]
    %v572 = vld [vmem:[#allocation5 + $0xc0] sm:$0xff]
    %v573 = vld [vmem:[#allocation5 + $0xc8] sm:$0xff]
    %v574 = vld [vmem:[#allocation5 + $0xd0] sm:$0xff]
    %v575 = vld [vmem:[#allocation5 + $0xd8] sm:$0xff]
    %v576 = vld [vmem:[#allocation5 + $0xe0] sm:$0xff]
    %v577 = vld [vmem:[#allocation5 + $0xe8] sm:$0xff]
    %v578 = vld [vmem:[#allocation5 + $0xf0] sm:$0xff]
    %v579 = vld [vmem:[#allocation5 + $0xf8] sm:$0xff]
    %v580 = vld [vmem:[#allocation5 + $0x100] sm:$0xff]
    %v581 = vld [vmem:[#allocation5 + $0x108] sm:$0xff]
    %v582 = vld [vmem:[#allocation5 + $0x110] sm:$0xff]
    %v583 = vld [vmem:[#allocation5 + $0x118] sm:$0xff]
    %v584 = vld [vmem:[#allocation5 + $0x120] sm:$0xff]
    %v585 = vld [vmem:[#allocation5 + $0x128] sm:$0xff]
    %v586 = vld [vmem:[#allocation5 + $0x130] sm:$0xff]
    %v587 = vld [vmem:[#allocation5 + $0x138] sm:$0xff]
    %v588 = vld [vmem:[#allocation5 + $0x140] sm:$0xff]
    %v589 = vld [vmem:[#allocation5 + $0x148] sm:$0xff]
    %v590 = vld [vmem:[#allocation5 + $0x150] sm:$0xff]
    %v591 = vld [vmem:[#allocation5 + $0x158] sm:$0xff]
    %v592 = vld [vmem:[#allocation5 + $0x160] sm:$0xff]
    %v593 = vld [vmem:[#allocation5 + $0x168] sm:$0xff]
    %v594 = vld [vmem:[#allocation5 + $0x170] sm:$0xff]
    %v595 = vld [vmem:[#allocation5 + $0x178] sm:$0xff]
    %v596 = vld [vmem:[%s5] sm:$0x7]
    %v598 = vlaneseq
    %v599 = vshrl.u32 %v598, 7
    %v600 = vsub.s32 0, %v599
    %v601 = vrot.slane %v596, %v600
    %v602 = vlaneseq
    %v603 = vshrl.u32 %v602, 7
    %v604 = vsub.s32 1, %v603
    %v605 = vrot.slane %v596, %v604
    %v606 = vlaneseq
    %v607 = vshrl.u32 %v606, 7
    %v608 = vsub.s32 2, %v607
    %v609 = vrot.slane %v596, %v608
    %613 = vmatprep.subr.mxu0 %v549
    %614 = vmatpush1.msra.mxu0 %v548
    %615 = vmatprep.subr.mxu0 %v552
    %616 = vmatpush1.msra.mxu0 %v551
    %617 = vmatprep.subr.mxu0 %v555
    %618 = vmatpush1.msra.mxu0 %v554
    %619 = vmatprep.subr.mxu0 %v558
    %620 = vmatpush1.msra.mxu0 %v557
    %621 = vmatprep.subr.mxu0 %v561
    %622 = vmatpush1.msra.mxu0 %v560
    %623 = vmatprep.subr.mxu0 %v564
    %624 = vmatpush1.msra.mxu0 %v563
    %625 = vmatprep.subr.mxu0 %v567
    %626 = vmatpush1.msra.mxu0 %v566
    %627 = vmatprep.subr.mxu0 %v570
    %628 = vmatpush1.msra.mxu0 %v569
    %629 = vmatprep.subr.mxu0 %v573
    %630 = vmatpush1.msra.mxu0 %v572
    %631 = vmatprep.subr.mxu0 %v576
    %632 = vmatpush1.msra.mxu0 %v575
    %633 = vmatprep.subr.mxu0 %v579
    %634 = vmatpush1.msra.mxu0 %v578
    %635 = vmatprep.subr.mxu0 %v582
    %636 = vmatpush1.msra.mxu0 %v581
    %637 = vmatprep.subr.mxu0 %v585
    %638 = vmatpush1.msra.mxu0 %v584
    %639 = vmatprep.subr.mxu0 %v588
    %640 = vmatpush1.msra.mxu0 %v587
    %641 = vmatprep.subr.mxu0 %v591
    %642 = vmatpush1.msra.mxu0 %v590
    %643 = vmatprep.subr.mxu0 %v594
    %644 = vmatpush1.msra.mxu0 %v593
    %645 = vmatprep.subr.mxu0 0.0
    %646 = vmatpush1.msra.mxu0 0.0
    %647 = vmatprep.subr.mxu0 0.0
    %648 = vmatpush1.msra.mxu0 0.0
    %649 = vmatprep.subr.mxu0 0.0
    %650 = vmatpush1.msra.mxu0 0.0
    %651 = vmatprep.subr.mxu0 0.0
    %652 = vmatpush1.msra.mxu0 0.0
    %653 = vmatprep.subr.mxu0 0.0
    %654 = vmatpush1.msra.mxu0 0.0
    %655 = vmatprep.subr.mxu0 0.0
    %656 = vmatpush1.msra.mxu0 0.0
    %657 = vmatprep.subr.mxu0 0.0
    %658 = vmatpush1.msra.mxu0 0.0
    %659 = vmatprep.subr.mxu0 0.0
    %660 = vmatpush1.msra.mxu0 0.0
    %661 = vmatprep.subr.mxu0 0.0
    %662 = vmatpush1.msra.mxu0 0.0
    %663 = vmatprep.subr.mxu0 0.0
    %664 = vmatpush1.msra.mxu0 0.0
    %665 = vmatprep.subr.mxu0 0.0
    %666 = vmatpush1.msra.mxu0 0.0
    %667 = vmatprep.subr.mxu0 0.0
    %668 = vmatpush1.msra.mxu0 0.0
    %669 = vmatprep.subr.mxu0 0.0
    %670 = vmatpush1.msra.mxu0 0.0
    %671 = vmatprep.subr.mxu0 0.0
    %672 = vmatpush1.msra.mxu0 0.0
    %673 = vmatprep.subr.mxu0 0.0
    %674 = vmatpush1.msra.mxu0 0.0
    %675 = vmatprep.subr.mxu0 0.0
    %676 = vmatpush1.msra.mxu0 0.0
    %677 = vmatprep.mubr.f32.mxu0 0.0
    %678 = vmatmul.mubr.f32.gmra.mrb[0].mxu0 %v547
    %v679 = vpop.f32.mrb[0].mxu0
    %v680 = vadd.f32 %v601, %v679
    %v681 = vpop.f32.mrb[0].mxu0
    %v682 = vadd.f32 %v605, %v681
    %683 = vdwg.mxu0
    %684 = vmatprep.subr.mxu0 0.0
    %685 = vmatpush1.msra.mxu0 %v550
    %686 = vmatprep.subr.mxu0 0.0
    %687 = vmatpush1.msra.mxu0 %v553
    %688 = vmatprep.subr.mxu0 0.0
    %689 = vmatpush1.msra.mxu0 %v556
    %690 = vmatprep.subr.mxu0 0.0
    %691 = vmatpush1.msra.mxu0 %v559
    %692 = vmatprep.subr.mxu0 0.0
    %693 = vmatpush1.msra.mxu0 %v562
    %694 = vmatprep.subr.mxu0 0.0
    %695 = vmatpush1.msra.mxu0 %v565
    %696 = vmatprep.subr.mxu0 0.0
    %697 = vmatpush1.msra.mxu0 %v568
    %698 = vmatprep.subr.mxu0 0.0
    %699 = vmatpush1.msra.mxu0 %v571
    %700 = vmatprep.subr.mxu0 0.0
    %701 = vmatpush1.msra.mxu0 %v574
    %702 = vmatprep.subr.mxu0 0.0
    %703 = vmatpush1.msra.mxu0 %v577
    %704 = vmatprep.subr.mxu0 0.0
    %705 = vmatpush1.msra.mxu0 %v580
    %706 = vmatprep.subr.mxu0 0.0
    %707 = vmatpush1.msra.mxu0 %v583
    %708 = vmatprep.subr.mxu0 0.0
    %709 = vmatpush1.msra.mxu0 %v586
    %710 = vmatprep.subr.mxu0 0.0
    %711 = vmatpush1.msra.mxu0 %v589
    %712 = vmatprep.subr.mxu0 0.0
    %713 = vmatpush1.msra.mxu0 %v592
    %714 = vmatprep.subr.mxu0 0.0
    %715 = vmatpush1.msra.mxu0 %v595
    %716 = vmatprep.subr.mxu0 0.0
    %717 = vmatpush1.msra.mxu0 0.0
    %718 = vmatprep.subr.mxu0 0.0
    %719 = vmatpush1.msra.mxu0 0.0
    %720 = vmatprep.subr.mxu0 0.0
    %721 = vmatpush1.msra.mxu0 0.0
    %722 = vmatprep.subr.mxu0 0.0
    %723 = vmatpush1.msra.mxu0 0.0
    %724 = vmatprep.subr.mxu0 0.0
    %725 = vmatpush1.msra.mxu0 0.0
    %726 = vmatprep.subr.mxu0 0.0
    %727 = vmatpush1.msra.mxu0 0.0
    %728 = vmatprep.subr.mxu0 0.0
    %729 = vmatpush1.msra.mxu0 0.0
    %730 = vmatprep.subr.mxu0 0.0
    %731 = vmatpush1.msra.mxu0 0.0
    %732 = vmatprep.subr.mxu0 0.0
    %733 = vmatpush1.msra.mxu0 0.0
    %734 = vmatprep.subr.mxu0 0.0
    %735 = vmatpush1.msra.mxu0 0.0
    %736 = vmatprep.subr.mxu0 0.0
    %737 = vmatpush1.msra.mxu0 0.0
    %738 = vmatprep.subr.mxu0 0.0
    %739 = vmatpush1.msra.mxu0 0.0
    %740 = vmatprep.subr.mxu0 0.0
    %741 = vmatpush1.msra.mxu0 0.0
    %742 = vmatprep.subr.mxu0 0.0
    %743 = vmatpush1.msra.mxu0 0.0
    %744 = vmatprep.subr.mxu0 0.0
    %745 = vmatpush1.msra.mxu0 0.0
    %746 = vmatprep.subr.mxu0 0.0
    %747 = vmatpush1.msra.mxu0 0.0
    %748 = vmatprep.mubr.f32.mxu0 0.0
    %749 = vmatmul.mubr.f32.gmra.mrb[0].mxu0 %v547
    %v750 = vpop.f32.mrb[0].mxu0
    %v751 = vadd.f32 %v609, %v750
    %v752 = vpop.f32.mrb[0].mxu0
    %753 = vdwg.mxu0
    %v754 = vadd.f32 %v680, %v394
    %v755 = vxor.u32 %v754, 2147483648
    %v756 = vmul.f32 %v755, 1.442695
    %v757 = vpow.pop %v756
    %v758 = vadd.f32 %v757, 1.0
    %v759 = vrcp.pop %v758
    %v760 = vmul.f32 1.0, %v759
    %v761 = vadd.f32 %v682, %v396
    %v762 = vxor.u32 %v761, 2147483648
    %v763 = vmul.f32 %v762, 1.442695
    %v764 = vpow.pop %v763
    %v765 = vadd.f32 %v764, 1.0
    %v766 = vrcp.pop %v765
    %v767 = vmul.f32 1.0, %v766
    %v768 = vld [vmem:[%s6] sm:$0x1]
    %v770 = vlaneseq
    %v771 = vshrl.u32 %v770, 7
    %v772 = vsub.s32 0, %v771
    %v773 = vrot.slane %v768, %v772
    %v775 = vadd.f32 %v465, %v773
    %v776 = vmul.f32 %v760, %v775
    %v777 = vadd.f32 %v751, %v776
    %v778 = vtanh.pop %v777
    %v779 = vsub.f32 1.0, %v767
    %v780 = vmul.f32 %v779, %v778
    %v781 = vmul.f32 %v767, 0.0
    %v782 = vadd.f32 %v780, %v781
    %v783 = vadd.f32 %v547, %v782
    %vm784 = vcmp.eq.s32.totalorder %v64, 1
    %v785 = vsel %vm784, 1, 0
    %vm786 = vcmp.eq.s32.totalorder %v785, 1
    %v787 = vsel %vm786, %v62, 0.0
    %v788 = vsel %vm69, %v787, 0.0
    %789 = vadd.xlane.f32.xlu0 %v788
    %v790 = vpop.xlane.xlu0 %789
    %791 = vmatprep.subr.mxu0 %v74
    %792 = vmatpush1.msra.mxu0 %v73
    %793 = vmatprep.subr.mxu0 %v81
    %794 = vmatpush1.msra.mxu0 %v80
    %795 = vmatprep.subr.mxu0 %v88
    %796 = vmatpush1.msra.mxu0 %v87
    %797 = vmatprep.subr.mxu0 %v95
    %798 = vmatpush1.msra.mxu0 %v94
    %799 = vmatprep.subr.mxu0 %v102
    %800 = vmatpush1.msra.mxu0 %v101
    %801 = vmatprep.subr.mxu0 %v109
    %802 = vmatpush1.msra.mxu0 %v108
    %803 = vmatprep.subr.mxu0 %v116
    %804 = vmatpush1.msra.mxu0 %v115
    %805 = vmatprep.subr.mxu0 %v123
    %806 = vmatpush1.msra.mxu0 %v122
    %807 = vmatprep.subr.mxu0 %v130
    %808 = vmatpush1.msra.mxu0 %v129
    %809 = vmatprep.subr.mxu0 %v137
    %810 = vmatpush1.msra.mxu0 %v136
    %811 = vmatprep.subr.mxu0 %v144
    %812 = vmatpush1.msra.mxu0 %v143
    %813 = vmatprep.subr.mxu0 %v151
    %814 = vmatpush1.msra.mxu0 %v150
    %815 = vmatprep.subr.mxu0 %v158
    %816 = vmatpush1.msra.mxu0 %v157
    %817 = vmatprep.subr.mxu0 %v165
    %818 = vmatpush1.msra.mxu0 %v164
    %819 = vmatprep.subr.mxu0 %v172
    %820 = vmatpush1.msra.mxu0 %v171
    %821 = vmatprep.subr.mxu0 %v179
    %822 = vmatpush1.msra.mxu0 %v178
    %823 = vmatprep.subr.mxu0 0.0
    %824 = vmatpush1.msra.mxu0 0.0
    %825 = vmatprep.subr.mxu0 0.0
    %826 = vmatpush1.msra.mxu0 0.0
    %827 = vmatprep.subr.mxu0 0.0
    %828 = vmatpush1.msra.mxu0 0.0
    %829 = vmatprep.subr.mxu0 0.0
    %830 = vmatpush1.msra.mxu0 0.0
    %831 = vmatprep.subr.mxu0 0.0
    %832 = vmatpush1.msra.mxu0 0.0
    %833 = vmatprep.subr.mxu0 0.0
    %834 = vmatpush1.msra.mxu0 0.0
    %835 = vmatprep.subr.mxu0 0.0
    %836 = vmatpush1.msra.mxu0 0.0
    %837 = vmatprep.subr.mxu0 0.0
    %838 = vmatpush1.msra.mxu0 0.0
    %839 = vmatprep.subr.mxu0 0.0
    %840 = vmatpush1.msra.mxu0 0.0
    %841 = vmatprep.subr.mxu0 0.0
    %842 = vmatpush1.msra.mxu0 0.0
    %843 = vmatprep.subr.mxu0 0.0
    %844 = vmatpush1.msra.mxu0 0.0
    %845 = vmatprep.subr.mxu0 0.0
    %846 = vmatpush1.msra.mxu0 0.0
    %847 = vmatprep.subr.mxu0 0.0
    %848 = vmatpush1.msra.mxu0 0.0
    %849 = vmatprep.subr.mxu0 0.0
    %850 = vmatpush1.msra.mxu0 0.0
    %851 = vmatprep.subr.mxu0 0.0
    %852 = vmatpush1.msra.mxu0 0.0
    %853 = vmatprep.subr.mxu0 0.0
    %854 = vmatpush1.msra.mxu0 0.0
    %855 = vmatprep.mubr.f32.mxu0 0.0
    %856 = vmatmul.mubr.f32.gmra.mrb[0].mxu0 %v783
    %v857 = vpop.f32.mrb[0].mxu0
    %v858 = vadd.f32 0.0, %v857
    %v859 = vpop.f32.mrb[0].mxu0
    %v860 = vadd.f32 0.0, %v859
    %861 = vdwg.mxu0
    %862 = vmatprep.subr.mxu0 %v76
    %863 = vmatpush1.msra.mxu0 %v75
    %864 = vmatprep.subr.mxu0 %v83
    %865 = vmatpush1.msra.mxu0 %v82
    %866 = vmatprep.subr.mxu0 %v90
    %867 = vmatpush1.msra.mxu0 %v89
    %868 = vmatprep.subr.mxu0 %v97
    %869 = vmatpush1.msra.mxu0 %v96
    %870 = vmatprep.subr.mxu0 %v104
    %871 = vmatpush1.msra.mxu0 %v103
    %872 = vmatprep.subr.mxu0 %v111
    %873 = vmatpush1.msra.mxu0 %v110
    %874 = vmatprep.subr.mxu0 %v118
    %875 = vmatpush1.msra.mxu0 %v117
    %876 = vmatprep.subr.mxu0 %v125
    %877 = vmatpush1.msra.mxu0 %v124
    %878 = vmatprep.subr.mxu0 %v132
    %879 = vmatpush1.msra.mxu0 %v131
    %880 = vmatprep.subr.mxu0 %v139
    %881 = vmatpush1.msra.mxu0 %v138
    %882 = vmatprep.subr.mxu0 %v146
    %883 = vmatpush1.msra.mxu0 %v145
    %884 = vmatprep.subr.mxu0 %v153
    %885 = vmatpush1.msra.mxu0 %v152
    %886 = vmatprep.subr.mxu0 %v160
    %887 = vmatpush1.msra.mxu0 %v159
    %888 = vmatprep.subr.mxu0 %v167
    %889 = vmatpush1.msra.mxu0 %v166
    %890 = vmatprep.subr.mxu0 %v174
    %891 = vmatpush1.msra.mxu0 %v173
    %892 = vmatprep.subr.mxu0 %v181
    %893 = vmatpush1.msra.mxu0 %v180
    %894 = vmatprep.subr.mxu0 0.0
    %895 = vmatpush1.msra.mxu0 0.0
    %896 = vmatprep.subr.mxu0 0.0
    %897 = vmatpush1.msra.mxu0 0.0
    %898 = vmatprep.subr.mxu0 0.0
    %899 = vmatpush1.msra.mxu0 0.0
    %900 = vmatprep.subr.mxu0 0.0
    %901 = vmatpush1.msra.mxu0 0.0
    %902 = vmatprep.subr.mxu0 0.0
    %903 = vmatpush1.msra.mxu0 0.0
    %904 = vmatprep.subr.mxu0 0.0
    %905 = vmatpush1.msra.mxu0 0.0
    %906 = vmatprep.subr.mxu0 0.0
    %907 = vmatpush1.msra.mxu0 0.0
    %908 = vmatprep.subr.mxu0 0.0
    %909 = vmatpush1.msra.mxu0 0.0
    %910 = vmatprep.subr.mxu0 0.0
    %911 = vmatpush1.msra.mxu0 0.0
    %912 = vmatprep.subr.mxu0 0.0
    %913 = vmatpush1.msra.mxu0 0.0
    %914 = vmatprep.subr.mxu0 0.0
    %915 = vmatpush1.msra.mxu0 0.0
    %916 = vmatprep.subr.mxu0 0.0
    %917 = vmatpush1.msra.mxu0 0.0
    %918 = vmatprep.subr.mxu0 0.0
    %919 = vmatpush1.msra.mxu0 0.0
    %920 = vmatprep.subr.mxu0 0.0
    %921 = vmatpush1.msra.mxu0 0.0
    %922 = vmatprep.subr.mxu0 0.0
    %923 = vmatpush1.msra.mxu0 0.0
    %924 = vmatprep.subr.mxu0 0.0
    %925 = vmatpush1.msra.mxu0 0.0
    %926 = vmatprep.mubr.f32.mxu0 0.0
    %927 = vmatmul.mubr.f32.gmra.mrb[0].mxu0 %v783
    %v928 = vpop.f32.mrb[0].mxu0
    %v929 = vadd.f32 0.0, %v928
    %v930 = vpop.f32.mrb[0].mxu0
    %v931 = vadd.f32 0.0, %v930
    %932 = vdwg.mxu0
    %933 = vmatprep.subr.mxu0 %v78
    %934 = vmatpush1.msra.mxu0 %v77
    %935 = vmatprep.subr.mxu0 %v85
    %936 = vmatpush1.msra.mxu0 %v84
    %937 = vmatprep.subr.mxu0 %v92
    %938 = vmatpush1.msra.mxu0 %v91
    %939 = vmatprep.subr.mxu0 %v99
    %940 = vmatpush1.msra.mxu0 %v98
    %941 = vmatprep.subr.mxu0 %v106
    %942 = vmatpush1.msra.mxu0 %v105
    %943 = vmatprep.subr.mxu0 %v113
    %944 = vmatpush1.msra.mxu0 %v112
    %945 = vmatprep.subr.mxu0 %v120
    %946 = vmatpush1.msra.mxu0 %v119
    %947 = vmatprep.subr.mxu0 %v127
    %948 = vmatpush1.msra.mxu0 %v126
    %949 = vmatprep.subr.mxu0 %v134
    %950 = vmatpush1.msra.mxu0 %v133
    %951 = vmatprep.subr.mxu0 %v141
    %952 = vmatpush1.msra.mxu0 %v140
    %953 = vmatprep.subr.mxu0 %v148
    %954 = vmatpush1.msra.mxu0 %v147
    %955 = vmatprep.subr.mxu0 %v155
    %956 = vmatpush1.msra.mxu0 %v154
    %957 = vmatprep.subr.mxu0 %v162
    %958 = vmatpush1.msra.mxu0 %v161
    %959 = vmatprep.subr.mxu0 %v169
    %960 = vmatpush1.msra.mxu0 %v168
    %961 = vmatprep.subr.mxu0 %v176
    %962 = vmatpush1.msra.mxu0 %v175
    %963 = vmatprep.subr.mxu0 %v183
    %964 = vmatpush1.msra.mxu0 %v182
    %965 = vmatprep.subr.mxu0 0.0
    %966 = vmatpush1.msra.mxu0 0.0
    %967 = vmatprep.subr.mxu0 0.0
    %968 = vmatpush1.msra.mxu0 0.0
    %969 = vmatprep.subr.mxu0 0.0
    %970 = vmatpush1.msra.mxu0 0.0
    %971 = vmatprep.subr.mxu0 0.0
    %972 = vmatpush1.msra.mxu0 0.0
    %973 = vmatprep.subr.mxu0 0.0
    %974 = vmatpush1.msra.mxu0 0.0
    %975 = vmatprep.subr.mxu0 0.0
    %976 = vmatpush1.msra.mxu0 0.0
    %977 = vmatprep.subr.mxu0 0.0
    %978 = vmatpush1.msra.mxu0 0.0
    %979 = vmatprep.subr.mxu0 0.0
    %980 = vmatpush1.msra.mxu0 0.0
    %981 = vmatprep.subr.mxu0 0.0
    %982 = vmatpush1.msra.mxu0 0.0
    %983 = vmatprep.subr.mxu0 0.0
    %984 = vmatpush1.msra.mxu0 0.0
    %985 = vmatprep.subr.mxu0 0.0
    %986 = vmatpush1.msra.mxu0 0.0
    %987 = vmatprep.subr.mxu0 0.0
    %988 = vmatpush1.msra.mxu0 0.0
    %989 = vmatprep.subr.mxu0 0.0
    %990 = vmatpush1.msra.mxu0 0.0
    %991 = vmatprep.subr.mxu0 0.0
    %992 = vmatpush1.msra.mxu0 0.0
    %993 = vmatprep.subr.mxu0 0.0
    %994 = vmatpush1.msra.mxu0 0.0
    %995 = vmatprep.subr.mxu0 0.0
    %996 = vmatpush1.msra.mxu0 0.0
    %997 = vmatprep.mubr.f32.mxu0 0.0
    %998 = vmatmul.mubr.f32.gmra.mrb[0].mxu0 %v783
    %v999 = vpop.f32.mrb[0].mxu0
    %v1000 = vadd.f32 0.0, %v999
    %v1001 = vpop.f32.mrb[0].mxu0
    %v1002 = vadd.f32 0.0, %v1001
    %1003 = vdwg.mxu0
    %1004 = vmatprep.subr.mxu0 0.0
    %1005 = vmatpush1.msra.mxu0 %v79
    %1006 = vmatprep.subr.mxu0 0.0
    %1007 = vmatpush1.msra.mxu0 %v86
    %1008 = vmatprep.subr.mxu0 0.0
    %1009 = vmatpush1.msra.mxu0 %v93
    %1010 = vmatprep.subr.mxu0 0.0
    %1011 = vmatpush1.msra.mxu0 %v100
    %1012 = vmatprep.subr.mxu0 0.0
    %1013 = vmatpush1.msra.mxu0 %v107
    %1014 = vmatprep.subr.mxu0 0.0
    %1015 = vmatpush1.msra.mxu0 %v114
    %1016 = vmatprep.subr.mxu0 0.0
    %1017 = vmatpush1.msra.mxu0 %v121
    %1018 = vmatprep.subr.mxu0 0.0
    %1019 = vmatpush1.msra.mxu0 %v128
    %1020 = vmatprep.subr.mxu0 0.0
    %1021 = vmatpush1.msra.mxu0 %v135
    %1022 = vmatprep.subr.mxu0 0.0
    %1023 = vmatpush1.msra.mxu0 %v142
    %1024 = vmatprep.subr.mxu0 0.0
    %1025 = vmatpush1.msra.mxu0 %v149
    %1026 = vmatprep.subr.mxu0 0.0
    %1027 = vmatpush1.msra.mxu0 %v156
    %1028 = vmatprep.subr.mxu0 0.0
    %1029 = vmatpush1.msra.mxu0 %v163
    %1030 = vmatprep.subr.mxu0 0.0
    %1031 = vmatpush1.msra.mxu0 %v170
    %1032 = vmatprep.subr.mxu0 0.0
    %1033 = vmatpush1.msra.mxu0 %v177
    %1034 = vmatprep.subr.mxu0 0.0
    %1035 = vmatpush1.msra.mxu0 %v184
    %1036 = vmatprep.subr.mxu0 0.0
    %1037 = vmatpush1.msra.mxu0 0.0
    %1038 = vmatprep.subr.mxu0 0.0
    %1039 = vmatpush1.msra.mxu0 0.0
    %1040 = vmatprep.subr.mxu0 0.0
    %1041 = vmatpush1.msra.mxu0 0.0
    %1042 = vmatprep.subr.mxu0 0.0
    %1043 = vmatpush1.msra.mxu0 0.0
    %1044 = vmatprep.subr.mxu0 0.0
    %1045 = vmatpush1.msra.mxu0 0.0
    %1046 = vmatprep.subr.mxu0 0.0
    %1047 = vmatpush1.msra.mxu0 0.0
    %1048 = vmatprep.subr.mxu0 0.0
    %1049 = vmatpush1.msra.mxu0 0.0
    %1050 = vmatprep.subr.mxu0 0.0
    %1051 = vmatpush1.msra.mxu0 0.0
    %1052 = vmatprep.subr.mxu0 0.0
    %1053 = vmatpush1.msra.mxu0 0.0
    %1054 = vmatprep.subr.mxu0 0.0
    %1055 = vmatpush1.msra.mxu0 0.0
    %1056 = vmatprep.subr.mxu0 0.0
    %1057 = vmatpush1.msra.mxu0 0.0
    %1058 = vmatprep.subr.mxu0 0.0
    %1059 = vmatpush1.msra.mxu0 0.0
    %1060 = vmatprep.subr.mxu0 0.0
    %1061 = vmatpush1.msra.mxu0 0.0
    %1062 = vmatprep.subr.mxu0 0.0
    %1063 = vmatpush1.msra.mxu0 0.0
    %1064 = vmatprep.subr.mxu0 0.0
    %1065 = vmatpush1.msra.mxu0 0.0
    %1066 = vmatprep.subr.mxu0 0.0
    %1067 = vmatpush1.msra.mxu0 0.0
    %1068 = vmatprep.mubr.f32.mxu0 0.0
    %1069 = vmatmul.mubr.f32.gmra.mrb[0].mxu0 %v783
    %v1070 = vpop.f32.mrb[0].mxu0
    %v1071 = vadd.f32 0.0, %v1070
    %v1072 = vpop.f32.mrb[0].mxu0
    %1073 = vdwg.mxu0
    %v1074 = vmul.f32 %v790, %v473
    %v1075 = vmul.f32 %v790, %v477
    %v1076 = vmul.f32 %v790, %v481
    %v1077 = vmul.f32 %v790, %v485
    %v1078 = vadd.f32 %v1074, %v499
    %v1079 = vadd.f32 %v1075, %v503
    %v1080 = vadd.f32 %v1076, %v507
    %v1081 = vadd.f32 %v1077, %v511
    %v1082 = vadd.f32 %v1078, %v858
    %v1083 = vadd.f32 %v1079, %v860
    %v1084 = vadd.f32 %v1080, %v929
    %v1085 = vadd.f32 %v1081, %v931
    %v1086 = vxor.u32 %v1082, 2147483648
    %v1087 = vmul.f32 %v1086, 1.442695
    %v1088 = vpow.pop %v1087
    %v1089 = vadd.f32 %v1088, 1.0
    %v1090 = vrcp.pop %v1089
    %v1091 = vmul.f32 1.0, %v1090
    %v1092 = vxor.u32 %v1083, 2147483648
    %v1093 = vmul.f32 %v1092, 1.442695
    %v1094 = vpow.pop %v1093
    %v1095 = vadd.f32 %v1094, 1.0
    %v1096 = vrcp.pop %v1095
    %v1097 = vmul.f32 1.0, %v1096
    %v1098 = vtanh.pop %v1084
    %v1099 = vxor.u32 %v1085, 2147483648
    %v1100 = vmul.f32 %v1099, 1.442695
    %v1101 = vpow.pop %v1100
    %v1102 = vadd.f32 %v1101, 1.0
    %v1103 = vrcp.pop %v1102
    %v1104 = vmul.f32 1.0, %v1103
    %v1105 = vmul.f32 %v1097, %v545
    %v1106 = vmul.f32 %v1091, %v1098
    %v1107 = vadd.f32 %v1105, %v1106
    %v1108 = vtanh.pop %v1107
    %v1109 = vmul.f32 %v1104, %v1108
    %1110 = vmatprep.subr.mxu0 %v549
    %1111 = vmatpush1.msra.mxu0 %v548
    %1112 = vmatprep.subr.mxu0 %v552
    %1113 = vmatpush1.msra.mxu0 %v551
    %1114 = vmatprep.subr.mxu0 %v555
    %1115 = vmatpush1.msra.mxu0 %v554
    %1116 = vmatprep.subr.mxu0 %v558
    %1117 = vmatpush1.msra.mxu0 %v557
    %1118 = vmatprep.subr.mxu0 %v561
    %1119 = vmatpush1.msra.mxu0 %v560
    %1120 = vmatprep.subr.mxu0 %v564
    %1121 = vmatpush1.msra.mxu0 %v563
    %1122 = vmatprep.subr.mxu0 %v567
    %1123 = vmatpush1.msra.mxu0 %v566
    %1124 = vmatprep.subr.mxu0 %v570
    %1125 = vmatpush1.msra.mxu0 %v569
    %1126 = vmatprep.subr.mxu0 %v573
    %1127 = vmatpush1.msra.mxu0 %v572
    %1128 = vmatprep.subr.mxu0 %v576
    %1129 = vmatpush1.msra.mxu0 %v575
    %1130 = vmatprep.subr.mxu0 %v579
    %1131 = vmatpush1.msra.mxu0 %v578
    %1132 = vmatprep.subr.mxu0 %v582
    %1133 = vmatpush1.msra.mxu0 %v581
    %1134 = vmatprep.subr.mxu0 %v585
    %1135 = vmatpush1.msra.mxu0 %v584
    %1136 = vmatprep.subr.mxu0 %v588
    %1137 = vmatpush1.msra.mxu0 %v587
    %1138 = vmatprep.subr.mxu0 %v591
    %1139 = vmatpush1.msra.mxu0 %v590
    %1140 = vmatprep.subr.mxu0 %v594
    %1141 = vmatpush1.msra.mxu0 %v593
    %1142 = vmatprep.subr.mxu0 0.0
    %1143 = vmatpush1.msra.mxu0 0.0
    %1144 = vmatprep.subr.mxu0 0.0
    %1145 = vmatpush1.msra.mxu0 0.0
    %1146 = vmatprep.subr.mxu0 0.0
    %1147 = vmatpush1.msra.mxu0 0.0
    %1148 = vmatprep.subr.mxu0 0.0
    %1149 = vmatpush1.msra.mxu0 0.0
    %1150 = vmatprep.subr.mxu0 0.0
    %1151 = vmatpush1.msra.mxu0 0.0
    %1152 = vmatprep.subr.mxu0 0.0
    %1153 = vmatpush1.msra.mxu0 0.0
    %1154 = vmatprep.subr.mxu0 0.0
    %1155 = vmatpush1.msra.mxu0 0.0
    %1156 = vmatprep.subr.mxu0 0.0
    %1157 = vmatpush1.msra.mxu0 0.0
    %1158 = vmatprep.subr.mxu0 0.0
    %1159 = vmatpush1.msra.mxu0 0.0
    %1160 = vmatprep.subr.mxu0 0.0
    %1161 = vmatpush1.msra.mxu0 0.0
    %1162 = vmatprep.subr.mxu0 0.0
    %1163 = vmatpush1.msra.mxu0 0.0
    %1164 = vmatprep.subr.mxu0 0.0
    %1165 = vmatpush1.msra.mxu0 0.0
    %1166 = vmatprep.subr.mxu0 0.0
    %1167 = vmatpush1.msra.mxu0 0.0
    %1168 = vmatprep.subr.mxu0 0.0
    %1169 = vmatpush1.msra.mxu0 0.0
    %1170 = vmatprep.subr.mxu0 0.0
    %1171 = vmatpush1.msra.mxu0 0.0
    %1172 = vmatprep.subr.mxu0 0.0
    %1173 = vmatpush1.msra.mxu0 0.0
    %1174 = vmatprep.mubr.f32.mxu0 0.0
    %1175 = vmatmul.mubr.f32.gmra.mrb[0].mxu0 %v1109
    %v1176 = vpop.f32.mrb[0].mxu0
    %v1177 = vadd.f32 %v601, %v1176
    %v1178 = vpop.f32.mrb[0].mxu0
    %v1179 = vadd.f32 %v605, %v1178
    %1180 = vdwg.mxu0
    %1181 = vmatprep.subr.mxu0 0.0
    %1182 = vmatpush1.msra.mxu0 %v550
    %1183 = vmatprep.subr.mxu0 0.0
    %1184 = vmatpush1.msra.mxu0 %v553
    %1185 = vmatprep.subr.mxu0 0.0
    %1186 = vmatpush1.msra.mxu0 %v556
    %1187 = vmatprep.subr.mxu0 0.0
    %1188 = vmatpush1.msra.mxu0 %v559
    %1189 = vmatprep.subr.mxu0 0.0
    %1190 = vmatpush1.msra.mxu0 %v562
    %1191 = vmatprep.subr.mxu0 0.0
    %1192 = vmatpush1.msra.mxu0 %v565
    %1193 = vmatprep.subr.mxu0 0.0
    %1194 = vmatpush1.msra.mxu0 %v568
    %1195 = vmatprep.subr.mxu0 0.0
    %1196 = vmatpush1.msra.mxu0 %v571
    %1197 = vmatprep.subr.mxu0 0.0
    %1198 = vmatpush1.msra.mxu0 %v574
    %1199 = vmatprep.subr.mxu0 0.0
    %1200 = vmatpush1.msra.mxu0 %v577
    %1201 = vmatprep.subr.mxu0 0.0
    %1202 = vmatpush1.msra.mxu0 %v580
    %1203 = vmatprep.subr.mxu0 0.0
    %1204 = vmatpush1.msra.mxu0 %v583
    %1205 = vmatprep.subr.mxu0 0.0
    %1206 = vmatpush1.msra.mxu0 %v586
    %1207 = vmatprep.subr.mxu0 0.0
    %1208 = vmatpush1.msra.mxu0 %v589
    %1209 = vmatprep.subr.mxu0 0.0
    %1210 = vmatpush1.msra.mxu0 %v592
    %1211 = vmatprep.subr.mxu0 0.0
    %1212 = vmatpush1.msra.mxu0 %v595
    %1213 = vmatprep.subr.mxu0 0.0
    %1214 = vmatpush1.msra.mxu0 0.0
    %1215 = vmatprep.subr.mxu0 0.0
    %1216 = vmatpush1.msra.mxu0 0.0
    %1217 = vmatprep.subr.mxu0 0.0
    %1218 = vmatpush1.msra.mxu0 0.0
    %1219 = vmatprep.subr.mxu0 0.0
    %1220 = vmatpush1.msra.mxu0 0.0
    %1221 = vmatprep.subr.mxu0 0.0
    %1222 = vmatpush1.msra.mxu0 0.0
    %1223 = vmatprep.subr.mxu0 0.0
    %1224 = vmatpush1.msra.mxu0 0.0
    %1225 = vmatprep.subr.mxu0 0.0
    %1226 = vmatpush1.msra.mxu0 0.0
    %1227 = vmatprep.subr.mxu0 0.0
    %1228 = vmatpush1.msra.mxu0 0.0
    %1229 = vmatprep.subr.mxu0 0.0
    %1230 = vmatpush1.msra.mxu0 0.0
    %1231 = vmatprep.subr.mxu0 0.0
    %1232 = vmatpush1.msra.mxu0 0.0
    %1233 = vmatprep.subr.mxu0 0.0
    %1234 = vmatpush1.msra.mxu0 0.0
    %1235 = vmatprep.subr.mxu0 0.0
    %1236 = vmatpush1.msra.mxu0 0.0
    %1237 = vmatprep.subr.mxu0 0.0
    %1238 = vmatpush1.msra.mxu0 0.0
    %1239 = vmatprep.subr.mxu0 0.0
    %1240 = vmatpush1.msra.mxu0 0.0
    %1241 = vmatprep.subr.mxu0 0.0
    %1242 = vmatpush1.msra.mxu0 0.0
    %1243 = vmatprep.subr.mxu0 0.0
    %1244 = vmatpush1.msra.mxu0 0.0
    %1245 = vmatprep.mubr.f32.mxu0 0.0
    %1246 = vmatmul.mubr.f32.gmra.mrb[0].mxu0 %v1109
    %v1247 = vpop.f32.mrb[0].mxu0
    %v1248 = vadd.f32 %v609, %v1247
    %v1249 = vpop.f32.mrb[0].mxu0
    %1250 = vdwg.mxu0
    %v1251 = vadd.f32 %v1177, %v1000
    %v1252 = vxor.u32 %v1251, 2147483648
    %v1253 = vmul.f32 %v1252, 1.442695
    %v1254 = vpow.pop %v1253
    %v1255 = vadd.f32 %v1254, 1.0
    %v1256 = vrcp.pop %v1255
    %v1257 = vmul.f32 1.0, %v1256
    %v1258 = vadd.f32 %v1179, %v1002
    %v1259 = vxor.u32 %v1258, 2147483648
    %v1260 = vmul.f32 %v1259, 1.442695
    %v1261 = vpow.pop %v1260
    %v1262 = vadd.f32 %v1261, 1.0
    %v1263 = vrcp.pop %v1262
    %v1264 = vmul.f32 1.0, %v1263
    %v1265 = vadd.f32 %v1071, %v773
    %v1266 = vmul.f32 %v1257, %v1265
    %v1267 = vadd.f32 %v1248, %v1266
    %v1268 = vtanh.pop %v1267
    %v1269 = vsub.f32 1.0, %v1264
    %v1270 = vmul.f32 %v1269, %v1268
    %v1271 = vmul.f32 %v1264, %v782
    %v1272 = vadd.f32 %v1270, %v1271
    %v1273 = vadd.f32 %v1109, %v1272
    %vm1274 = vcmp.eq.s32.totalorder %v64, 2
    %v1275 = vsel %vm1274, 1, 0
    %vm1276 = vcmp.eq.s32.totalorder %v1275, 1
    %v1277 = vsel %vm1276, %v62, 0.0
    %v1278 = vsel %vm69, %v1277, 0.0
    %1279 = vadd.xlane.f32.xlu0 %v1278
    %v1280 = vpop.xlane.xlu0 %1279
    %1281 = vmatprep.subr.mxu0 %v74
    %1282 = vmatpush1.msra.mxu0 %v73
    %1283 = vmatprep.subr.mxu0 %v81
    %1284 = vmatpush1.msra.mxu0 %v80
    %1285 = vmatprep.subr.mxu0 %v88
    %1286 = vmatpush1.msra.mxu0 %v87
    %1287 = vmatprep.subr.mxu0 %v95
    %1288 = vmatpush1.msra.mxu0 %v94
    %1289 = vmatprep.subr.mxu0 %v102
    %1290 = vmatpush1.msra.mxu0 %v101
    %1291 = vmatprep.subr.mxu0 %v109
    %1292 = vmatpush1.msra.mxu0 %v108
    %1293 = vmatprep.subr.mxu0 %v116
    %1294 = vmatpush1.msra.mxu0 %v115
    %1295 = vmatprep.subr.mxu0 %v123
    %1296 = vmatpush1.msra.mxu0 %v122
    %1297 = vmatprep.subr.mxu0 %v130
    %1298 = vmatpush1.msra.mxu0 %v129
    %1299 = vmatprep.subr.mxu0 %v137
    %1300 = vmatpush1.msra.mxu0 %v136
    %1301 = vmatprep.subr.mxu0 %v144
    %1302 = vmatpush1.msra.mxu0 %v143
    %1303 = vmatprep.subr.mxu0 %v151
    %1304 = vmatpush1.msra.mxu0 %v150
    %1305 = vmatprep.subr.mxu0 %v158
    %1306 = vmatpush1.msra.mxu0 %v157
    %1307 = vmatprep.subr.mxu0 %v165
    %1308 = vmatpush1.msra.mxu0 %v164
    %1309 = vmatprep.subr.mxu0 %v172
    %1310 = vmatpush1.msra.mxu0 %v171
    %1311 = vmatprep.subr.mxu0 %v179
    %1312 = vmatpush1.msra.mxu0 %v178
    %1313 = vmatprep.subr.mxu0 0.0
    %1314 = vmatpush1.msra.mxu0 0.0
    %1315 = vmatprep.subr.mxu0 0.0
    %1316 = vmatpush1.msra.mxu0 0.0
    %1317 = vmatprep.subr.mxu0 0.0
    %1318 = vmatpush1.msra.mxu0 0.0
    %1319 = vmatprep.subr.mxu0 0.0
    %1320 = vmatpush1.msra.mxu0 0.0
    %1321 = vmatprep.subr.mxu0 0.0
    %1322 = vmatpush1.msra.mxu0 0.0
    %1323 = vmatprep.subr.mxu0 0.0
    %1324 = vmatpush1.msra.mxu0 0.0
    %1325 = vmatprep.subr.mxu0 0.0
    %1326 = vmatpush1.msra.mxu0 0.0
    %1327 = vmatprep.subr.mxu0 0.0
    %1328 = vmatpush1.msra.mxu0 0.0
    %1329 = vmatprep.subr.mxu0 0.0
    %1330 = vmatpush1.msra.mxu0 0.0
    %1331 = vmatprep.subr.mxu0 0.0
    %1332 = vmatpush1.msra.mxu0 0.0
    %1333 = vmatprep.subr.mxu0 0.0
    %1334 = vmatpush1.msra.mxu0 0.0
    %1335 = vmatprep.subr.mxu0 0.0
    %1336 = vmatpush1.msra.mxu0 0.0
    %1337 = vmatprep.subr.mxu0 0.0
    %1338 = vmatpush1.msra.mxu0 0.0
    %1339 = vmatprep.subr.mxu0 0.0
    %1340 = vmatpush1.msra.mxu0 0.0
    %1341 = vmatprep.subr.mxu0 0.0
    %1342 = vmatpush1.msra.mxu0 0.0
    %1343 = vmatprep.subr.mxu0 0.0
    %1344 = vmatpush1.msra.mxu0 0.0
    %1345 = vmatprep.mubr.f32.mxu0 0.0
    %1346 = vmatmul.mubr.f32.gmra.mrb[0].mxu0 %v1273
    %v1347 = vpop.f32.mrb[0].mxu0
    %v1348 = vadd.f32 0.0, %v1347
    %v1349 = vpop.f32.mrb[0].mxu0
    %v1350 = vadd.f32 0.0, %v1349
    %1351 = vdwg.mxu0
    %1352 = vmatprep.subr.mxu0 %v76
    %1353 = vmatpush1.msra.mxu0 %v75
    %1354 = vmatprep.subr.mxu0 %v83
    %1355 = vmatpush1.msra.mxu0 %v82
    %1356 = vmatprep.subr.mxu0 %v90
    %1357 = vmatpush1.msra.mxu0 %v89
    %1358 = vmatprep.subr.mxu0 %v97
    %1359 = vmatpush1.msra.mxu0 %v96
    %1360 = vmatprep.subr.mxu0 %v104
    %1361 = vmatpush1.msra.mxu0 %v103
    %1362 = vmatprep.subr.mxu0 %v111
    %1363 = vmatpush1.msra.mxu0 %v110
    %1364 = vmatprep.subr.mxu0 %v118
    %1365 = vmatpush1.msra.mxu0 %v117
    %1366 = vmatprep.subr.mxu0 %v125
    %1367 = vmatpush1.msra.mxu0 %v124
    %1368 = vmatprep.subr.mxu0 %v132
    %1369 = vmatpush1.msra.mxu0 %v131
    %1370 = vmatprep.subr.mxu0 %v139
    %1371 = vmatpush1.msra.mxu0 %v138
    %1372 = vmatprep.subr.mxu0 %v146
    %1373 = vmatpush1.msra.mxu0 %v145
    %1374 = vmatprep.subr.mxu0 %v153
    %1375 = vmatpush1.msra.mxu0 %v152
    %1376 = vmatprep.subr.mxu0 %v160
    %1377 = vmatpush1.msra.mxu0 %v159
    %1378 = vmatprep.subr.mxu0 %v167
    %1379 = vmatpush1.msra.mxu0 %v166
    %1380 = vmatprep.subr.mxu0 %v174
    %1381 = vmatpush1.msra.mxu0 %v173
    %1382 = vmatprep.subr.mxu0 %v181
    %1383 = vmatpush1.msra.mxu0 %v180
    %1384 = vmatprep.subr.mxu0 0.0
    %1385 = vmatpush1.msra.mxu0 0.0
    %1386 = vmatprep.subr.mxu0 0.0
    %1387 = vmatpush1.msra.mxu0 0.0
    %1388 = vmatprep.subr.mxu0 0.0
    %1389 = vmatpush1.msra.mxu0 0.0
    %1390 = vmatprep.subr.mxu0 0.0
    %1391 = vmatpush1.msra.mxu0 0.0
    %1392 = vmatprep.subr.mxu0 0.0
    %1393 = vmatpush1.msra.mxu0 0.0
    %1394 = vmatprep.subr.mxu0 0.0
    %1395 = vmatpush1.msra.mxu0 0.0
    %1396 = vmatprep.subr.mxu0 0.0
    %1397 = vmatpush1.msra.mxu0 0.0
    %1398 = vmatprep.subr.mxu0 0.0
    %1399 = vmatpush1.msra.mxu0 0.0
    %1400 = vmatprep.subr.mxu0 0.0
    %1401 = vmatpush1.msra.mxu0 0.0
    %1402 = vmatprep.subr.mxu0 0.0
    %1403 = vmatpush1.msra.mxu0 0.0
    %1404 = vmatprep.subr.mxu0 0.0
    %1405 = vmatpush1.msra.mxu0 0.0
    %1406 = vmatprep.subr.mxu0 0.0
    %1407 = vmatpush1.msra.mxu0 0.0
    %1408 = vmatprep.subr.mxu0 0.0
    %1409 = vmatpush1.msra.mxu0 0.0
    %1410 = vmatprep.subr.mxu0 0.0
    %1411 = vmatpush1.msra.mxu0 0.0
    %1412 = vmatprep.subr.mxu0 0.0
    %1413 = vmatpush1.msra.mxu0 0.0
    %1414 = vmatprep.subr.mxu0 0.0
    %1415 = vmatpush1.msra.mxu0 0.0
    %1416 = vmatprep.mubr.f32.mxu0 0.0
    %1417 = vmatmul.mubr.f32.gmra.mrb[0].mxu0 %v1273
    %v1418 = vpop.f32.mrb[0].mxu0
    %v1419 = vadd.f32 0.0, %v1418
    %v1420 = vpop.f32.mrb[0].mxu0
    %v1421 = vadd.f32 0.0, %v1420
    %1422 = vdwg.mxu0
    %1423 = vmatprep.subr.mxu0 %v78
    %1424 = vmatpush1.msra.mxu0 %v77
    %1425 = vmatprep.subr.mxu0 %v85
    %1426 = vmatpush1.msra.mxu0 %v84
    %1427 = vmatprep.subr.mxu0 %v92
    %1428 = vmatpush1.msra.mxu0 %v91
    %1429 = vmatprep.subr.mxu0 %v99
    %1430 = vmatpush1.msra.mxu0 %v98
    %1431 = vmatprep.subr.mxu0 %v106
    %1432 = vmatpush1.msra.mxu0 %v105
    %1433 = vmatprep.subr.mxu0 %v113
    %1434 = vmatpush1.msra.mxu0 %v112
    %1435 = vmatprep.subr.mxu0 %v120
    %1436 = vmatpush1.msra.mxu0 %v119
    %1437 = vmatprep.subr.mxu0 %v127
    %1438 = vmatpush1.msra.mxu0 %v126
    %1439 = vmatprep.subr.mxu0 %v134
    %1440 = vmatpush1.msra.mxu0 %v133
    %1441 = vmatprep.subr.mxu0 %v141
    %1442 = vmatpush1.msra.mxu0 %v140
    %1443 = vmatprep.subr.mxu0 %v148
    %1444 = vmatpush1.msra.mxu0 %v147
    %1445 = vmatprep.subr.mxu0 %v155
    %1446 = vmatpush1.msra.mxu0 %v154
    %1447 = vmatprep.subr.mxu0 %v162
    %1448 = vmatpush1.msra.mxu0 %v161
    %1449 = vmatprep.subr.mxu0 %v169
    %1450 = vmatpush1.msra.mxu0 %v168
    %1451 = vmatprep.subr.mxu0 %v176
    %1452 = vmatpush1.msra.mxu0 %v175
    %1453 = vmatprep.subr.mxu0 %v183
    %1454 = vmatpush1.msra.mxu0 %v182
    %1455 = vmatprep.subr.mxu0 0.0
    %1456 = vmatpush1.msra.mxu0 0.0
    %1457 = vmatprep.subr.mxu0 0.0
    %1458 = vmatpush1.msra.mxu0 0.0
    %1459 = vmatprep.subr.mxu0 0.0
    %1460 = vmatpush1.msra.mxu0 0.0
    %1461 = vmatprep.subr.mxu0 0.0
    %1462 = vmatpush1.msra.mxu0 0.0
    %1463 = vmatprep.subr.mxu0 0.0
    %1464 = vmatpush1.msra.mxu0 0.0
    %1465 = vmatprep.subr.mxu0 0.0
    %1466 = vmatpush1.msra.mxu0 0.0
    %1467 = vmatprep.subr.mxu0 0.0
    %1468 = vmatpush1.msra.mxu0 0.0
    %1469 = vmatprep.subr.mxu0 0.0
    %1470 = vmatpush1.msra.mxu0 0.0
    %1471 = vmatprep.subr.mxu0 0.0
    %1472 = vmatpush1.msra.mxu0 0.0
    %1473 = vmatprep.subr.mxu0 0.0
    %1474 = vmatpush1.msra.mxu0 0.0
    %1475 = vmatprep.subr.mxu0 0.0
    %1476 = vmatpush1.msra.mxu0 0.0
    %1477 = vmatprep.subr.mxu0 0.0
    %1478 = vmatpush1.msra.mxu0 0.0
    %1479 = vmatprep.subr.mxu0 0.0
    %1480 = vmatpush1.msra.mxu0 0.0
    %1481 = vmatprep.subr.mxu0 0.0
    %1482 = vmatpush1.msra.mxu0 0.0
    %1483 = vmatprep.subr.mxu0 0.0
    %1484 = vmatpush1.msra.mxu0 0.0
    %1485 = vmatprep.subr.mxu0 0.0
    %1486 = vmatpush1.msra.mxu0 0.0
    %1487 = vmatprep.mubr.f32.mxu0 0.0
    %1488 = vmatmul.mubr.f32.gmra.mrb[0].mxu0 %v1273
    %v1489 = vpop.f32.mrb[0].mxu0
    %v1490 = vadd.f32 0.0, %v1489
    %v1491 = vpop.f32.mrb[0].mxu0
    %v1492 = vadd.f32 0.0, %v1491
    %1493 = vdwg.mxu0
    %1494 = vmatprep.subr.mxu0 0.0
    %1495 = vmatpush1.msra.mxu0 %v79
    %1496 = vmatprep.subr.mxu0 0.0
    %1497 = vmatpush1.msra.mxu0 %v86
    %1498 = vmatprep.subr.mxu0 0.0
    %1499 = vmatpush1.msra.mxu0 %v93
    %1500 = vmatprep.subr.mxu0 0.0
    %1501 = vmatpush1.msra.mxu0 %v100
    %1502 = vmatprep.subr.mxu0 0.0
    %1503 = vmatpush1.msra.mxu0 %v107
    %1504 = vmatprep.subr.mxu0 0.0
    %1505 = vmatpush1.msra.mxu0 %v114
    %1506 = vmatprep.subr.mxu0 0.0
    %1507 = vmatpush1.msra.mxu0 %v121
    %1508 = vmatprep.subr.mxu0 0.0
    %1509 = vmatpush1.msra.mxu0 %v128
    %1510 = vmatprep.subr.mxu0 0.0
    %1511 = vmatpush1.msra.mxu0 %v135
    %1512 = vmatprep.subr.mxu0 0.0
    %1513 = vmatpush1.msra.mxu0 %v142
    %1514 = vmatprep.subr.mxu0 0.0
    %1515 = vmatpush1.msra.mxu0 %v149
    %1516 = vmatprep.subr.mxu0 0.0
    %1517 = vmatpush1.msra.mxu0 %v156
    %1518 = vmatprep.subr.mxu0 0.0
    %1519 = vmatpush1.msra.mxu0 %v163
    %1520 = vmatprep.subr.mxu0 0.0
    %1521 = vmatpush1.msra.mxu0 %v170
    %1522 = vmatprep.subr.mxu0 0.0
    %1523 = vmatpush1.msra.mxu0 %v177
    %1524 = vmatprep.subr.mxu0 0.0
    %1525 = vmatpush1.msra.mxu0 %v184
    %1526 = vmatprep.subr.mxu0 0.0
    %1527 = vmatpush1.msra.mxu0 0.0
    %1528 = vmatprep.subr.mxu0 0.0
    %1529 = vmatpush1.msra.mxu0 0.0
    %1530 = vmatprep.subr.mxu0 0.0
    %1531 = vmatpush1.msra.mxu0 0.0
    %1532 = vmatprep.subr.mxu0 0.0
    %1533 = vmatpush1.msra.mxu0 0.0
    %1534 = vmatprep.subr.mxu0 0.0
    %1535 = vmatpush1.msra.mxu0 0.0
    %1536 = vmatprep.subr.mxu0 0.0
    %1537 = vmatpush1.msra.mxu0 0.0
    %1538 = vmatprep.subr.mxu0 0.0
    %1539 = vmatpush1.msra.mxu0 0.0
    %1540 = vmatprep.subr.mxu0 0.0
    %1541 = vmatpush1.msra.mxu0 0.0
    %1542 = vmatprep.subr.mxu0 0.0
    %1543 = vmatpush1.msra.mxu0 0.0
    %1544 = vmatprep.subr.mxu0 0.0
    %1545 = vmatpush1.msra.mxu0 0.0
    %1546 = vmatprep.subr.mxu0 0.0
    %1547 = vmatpush1.msra.mxu0 0.0
    %1548 = vmatprep.subr.mxu0 0.0
    %1549 = vmatpush1.msra.mxu0 0.0
    %1550 = vmatprep.subr.mxu0 0.0
    %1551 = vmatpush1.msra.mxu0 0.0
    %1552 = vmatprep.subr.mxu0 0.0
    %1553 = vmatpush1.msra.mxu0 0.0
    %1554 = vmatprep.subr.mxu0 0.0
    %1555 = vmatpush1.msra.mxu0 0.0
    %1556 = vmatprep.subr.mxu0 0.0
    %1557 = vmatpush1.msra.mxu0 0.0
    %1558 = vmatprep.mubr.f32.mxu0 0.0
    %1559 = vmatmul.mubr.f32.gmra.mrb[0].mxu0 %v1273
    %v1560 = vpop.f32.mrb[0].mxu0
    %v1561 = vadd.f32 0.0, %v1560
    %v1562 = vpop.f32.mrb[0].mxu0
    %1563 = vdwg.mxu0
    %v1564 = vmul.f32 %v1280, %v473
    %v1565 = vmul.f32 %v1280, %v477
    %v1566 = vmul.f32 %v1280, %v481
    %v1567 = vmul.f32 %v1280, %v485
    %v1568 = vadd.f32 %v1564, %v499
    %v1569 = vadd.f32 %v1565, %v503
    %v1570 = vadd.f32 %v1566, %v507
    %v1571 = vadd.f32 %v1567, %v511
    %v1572 = vadd.f32 %v1568, %v1348
    %v1573 = vadd.f32 %v1569, %v1350
    %v1574 = vadd.f32 %v1570, %v1419
    %v1575 = vadd.f32 %v1571, %v1421
    %v1576 = vxor.u32 %v1572, 2147483648
    %v1577 = vmul.f32 %v1576, 1.442695
    %v1578 = vpow.pop %v1577
    %v1579 = vadd.f32 %v1578, 1.0
    %v1580 = vrcp.pop %v1579
    %v1581 = vmul.f32 1.0, %v1580
    %v1582 = vxor.u32 %v1573, 2147483648
    %v1583 = vmul.f32 %v1582, 1.442695
    %v1584 = vpow.pop %v1583
    %v1585 = vadd.f32 %v1584, 1.0
    %v1586 = vrcp.pop %v1585
    %v1587 = vmul.f32 1.0, %v1586
    %v1588 = vtanh.pop %v1574
    %v1589 = vxor.u32 %v1575, 2147483648
    %v1590 = vmul.f32 %v1589, 1.442695
    %v1591 = vpow.pop %v1590
    %v1592 = vadd.f32 %v1591, 1.0
    %v1593 = vrcp.pop %v1592
    %v1594 = vmul.f32 1.0, %v1593
    %v1595 = vmul.f32 %v1587, %v1107
    %v1596 = vmul.f32 %v1581, %v1588
    %v1597 = vadd.f32 %v1595, %v1596
    %v1598 = vtanh.pop %v1597
    %v1599 = vmul.f32 %v1594, %v1598
    %1600 = vmatprep.subr.mxu0 %v549
    %1601 = vmatpush1.msra.mxu0 %v548
    %1602 = vmatprep.subr.mxu0 %v552
    %1603 = vmatpush1.msra.mxu0 %v551
    %1604 = vmatprep.subr.mxu0 %v555
    %1605 = vmatpush1.msra.mxu0 %v554
    %1606 = vmatprep.subr.mxu0 %v558
    %1607 = vmatpush1.msra.mxu0 %v557
    %1608 = vmatprep.subr.mxu0 %v561
    %1609 = vmatpush1.msra.mxu0 %v560
    %1610 = vmatprep.subr.mxu0 %v564
    %1611 = vmatpush1.msra.mxu0 %v563
    %1612 = vmatprep.subr.mxu0 %v567
    %1613 = vmatpush1.msra.mxu0 %v566
    %1614 = vmatprep.subr.mxu0 %v570
    %1615 = vmatpush1.msra.mxu0 %v569
    %1616 = vmatprep.subr.mxu0 %v573
    %1617 = vmatpush1.msra.mxu0 %v572
    %1618 = vmatprep.subr.mxu0 %v576
    %1619 = vmatpush1.msra.mxu0 %v575
    %1620 = vmatprep.subr.mxu0 %v579
    %1621 = vmatpush1.msra.mxu0 %v578
    %1622 = vmatprep.subr.mxu0 %v582
    %1623 = vmatpush1.msra.mxu0 %v581
    %1624 = vmatprep.subr.mxu0 %v585
    %1625 = vmatpush1.msra.mxu0 %v584
    %1626 = vmatprep.subr.mxu0 %v588
    %1627 = vmatpush1.msra.mxu0 %v587
    %1628 = vmatprep.subr.mxu0 %v591
    %1629 = vmatpush1.msra.mxu0 %v590
    %1630 = vmatprep.subr.mxu0 %v594
    %1631 = vmatpush1.msra.mxu0 %v593
    %1632 = vmatprep.subr.mxu0 0.0
    %1633 = vmatpush1.msra.mxu0 0.0
    %1634 = vmatprep.subr.mxu0 0.0
    %1635 = vmatpush1.msra.mxu0 0.0
    %1636 = vmatprep.subr.mxu0 0.0
    %1637 = vmatpush1.msra.mxu0 0.0
    %1638 = vmatprep.subr.mxu0 0.0
    %1639 = vmatpush1.msra.mxu0 0.0
    %1640 = vmatprep.subr.mxu0 0.0
    %1641 = vmatpush1.msra.mxu0 0.0
    %1642 = vmatprep.subr.mxu0 0.0
    %1643 = vmatpush1.msra.mxu0 0.0
    %1644 = vmatprep.subr.mxu0 0.0
    %1645 = vmatpush1.msra.mxu0 0.0
    %1646 = vmatprep.subr.mxu0 0.0
    %1647 = vmatpush1.msra.mxu0 0.0
    %1648 = vmatprep.subr.mxu0 0.0
    %1649 = vmatpush1.msra.mxu0 0.0
    %1650 = vmatprep.subr.mxu0 0.0
    %1651 = vmatpush1.msra.mxu0 0.0
    %1652 = vmatprep.subr.mxu0 0.0
    %1653 = vmatpush1.msra.mxu0 0.0
    %1654 = vmatprep.subr.mxu0 0.0
    %1655 = vmatpush1.msra.mxu0 0.0
    %1656 = vmatprep.subr.mxu0 0.0
    %1657 = vmatpush1.msra.mxu0 0.0
    %1658 = vmatprep.subr.mxu0 0.0
    %1659 = vmatpush1.msra.mxu0 0.0
    %1660 = vmatprep.subr.mxu0 0.0
    %1661 = vmatpush1.msra.mxu0 0.0
    %1662 = vmatprep.subr.mxu0 0.0
    %1663 = vmatpush1.msra.mxu0 0.0
    %1664 = vmatprep.mubr.f32.mxu0 0.0
    %1665 = vmatmul.mubr.f32.gmra.mrb[0].mxu0 %v1599
    %v1666 = vpop.f32.mrb[0].mxu0
    %v1667 = vadd.f32 %v601, %v1666
    %v1668 = vpop.f32.mrb[0].mxu0
    %v1669 = vadd.f32 %v605, %v1668
    %1670 = vdwg.mxu0
    %1671 = vmatprep.subr.mxu0 0.0
    %1672 = vmatpush1.msra.mxu0 %v550
    %1673 = vmatprep.subr.mxu0 0.0
    %1674 = vmatpush1.msra.mxu0 %v553
    %1675 = vmatprep.subr.mxu0 0.0
    %1676 = vmatpush1.msra.mxu0 %v556
    %1677 = vmatprep.subr.mxu0 0.0
    %1678 = vmatpush1.msra.mxu0 %v559
    %1679 = vmatprep.subr.mxu0 0.0
    %1680 = vmatpush1.msra.mxu0 %v562
    %1681 = vmatprep.subr.mxu0 0.0
    %1682 = vmatpush1.msra.mxu0 %v565
    %1683 = vmatprep.subr.mxu0 0.0
    %1684 = vmatpush1.msra.mxu0 %v568
    %1685 = vmatprep.subr.mxu0 0.0
    %1686 = vmatpush1.msra.mxu0 %v571
    %1687 = vmatprep.subr.mxu0 0.0
    %1688 = vmatpush1.msra.mxu0 %v574
    %1689 = vmatprep.subr.mxu0 0.0
    %1690 = vmatpush1.msra.mxu0 %v577
    %1691 = vmatprep.subr.mxu0 0.0
    %1692 = vmatpush1.msra.mxu0 %v580
    %1693 = vmatprep.subr.mxu0 0.0
    %1694 = vmatpush1.msra.mxu0 %v583
    %1695 = vmatprep.subr.mxu0 0.0
    %1696 = vmatpush1.msra.mxu0 %v586
    %1697 = vmatprep.subr.mxu0 0.0
    %1698 = vmatpush1.msra.mxu0 %v589
    %1699 = vmatprep.subr.mxu0 0.0
    %1700 = vmatpush1.msra.mxu0 %v592
    %1701 = vmatprep.subr.mxu0 0.0
    %1702 = vmatpush1.msra.mxu0 %v595
    %1703 = vmatprep.subr.mxu0 0.0
    %1704 = vmatpush1.msra.mxu0 0.0
    %1705 = vmatprep.subr.mxu0 0.0
    %1706 = vmatpush1.msra.mxu0 0.0
    %1707 = vmatprep.subr.mxu0 0.0
    %1708 = vmatpush1.msra.mxu0 0.0
    %1709 = vmatprep.subr.mxu0 0.0
    %1710 = vmatpush1.msra.mxu0 0.0
    %1711 = vmatprep.subr.mxu0 0.0
    %1712 = vmatpush1.msra.mxu0 0.0
    %1713 = vmatprep.subr.mxu0 0.0
    %1714 = vmatpush1.msra.mxu0 0.0
    %1715 = vmatprep.subr.mxu0 0.0
    %1716 = vmatpush1.msra.mxu0 0.0
    %1717 = vmatprep.subr.mxu0 0.0
    %1718 = vmatpush1.msra.mxu0 0.0
    %1719 = vmatprep.subr.mxu0 0.0
    %1720 = vmatpush1.msra.mxu0 0.0
    %1721 = vmatprep.subr.mxu0 0.0
    %1722 = vmatpush1.msra.mxu0 0.0
    %1723 = vmatprep.subr.mxu0 0.0
    %1724 = vmatpush1.msra.mxu0 0.0
    %1725 = vmatprep.subr.mxu0 0.0
    %1726 = vmatpush1.msra.mxu0 0.0
    %1727 = vmatprep.subr.mxu0 0.0
    %1728 = vmatpush1.msra.mxu0 0.0
    %1729 = vmatprep.subr.mxu0 0.0
    %1730 = vmatpush1.msra.mxu0 0.0
    %1731 = vmatprep.subr.mxu0 0.0
    %1732 = vmatpush1.msra.mxu0 0.0
    %1733 = vmatprep.subr.mxu0 0.0
    %1734 = vmatpush1.msra.mxu0 0.0
    %1735 = vmatprep.mubr.f32.mxu0 0.0
    %1736 = vmatmul.mubr.f32.gmra.mrb[0].mxu0 %v1599
    %v1737 = vpop.f32.mrb[0].mxu0
    %v1738 = vadd.f32 %v609, %v1737
    %v1739 = vpop.f32.mrb[0].mxu0
    %1740 = vdwg.mxu0
    %v1741 = vadd.f32 %v1667, %v1490
    %v1742 = vxor.u32 %v1741, 2147483648
    %v1743 = vmul.f32 %v1742, 1.442695
    %v1744 = vpow.pop %v1743
    %v1745 = vadd.f32 %v1744, 1.0
    %v1746 = vrcp.pop %v1745
    %v1747 = vmul.f32 1.0, %v1746
    %v1748 = vadd.f32 %v1669, %v1492
    %v1749 = vxor.u32 %v1748, 2147483648
    %v1750 = vmul.f32 %v1749, 1.442695
    %v1751 = vpow.pop %v1750
    %v1752 = vadd.f32 %v1751, 1.0
    %v1753 = vrcp.pop %v1752
    %v1754 = vmul.f32 1.0, %v1753
    %v1755 = vadd.f32 %v1561, %v773
    %v1756 = vmul.f32 %v1747, %v1755
    %v1757 = vadd.f32 %v1738, %v1756
    %v1758 = vtanh.pop %v1757
    %v1759 = vsub.f32 1.0, %v1754
    %v1760 = vmul.f32 %v1759, %v1758
    %v1761 = vmul.f32 %v1754, %v1272
    %v1762 = vadd.f32 %v1760, %v1761
    %v1763 = vadd.f32 %v1599, %v1762
    %vm1764 = vcmp.eq.s32.totalorder %v64, 3
    %v1765 = vsel %vm1764, 1, 0
    %vm1766 = vcmp.eq.s32.totalorder %v1765, 1
    %v1767 = vsel %vm1766, %v62, 0.0
    %v1768 = vsel %vm69, %v1767, 0.0
    %1769 = vadd.xlane.f32.xlu0 %v1768
    %v1770 = vpop.xlane.xlu0 %1769
    %1771 = vmatprep.subr.mxu0 %v74
    %1772 = vmatpush1.msra.mxu0 %v73
    %1773 = vmatprep.subr.mxu0 %v81
    %1774 = vmatpush1.msra.mxu0 %v80
    %1775 = vmatprep.subr.mxu0 %v88
    %1776 = vmatpush1.msra.mxu0 %v87
    %1777 = vmatprep.subr.mxu0 %v95
    %1778 = vmatpush1.msra.mxu0 %v94
    %1779 = vmatprep.subr.mxu0 %v102
    %1780 = vmatpush1.msra.mxu0 %v101
    %1781 = vmatprep.subr.mxu0 %v109
    %1782 = vmatpush1.msra.mxu0 %v108
    %1783 = vmatprep.subr.mxu0 %v116
    %1784 = vmatpush1.msra.mxu0 %v115
    %1785 = vmatprep.subr.mxu0 %v123
    %1786 = vmatpush1.msra.mxu0 %v122
    %1787 = vmatprep.subr.mxu0 %v130
    %1788 = vmatpush1.msra.mxu0 %v129
    %1789 = vmatprep.subr.mxu0 %v137
    %1790 = vmatpush1.msra.mxu0 %v136
    %1791 = vmatprep.subr.mxu0 %v144
    %1792 = vmatpush1.msra.mxu0 %v143
    %1793 = vmatprep.subr.mxu0 %v151
    %1794 = vmatpush1.msra.mxu0 %v150
    %1795 = vmatprep.subr.mxu0 %v158
    %1796 = vmatpush1.msra.mxu0 %v157
    %1797 = vmatprep.subr.mxu0 %v165
    %1798 = vmatpush1.msra.mxu0 %v164
    %1799 = vmatprep.subr.mxu0 %v172
    %1800 = vmatpush1.msra.mxu0 %v171
    %1801 = vmatprep.subr.mxu0 %v179
    %1802 = vmatpush1.msra.mxu0 %v178
    %1803 = vmatprep.subr.mxu0 0.0
    %1804 = vmatpush1.msra.mxu0 0.0
    %1805 = vmatprep.subr.mxu0 0.0
    %1806 = vmatpush1.msra.mxu0 0.0
    %1807 = vmatprep.subr.mxu0 0.0
    %1808 = vmatpush1.msra.mxu0 0.0
    %1809 = vmatprep.subr.mxu0 0.0
    %1810 = vmatpush1.msra.mxu0 0.0
    %1811 = vmatprep.subr.mxu0 0.0
    %1812 = vmatpush1.msra.mxu0 0.0
    %1813 = vmatprep.subr.mxu0 0.0
    %1814 = vmatpush1.msra.mxu0 0.0
    %1815 = vmatprep.subr.mxu0 0.0
    %1816 = vmatpush1.msra.mxu0 0.0
    %1817 = vmatprep.subr.mxu0 0.0
    %1818 = vmatpush1.msra.mxu0 0.0
    %1819 = vmatprep.subr.mxu0 0.0
    %1820 = vmatpush1.msra.mxu0 0.0
    %1821 = vmatprep.subr.mxu0 0.0
    %1822 = vmatpush1.msra.mxu0 0.0
    %1823 = vmatprep.subr.mxu0 0.0
    %1824 = vmatpush1.msra.mxu0 0.0
    %1825 = vmatprep.subr.mxu0 0.0
    %1826 = vmatpush1.msra.mxu0 0.0
    %1827 = vmatprep.subr.mxu0 0.0
    %1828 = vmatpush1.msra.mxu0 0.0
    %1829 = vmatprep.subr.mxu0 0.0
    %1830 = vmatpush1.msra.mxu0 0.0
    %1831 = vmatprep.subr.mxu0 0.0
    %1832 = vmatpush1.msra.mxu0 0.0
    %1833 = vmatprep.subr.mxu0 0.0
    %1834 = vmatpush1.msra.mxu0 0.0
    %1835 = vmatprep.mubr.f32.mxu0 0.0
    %1836 = vmatmul.mubr.f32.gmra.mrb[0].mxu0 %v1763
    %v1837 = vpop.f32.mrb[0].mxu0
    %v1838 = vadd.f32 0.0, %v1837
    %v1839 = vpop.f32.mrb[0].mxu0
    %v1840 = vadd.f32 0.0, %v1839
    %1841 = vdwg.mxu0
    %1842 = vmatprep.subr.mxu0 %v76
    %1843 = vmatpush1.msra.mxu0 %v75
    %1844 = vmatprep.subr.mxu0 %v83
    %1845 = vmatpush1.msra.mxu0 %v82
    %1846 = vmatprep.subr.mxu0 %v90
    %1847 = vmatpush1.msra.mxu0 %v89
    %1848 = vmatprep.subr.mxu0 %v97
    %1849 = vmatpush1.msra.mxu0 %v96
    %1850 = vmatprep.subr.mxu0 %v104
    %1851 = vmatpush1.msra.mxu0 %v103
    %1852 = vmatprep.subr.mxu0 %v111
    %1853 = vmatpush1.msra.mxu0 %v110
    %1854 = vmatprep.subr.mxu0 %v118
    %1855 = vmatpush1.msra.mxu0 %v117
    %1856 = vmatprep.subr.mxu0 %v125
    %1857 = vmatpush1.msra.mxu0 %v124
    %1858 = vmatprep.subr.mxu0 %v132
    %1859 = vmatpush1.msra.mxu0 %v131
    %1860 = vmatprep.subr.mxu0 %v139
    %1861 = vmatpush1.msra.mxu0 %v138
    %1862 = vmatprep.subr.mxu0 %v146
    %1863 = vmatpush1.msra.mxu0 %v145
    %1864 = vmatprep.subr.mxu0 %v153
    %1865 = vmatpush1.msra.mxu0 %v152
    %1866 = vmatprep.subr.mxu0 %v160
    %1867 = vmatpush1.msra.mxu0 %v159
    %1868 = vmatprep.subr.mxu0 %v167
    %1869 = vmatpush1.msra.mxu0 %v166
    %1870 = vmatprep.subr.mxu0 %v174
    %1871 = vmatpush1.msra.mxu0 %v173
    %1872 = vmatprep.subr.mxu0 %v181
    %1873 = vmatpush1.msra.mxu0 %v180
    %1874 = vmatprep.subr.mxu0 0.0
    %1875 = vmatpush1.msra.mxu0 0.0
    %1876 = vmatprep.subr.mxu0 0.0
    %1877 = vmatpush1.msra.mxu0 0.0
    %1878 = vmatprep.subr.mxu0 0.0
    %1879 = vmatpush1.msra.mxu0 0.0
    %1880 = vmatprep.subr.mxu0 0.0
    %1881 = vmatpush1.msra.mxu0 0.0
    %1882 = vmatprep.subr.mxu0 0.0
    %1883 = vmatpush1.msra.mxu0 0.0
    %1884 = vmatprep.subr.mxu0 0.0
    %1885 = vmatpush1.msra.mxu0 0.0
    %1886 = vmatprep.subr.mxu0 0.0
    %1887 = vmatpush1.msra.mxu0 0.0
    %1888 = vmatprep.subr.mxu0 0.0
    %1889 = vmatpush1.msra.mxu0 0.0
    %1890 = vmatprep.subr.mxu0 0.0
    %1891 = vmatpush1.msra.mxu0 0.0
    %1892 = vmatprep.subr.mxu0 0.0
    %1893 = vmatpush1.msra.mxu0 0.0
    %1894 = vmatprep.subr.mxu0 0.0
    %1895 = vmatpush1.msra.mxu0 0.0
    %1896 = vmatprep.subr.mxu0 0.0
    %1897 = vmatpush1.msra.mxu0 0.0
    %1898 = vmatprep.subr.mxu0 0.0
    %1899 = vmatpush1.msra.mxu0 0.0
    %1900 = vmatprep.subr.mxu0 0.0
    %1901 = vmatpush1.msra.mxu0 0.0
    %1902 = vmatprep.subr.mxu0 0.0
    %1903 = vmatpush1.msra.mxu0 0.0
    %1904 = vmatprep.subr.mxu0 0.0
    %1905 = vmatpush1.msra.mxu0 0.0
    %1906 = vmatprep.mubr.f32.mxu0 0.0
    %1907 = vmatmul.mubr.f32.gmra.mrb[0].mxu0 %v1763
    %v1908 = vpop.f32.mrb[0].mxu0
    %v1909 = vadd.f32 0.0, %v1908
    %v1910 = vpop.f32.mrb[0].mxu0
    %v1911 = vadd.f32 0.0, %v1910
    %1912 = vdwg.mxu0
    %1913 = vmatprep.subr.mxu0 %v78
    %1914 = vmatpush1.msra.mxu0 %v77
    %1915 = vmatprep.subr.mxu0 %v85
    %1916 = vmatpush1.msra.mxu0 %v84
    %1917 = vmatprep.subr.mxu0 %v92
    %1918 = vmatpush1.msra.mxu0 %v91
    %1919 = vmatprep.subr.mxu0 %v99
    %1920 = vmatpush1.msra.mxu0 %v98
    %1921 = vmatprep.subr.mxu0 %v106
    %1922 = vmatpush1.msra.mxu0 %v105
    %1923 = vmatprep.subr.mxu0 %v113
    %1924 = vmatpush1.msra.mxu0 %v112
    %1925 = vmatprep.subr.mxu0 %v120
    %1926 = vmatpush1.msra.mxu0 %v119
    %1927 = vmatprep.subr.mxu0 %v127
    %1928 = vmatpush1.msra.mxu0 %v126
    %1929 = vmatprep.subr.mxu0 %v134
    %1930 = vmatpush1.msra.mxu0 %v133
    %1931 = vmatprep.subr.mxu0 %v141
    %1932 = vmatpush1.msra.mxu0 %v140
    %1933 = vmatprep.subr.mxu0 %v148
    %1934 = vmatpush1.msra.mxu0 %v147
    %1935 = vmatprep.subr.mxu0 %v155
    %1936 = vmatpush1.msra.mxu0 %v154
    %1937 = vmatprep.subr.mxu0 %v162
    %1938 = vmatpush1.msra.mxu0 %v161
    %1939 = vmatprep.subr.mxu0 %v169
    %1940 = vmatpush1.msra.mxu0 %v168
    %1941 = vmatprep.subr.mxu0 %v176
    %1942 = vmatpush1.msra.mxu0 %v175
    %1943 = vmatprep.subr.mxu0 %v183
    %1944 = vmatpush1.msra.mxu0 %v182
    %1945 = vmatprep.subr.mxu0 0.0
    %1946 = vmatpush1.msra.mxu0 0.0
    %1947 = vmatprep.subr.mxu0 0.0
    %1948 = vmatpush1.msra.mxu0 0.0
    %1949 = vmatprep.subr.mxu0 0.0
    %1950 = vmatpush1.msra.mxu0 0.0
    %1951 = vmatprep.subr.mxu0 0.0
    %1952 = vmatpush1.msra.mxu0 0.0
    %1953 = vmatprep.subr.mxu0 0.0
    %1954 = vmatpush1.msra.mxu0 0.0
    %1955 = vmatprep.subr.mxu0 0.0
    %1956 = vmatpush1.msra.mxu0 0.0
    %1957 = vmatprep.subr.mxu0 0.0
    %1958 = vmatpush1.msra.mxu0 0.0
    %1959 = vmatprep.subr.mxu0 0.0
    %1960 = vmatpush1.msra.mxu0 0.0
    %1961 = vmatprep.subr.mxu0 0.0
    %1962 = vmatpush1.msra.mxu0 0.0
    %1963 = vmatprep.subr.mxu0 0.0
    %1964 = vmatpush1.msra.mxu0 0.0
    %1965 = vmatprep.subr.mxu0 0.0
    %1966 = vmatpush1.msra.mxu0 0.0
    %1967 = vmatprep.subr.mxu0 0.0
    %1968 = vmatpush1.msra.mxu0 0.0
    %1969 = vmatprep.subr.mxu0 0.0
    %1970 = vmatpush1.msra.mxu0 0.0
    %1971 = vmatprep.subr.mxu0 0.0
    %1972 = vmatpush1.msra.mxu0 0.0
    %1973 = vmatprep.subr.mxu0 0.0
    %1974 = vmatpush1.msra.mxu0 0.0
    %1975 = vmatprep.subr.mxu0 0.0
    %1976 = vmatpush1.msra.mxu0 0.0
    %1977 = vmatprep.mubr.f32.mxu0 0.0
    %1978 = vmatmul.mubr.f32.gmra.mrb[0].mxu0 %v1763
    %v1979 = vpop.f32.mrb[0].mxu0
    %v1980 = vadd.f32 0.0, %v1979
    %v1981 = vpop.f32.mrb[0].mxu0
    %v1982 = vadd.f32 0.0, %v1981
    %1983 = vdwg.mxu0
    %1984 = vmatprep.subr.mxu0 0.0
    %1985 = vmatpush1.msra.mxu0 %v79
    %1986 = vmatprep.subr.mxu0 0.0
    %1987 = vmatpush1.msra.mxu0 %v86
    %1988 = vmatprep.subr.mxu0 0.0
    %1989 = vmatpush1.msra.mxu0 %v93
    %1990 = vmatprep.subr.mxu0 0.0
    %1991 = vmatpush1.msra.mxu0 %v100
    %1992 = vmatprep.subr.mxu0 0.0
    %1993 = vmatpush1.msra.mxu0 %v107
    %1994 = vmatprep.subr.mxu0 0.0
    %1995 = vmatpush1.msra.mxu0 %v114
    %1996 = vmatprep.subr.mxu0 0.0
    %1997 = vmatpush1.msra.mxu0 %v121
    %1998 = vmatprep.subr.mxu0 0.0
    %1999 = vmatpush1.msra.mxu0 %v128
    %2000 = vmatprep.subr.mxu0 0.0
    %2001 = vmatpush1.msra.mxu0 %v135
    %2002 = vmatprep.subr.mxu0 0.0
    %2003 = vmatpush1.msra.mxu0 %v142
    %2004 = vmatprep.subr.mxu0 0.0
    %2005 = vmatpush1.msra.mxu0 %v149
    %2006 = vmatprep.subr.mxu0 0.0
    %2007 = vmatpush1.msra.mxu0 %v156
    %2008 = vmatprep.subr.mxu0 0.0
    %2009 = vmatpush1.msra.mxu0 %v163
    %2010 = vmatprep.subr.mxu0 0.0
    %2011 = vmatpush1.msra.mxu0 %v170
    %2012 = vmatprep.subr.mxu0 0.0
    %2013 = vmatpush1.msra.mxu0 %v177
    %2014 = vmatprep.subr.mxu0 0.0
    %2015 = vmatpush1.msra.mxu0 %v184
    %2016 = vmatprep.subr.mxu0 0.0
    %2017 = vmatpush1.msra.mxu0 0.0
    %2018 = vmatprep.subr.mxu0 0.0
    %2019 = vmatpush1.msra.mxu0 0.0
    %2020 = vmatprep.subr.mxu0 0.0
    %2021 = vmatpush1.msra.mxu0 0.0
    %2022 = vmatprep.subr.mxu0 0.0
    %2023 = vmatpush1.msra.mxu0 0.0
    %2024 = vmatprep.subr.mxu0 0.0
    %2025 = vmatpush1.msra.mxu0 0.0
    %2026 = vmatprep.subr.mxu0 0.0
    %2027 = vmatpush1.msra.mxu0 0.0
    %2028 = vmatprep.subr.mxu0 0.0
    %2029 = vmatpush1.msra.mxu0 0.0
    %2030 = vmatprep.subr.mxu0 0.0
    %2031 = vmatpush1.msra.mxu0 0.0
    %2032 = vmatprep.subr.mxu0 0.0
    %2033 = vmatpush1.msra.mxu0 0.0
    %2034 = vmatprep.subr.mxu0 0.0
    %2035 = vmatpush1.msra.mxu0 0.0
    %2036 = vmatprep.subr.mxu0 0.0
    %2037 = vmatpush1.msra.mxu0 0.0
    %2038 = vmatprep.subr.mxu0 0.0
    %2039 = vmatpush1.msra.mxu0 0.0
    %2040 = vmatprep.subr.mxu0 0.0
    %2041 = vmatpush1.msra.mxu0 0.0
    %2042 = vmatprep.subr.mxu0 0.0
    %2043 = vmatpush1.msra.mxu0 0.0
    %2044 = vmatprep.subr.mxu0 0.0
    %2045 = vmatpush1.msra.mxu0 0.0
    %2046 = vmatprep.subr.mxu0 0.0
    %2047 = vmatpush1.msra.mxu0 0.0
    %2048 = vmatprep.mubr.f32.mxu0 0.0
    %2049 = vmatmul.mubr.f32.gmra.mrb[0].mxu0 %v1763
    %v2050 = vpop.f32.mrb[0].mxu0
    %v2051 = vadd.f32 0.0, %v2050
    %v2052 = vpop.f32.mrb[0].mxu0
    %2053 = vdwg.mxu0
    %v2054 = vmul.f32 %v1770, %v473
    %v2055 = vmul.f32 %v1770, %v477
    %v2056 = vmul.f32 %v1770, %v481
    %v2057 = vmul.f32 %v1770, %v485
    %v2058 = vadd.f32 %v2054, %v499
    %v2059 = vadd.f32 %v2055, %v503
    %v2060 = vadd.f32 %v2056, %v507
    %v2061 = vadd.f32 %v2057, %v511
    %v2062 = vadd.f32 %v2058, %v1838
    %v2063 = vadd.f32 %v2059, %v1840
    %v2064 = vadd.f32 %v2060, %v1909
    %v2065 = vadd.f32 %v2061, %v1911
    %v2066 = vxor.u32 %v2062, 2147483648
    %v2067 = vmul.f32 %v2066, 1.442695
    %v2068 = vpow.pop %v2067
    %v2069 = vadd.f32 %v2068, 1.0
    %v2070 = vrcp.pop %v2069
    %v2071 = vmul.f32 1.0, %v2070
    %v2072 = vxor.u32 %v2063, 2147483648
    %v2073 = vmul.f32 %v2072, 1.442695
    %v2074 = vpow.pop %v2073
    %v2075 = vadd.f32 %v2074, 1.0
    %v2076 = vrcp.pop %v2075
    %v2077 = vmul.f32 1.0, %v2076
    %v2078 = vtanh.pop %v2064
    %v2079 = vxor.u32 %v2065, 2147483648
    %v2080 = vmul.f32 %v2079, 1.442695
    %v2081 = vpow.pop %v2080
    %v2082 = vadd.f32 %v2081, 1.0
    %v2083 = vrcp.pop %v2082
    %v2084 = vmul.f32 1.0, %v2083
    %v2085 = vmul.f32 %v2077, %v1597
    %v2086 = vmul.f32 %v2071, %v2078
    %v2087 = vadd.f32 %v2085, %v2086
    %v2088 = vtanh.pop %v2087
    %v2089 = vmul.f32 %v2084, %v2088
    %2090 = vmatprep.subr.mxu0 %v549
    %2091 = vmatpush1.msra.mxu0 %v548
    %2092 = vmatprep.subr.mxu0 %v552
    %2093 = vmatpush1.msra.mxu0 %v551
    %2094 = vmatprep.subr.mxu0 %v555
    %2095 = vmatpush1.msra.mxu0 %v554
    %2096 = vmatprep.subr.mxu0 %v558
    %2097 = vmatpush1.msra.mxu0 %v557
    %2098 = vmatprep.subr.mxu0 %v561
    %2099 = vmatpush1.msra.mxu0 %v560
    %2100 = vmatprep.subr.mxu0 %v564
    %2101 = vmatpush1.msra.mxu0 %v563
    %2102 = vmatprep.subr.mxu0 %v567
    %2103 = vmatpush1.msra.mxu0 %v566
    %2104 = vmatprep.subr.mxu0 %v570
    %2105 = vmatpush1.msra.mxu0 %v569
    %2106 = vmatprep.subr.mxu0 %v573
    %2107 = vmatpush1.msra.mxu0 %v572
    %2108 = vmatprep.subr.mxu0 %v576
    %2109 = vmatpush1.msra.mxu0 %v575
    %2110 = vmatprep.subr.mxu0 %v579
    %2111 = vmatpush1.msra.mxu0 %v578
    %2112 = vmatprep.subr.mxu0 %v582
    %2113 = vmatpush1.msra.mxu0 %v581
    %2114 = vmatprep.subr.mxu0 %v585
    %2115 = vmatpush1.msra.mxu0 %v584
    %2116 = vmatprep.subr.mxu0 %v588
    %2117 = vmatpush1.msra.mxu0 %v587
    %2118 = vmatprep.subr.mxu0 %v591
    %2119 = vmatpush1.msra.mxu0 %v590
    %2120 = vmatprep.subr.mxu0 %v594
    %2121 = vmatpush1.msra.mxu0 %v593
    %2122 = vmatprep.subr.mxu0 0.0
    %2123 = vmatpush1.msra.mxu0 0.0
    %2124 = vmatprep.subr.mxu0 0.0
    %2125 = vmatpush1.msra.mxu0 0.0
    %2126 = vmatprep.subr.mxu0 0.0
    %2127 = vmatpush1.msra.mxu0 0.0
    %2128 = vmatprep.subr.mxu0 0.0
    %2129 = vmatpush1.msra.mxu0 0.0
    %2130 = vmatprep.subr.mxu0 0.0
    %2131 = vmatpush1.msra.mxu0 0.0
    %2132 = vmatprep.subr.mxu0 0.0
    %2133 = vmatpush1.msra.mxu0 0.0
    %2134 = vmatprep.subr.mxu0 0.0
    %2135 = vmatpush1.msra.mxu0 0.0
    %2136 = vmatprep.subr.mxu0 0.0
    %2137 = vmatpush1.msra.mxu0 0.0
    %2138 = vmatprep.subr.mxu0 0.0
    %2139 = vmatpush1.msra.mxu0 0.0
    %2140 = vmatprep.subr.mxu0 0.0
    %2141 = vmatpush1.msra.mxu0 0.0
    %2142 = vmatprep.subr.mxu0 0.0
    %2143 = vmatpush1.msra.mxu0 0.0
    %2144 = vmatprep.subr.mxu0 0.0
    %2145 = vmatpush1.msra.mxu0 0.0
    %2146 = vmatprep.subr.mxu0 0.0
    %2147 = vmatpush1.msra.mxu0 0.0
    %2148 = vmatprep.subr.mxu0 0.0
    %2149 = vmatpush1.msra.mxu0 0.0
    %2150 = vmatprep.subr.mxu0 0.0
    %2151 = vmatpush1.msra.mxu0 0.0
    %2152 = vmatprep.subr.mxu0 0.0
    %2153 = vmatpush1.msra.mxu0 0.0
    %2154 = vmatprep.mubr.f32.mxu0 0.0
    %2155 = vmatmul.mubr.f32.gmra.mrb[0].mxu0 %v2089
    %v2156 = vpop.f32.mrb[0].mxu0
    %v2157 = vadd.f32 %v601, %v2156
    %v2158 = vpop.f32.mrb[0].mxu0
    %v2159 = vadd.f32 %v605, %v2158
    %2160 = vdwg.mxu0
    %2161 = vmatprep.subr.mxu0 0.0
    %2162 = vmatpush1.msra.mxu0 %v550
    %2163 = vmatprep.subr.mxu0 0.0
    %2164 = vmatpush1.msra.mxu0 %v553
    %2165 = vmatprep.subr.mxu0 0.0
    %2166 = vmatpush1.msra.mxu0 %v556
    %2167 = vmatprep.subr.mxu0 0.0
    %2168 = vmatpush1.msra.mxu0 %v559
    %2169 = vmatprep.subr.mxu0 0.0
    %2170 = vmatpush1.msra.mxu0 %v562
    %2171 = vmatprep.subr.mxu0 0.0
    %2172 = vmatpush1.msra.mxu0 %v565
    %2173 = vmatprep.subr.mxu0 0.0
    %2174 = vmatpush1.msra.mxu0 %v568
    %2175 = vmatprep.subr.mxu0 0.0
    %2176 = vmatpush1.msra.mxu0 %v571
    %2177 = vmatprep.subr.mxu0 0.0
    %2178 = vmatpush1.msra.mxu0 %v574
    %2179 = vmatprep.subr.mxu0 0.0
    %2180 = vmatpush1.msra.mxu0 %v577
    %2181 = vmatprep.subr.mxu0 0.0
    %2182 = vmatpush1.msra.mxu0 %v580
    %2183 = vmatprep.subr.mxu0 0.0
    %2184 = vmatpush1.msra.mxu0 %v583
    %2185 = vmatprep.subr.mxu0 0.0
    %2186 = vmatpush1.msra.mxu0 %v586
    %2187 = vmatprep.subr.mxu0 0.0
    %2188 = vmatpush1.msra.mxu0 %v589
    %2189 = vmatprep.subr.mxu0 0.0
    %2190 = vmatpush1.msra.mxu0 %v592
    %2191 = vmatprep.subr.mxu0 0.0
    %2192 = vmatpush1.msra.mxu0 %v595
    %2193 = vmatprep.subr.mxu0 0.0
    %2194 = vmatpush1.msra.mxu0 0.0
    %2195 = vmatprep.subr.mxu0 0.0
    %2196 = vmatpush1.msra.mxu0 0.0
    %2197 = vmatprep.subr.mxu0 0.0
    %2198 = vmatpush1.msra.mxu0 0.0
    %2199 = vmatprep.subr.mxu0 0.0
    %2200 = vmatpush1.msra.mxu0 0.0
    %2201 = vmatprep.subr.mxu0 0.0
    %2202 = vmatpush1.msra.mxu0 0.0
    %2203 = vmatprep.subr.mxu0 0.0
    %2204 = vmatpush1.msra.mxu0 0.0
    %2205 = vmatprep.subr.mxu0 0.0
    %2206 = vmatpush1.msra.mxu0 0.0
    %2207 = vmatprep.subr.mxu0 0.0
    %2208 = vmatpush1.msra.mxu0 0.0
    %2209 = vmatprep.subr.mxu0 0.0
    %2210 = vmatpush1.msra.mxu0 0.0
    %2211 = vmatprep.subr.mxu0 0.0
    %2212 = vmatpush1.msra.mxu0 0.0
    %2213 = vmatprep.subr.mxu0 0.0
    %2214 = vmatpush1.msra.mxu0 0.0
    %2215 = vmatprep.subr.mxu0 0.0
    %2216 = vmatpush1.msra.mxu0 0.0
    %2217 = vmatprep.subr.mxu0 0.0
    %2218 = vmatpush1.msra.mxu0 0.0
    %2219 = vmatprep.subr.mxu0 0.0
    %2220 = vmatpush1.msra.mxu0 0.0
    %2221 = vmatprep.subr.mxu0 0.0
    %2222 = vmatpush1.msra.mxu0 0.0
    %2223 = vmatprep.subr.mxu0 0.0
    %2224 = vmatpush1.msra.mxu0 0.0
    %2225 = vmatprep.mubr.f32.mxu0 0.0
    %2226 = vmatmul.mubr.f32.gmra.mrb[0].mxu0 %v2089
    %v2227 = vpop.f32.mrb[0].mxu0
    %v2228 = vadd.f32 %v609, %v2227
    %v2229 = vpop.f32.mrb[0].mxu0
    %2230 = vdwg.mxu0
    %v2231 = vadd.f32 %v2157, %v1980
    %v2232 = vxor.u32 %v2231, 2147483648
    %v2233 = vmul.f32 %v2232, 1.442695
    %v2234 = vpow.pop %v2233
    %v2235 = vadd.f32 %v2234, 1.0
    %v2236 = vrcp.pop %v2235
    %v2237 = vmul.f32 1.0, %v2236
    %v2238 = vadd.f32 %v2159, %v1982
    %v2239 = vxor.u32 %v2238, 2147483648
    %v2240 = vmul.f32 %v2239, 1.442695
    %v2241 = vpow.pop %v2240
    %v2242 = vadd.f32 %v2241, 1.0
    %v2243 = vrcp.pop %v2242
    %v2244 = vmul.f32 1.0, %v2243
    %v2245 = vadd.f32 %v2051, %v773
    %v2246 = vmul.f32 %v2237, %v2245
    %v2247 = vadd.f32 %v2228, %v2246
    %v2248 = vtanh.pop %v2247
    %v2249 = vsub.f32 1.0, %v2244
    %v2250 = vmul.f32 %v2249, %v2248
    %v2251 = vmul.f32 %v2244, %v1762
    %v2252 = vadd.f32 %v2250, %v2251
    %v2253 = vadd.f32 %v2089, %v2252
    %vm2254 = vcmp.eq.s32.totalorder %v64, 4
    %v2255 = vsel %vm2254, 1, 0
    %vm2256 = vcmp.eq.s32.totalorder %v2255, 1
    %v2257 = vsel %vm2256, %v62, 0.0
    %v2258 = vsel %vm69, %v2257, 0.0
    %2259 = vadd.xlane.f32.xlu0 %v2258
    %v2260 = vpop.xlane.xlu0 %2259
    %2261 = vmatprep.subr.mxu0 %v74
    %2262 = vmatpush1.msra.mxu0 %v73
    %2263 = vmatprep.subr.mxu0 %v81
    %2264 = vmatpush1.msra.mxu0 %v80
    %2265 = vmatprep.subr.mxu0 %v88
    %2266 = vmatpush1.msra.mxu0 %v87
    %2267 = vmatprep.subr.mxu0 %v95
    %2268 = vmatpush1.msra.mxu0 %v94
    %2269 = vmatprep.subr.mxu0 %v102
    %2270 = vmatpush1.msra.mxu0 %v101
    %2271 = vmatprep.subr.mxu0 %v109
    %2272 = vmatpush1.msra.mxu0 %v108
    %2273 = vmatprep.subr.mxu0 %v116
    %2274 = vmatpush1.msra.mxu0 %v115
    %2275 = vmatprep.subr.mxu0 %v123
    %2276 = vmatpush1.msra.mxu0 %v122
    %2277 = vmatprep.subr.mxu0 %v130
    %2278 = vmatpush1.msra.mxu0 %v129
    %2279 = vmatprep.subr.mxu0 %v137
    %2280 = vmatpush1.msra.mxu0 %v136
    %2281 = vmatprep.subr.mxu0 %v144
    %2282 = vmatpush1.msra.mxu0 %v143
    %2283 = vmatprep.subr.mxu0 %v151
    %2284 = vmatpush1.msra.mxu0 %v150
    %2285 = vmatprep.subr.mxu0 %v158
    %2286 = vmatpush1.msra.mxu0 %v157
    %2287 = vmatprep.subr.mxu0 %v165
    %2288 = vmatpush1.msra.mxu0 %v164
    %2289 = vmatprep.subr.mxu0 %v172
    %2290 = vmatpush1.msra.mxu0 %v171
    %2291 = vmatprep.subr.mxu0 %v179
    %2292 = vmatpush1.msra.mxu0 %v178
    %2293 = vmatprep.subr.mxu0 0.0
    %2294 = vmatpush1.msra.mxu0 0.0
    %2295 = vmatprep.subr.mxu0 0.0
    %2296 = vmatpush1.msra.mxu0 0.0
    %2297 = vmatprep.subr.mxu0 0.0
    %2298 = vmatpush1.msra.mxu0 0.0
    %2299 = vmatprep.subr.mxu0 0.0
    %2300 = vmatpush1.msra.mxu0 0.0
    %2301 = vmatprep.subr.mxu0 0.0
    %2302 = vmatpush1.msra.mxu0 0.0
    %2303 = vmatprep.subr.mxu0 0.0
    %2304 = vmatpush1.msra.mxu0 0.0
    %2305 = vmatprep.subr.mxu0 0.0
    %2306 = vmatpush1.msra.mxu0 0.0
    %2307 = vmatprep.subr.mxu0 0.0
    %2308 = vmatpush1.msra.mxu0 0.0
    %2309 = vmatprep.subr.mxu0 0.0
    %2310 = vmatpush1.msra.mxu0 0.0
    %2311 = vmatprep.subr.mxu0 0.0
    %2312 = vmatpush1.msra.mxu0 0.0
    %2313 = vmatprep.subr.mxu0 0.0
    %2314 = vmatpush1.msra.mxu0 0.0
    %2315 = vmatprep.subr.mxu0 0.0
    %2316 = vmatpush1.msra.mxu0 0.0
    %2317 = vmatprep.subr.mxu0 0.0
    %2318 = vmatpush1.msra.mxu0 0.0
    %2319 = vmatprep.subr.mxu0 0.0
    %2320 = vmatpush1.msra.mxu0 0.0
    %2321 = vmatprep.subr.mxu0 0.0
    %2322 = vmatpush1.msra.mxu0 0.0
    %2323 = vmatprep.subr.mxu0 0.0
    %2324 = vmatpush1.msra.mxu0 0.0
    %2325 = vmatprep.mubr.f32.mxu0 0.0
    %2326 = vmatmul.mubr.f32.gmra.mrb[0].mxu0 %v2253
    %v2327 = vpop.f32.mrb[0].mxu0
    %v2328 = vadd.f32 0.0, %v2327
    %v2329 = vpop.f32.mrb[0].mxu0
    %v2330 = vadd.f32 0.0, %v2329
    %2331 = vdwg.mxu0
    %2332 = vmatprep.subr.mxu0 %v76
    %2333 = vmatpush1.msra.mxu0 %v75
    %2334 = vmatprep.subr.mxu0 %v83
    %2335 = vmatpush1.msra.mxu0 %v82
    %2336 = vmatprep.subr.mxu0 %v90
    %2337 = vmatpush1.msra.mxu0 %v89
    %2338 = vmatprep.subr.mxu0 %v97
    %2339 = vmatpush1.msra.mxu0 %v96
    %2340 = vmatprep.subr.mxu0 %v104
    %2341 = vmatpush1.msra.mxu0 %v103
    %2342 = vmatprep.subr.mxu0 %v111
    %2343 = vmatpush1.msra.mxu0 %v110
    %2344 = vmatprep.subr.mxu0 %v118
    %2345 = vmatpush1.msra.mxu0 %v117
    %2346 = vmatprep.subr.mxu0 %v125
    %2347 = vmatpush1.msra.mxu0 %v124
    %2348 = vmatprep.subr.mxu0 %v132
    %2349 = vmatpush1.msra.mxu0 %v131
    %2350 = vmatprep.subr.mxu0 %v139
    %2351 = vmatpush1.msra.mxu0 %v138
    %2352 = vmatprep.subr.mxu0 %v146
    %2353 = vmatpush1.msra.mxu0 %v145
    %2354 = vmatprep.subr.mxu0 %v153
    %2355 = vmatpush1.msra.mxu0 %v152
    %2356 = vmatprep.subr.mxu0 %v160
    %2357 = vmatpush1.msra.mxu0 %v159
    %2358 = vmatprep.subr.mxu0 %v167
    %2359 = vmatpush1.msra.mxu0 %v166
    %2360 = vmatprep.subr.mxu0 %v174
    %2361 = vmatpush1.msra.mxu0 %v173
    %2362 = vmatprep.subr.mxu0 %v181
    %2363 = vmatpush1.msra.mxu0 %v180
    %2364 = vmatprep.subr.mxu0 0.0
    %2365 = vmatpush1.msra.mxu0 0.0
    %2366 = vmatprep.subr.mxu0 0.0
    %2367 = vmatpush1.msra.mxu0 0.0
    %2368 = vmatprep.subr.mxu0 0.0
    %2369 = vmatpush1.msra.mxu0 0.0
    %2370 = vmatprep.subr.mxu0 0.0
    %2371 = vmatpush1.msra.mxu0 0.0
    %2372 = vmatprep.subr.mxu0 0.0
    %2373 = vmatpush1.msra.mxu0 0.0
    %2374 = vmatprep.subr.mxu0 0.0
    %2375 = vmatpush1.msra.mxu0 0.0
    %2376 = vmatprep.subr.mxu0 0.0
    %2377 = vmatpush1.msra.mxu0 0.0
    %2378 = vmatprep.subr.mxu0 0.0
    %2379 = vmatpush1.msra.mxu0 0.0
    %2380 = vmatprep.subr.mxu0 0.0
    %2381 = vmatpush1.msra.mxu0 0.0
    %2382 = vmatprep.subr.mxu0 0.0
    %2383 = vmatpush1.msra.mxu0 0.0
    %2384 = vmatprep.subr.mxu0 0.0
    %2385 = vmatpush1.msra.mxu0 0.0
    %2386 = vmatprep.subr.mxu0 0.0
    %2387 = vmatpush1.msra.mxu0 0.0
    %2388 = vmatprep.subr.mxu0 0.0
    %2389 = vmatpush1.msra.mxu0 0.0
    %2390 = vmatprep.subr.mxu0 0.0
    %2391 = vmatpush1.msra.mxu0 0.0
    %2392 = vmatprep.subr.mxu0 0.0
    %2393 = vmatpush1.msra.mxu0 0.0
    %2394 = vmatprep.subr.mxu0 0.0
    %2395 = vmatpush1.msra.mxu0 0.0
    %2396 = vmatprep.mubr.f32.mxu0 0.0
    %2397 = vmatmul.mubr.f32.gmra.mrb[0].mxu0 %v2253
    %v2398 = vpop.f32.mrb[0].mxu0
    %v2399 = vadd.f32 0.0, %v2398
    %v2400 = vpop.f32.mrb[0].mxu0
    %v2401 = vadd.f32 0.0, %v2400
    %2402 = vdwg.mxu0
    %2403 = vmatprep.subr.mxu0 %v78
    %2404 = vmatpush1.msra.mxu0 %v77
    %2405 = vmatprep.subr.mxu0 %v85
    %2406 = vmatpush1.msra.mxu0 %v84
    %2407 = vmatprep.subr.mxu0 %v92
    %2408 = vmatpush1.msra.mxu0 %v91
    %2409 = vmatprep.subr.mxu0 %v99
    %2410 = vmatpush1.msra.mxu0 %v98
    %2411 = vmatprep.subr.mxu0 %v106
    %2412 = vmatpush1.msra.mxu0 %v105
    %2413 = vmatprep.subr.mxu0 %v113
    %2414 = vmatpush1.msra.mxu0 %v112
    %2415 = vmatprep.subr.mxu0 %v120
    %2416 = vmatpush1.msra.mxu0 %v119
    %2417 = vmatprep.subr.mxu0 %v127
    %2418 = vmatpush1.msra.mxu0 %v126
    %2419 = vmatprep.subr.mxu0 %v134
    %2420 = vmatpush1.msra.mxu0 %v133
    %2421 = vmatprep.subr.mxu0 %v141
    %2422 = vmatpush1.msra.mxu0 %v140
    %2423 = vmatprep.subr.mxu0 %v148
    %2424 = vmatpush1.msra.mxu0 %v147
    %2425 = vmatprep.subr.mxu0 %v155
    %2426 = vmatpush1.msra.mxu0 %v154
    %2427 = vmatprep.subr.mxu0 %v162
    %2428 = vmatpush1.msra.mxu0 %v161
    %2429 = vmatprep.subr.mxu0 %v169
    %2430 = vmatpush1.msra.mxu0 %v168
    %2431 = vmatprep.subr.mxu0 %v176
    %2432 = vmatpush1.msra.mxu0 %v175
    %2433 = vmatprep.subr.mxu0 %v183
    %2434 = vmatpush1.msra.mxu0 %v182
    %2435 = vmatprep.subr.mxu0 0.0
    %2436 = vmatpush1.msra.mxu0 0.0
    %2437 = vmatprep.subr.mxu0 0.0
    %2438 = vmatpush1.msra.mxu0 0.0
    %2439 = vmatprep.subr.mxu0 0.0
    %2440 = vmatpush1.msra.mxu0 0.0
    %2441 = vmatprep.subr.mxu0 0.0
    %2442 = vmatpush1.msra.mxu0 0.0
    %2443 = vmatprep.subr.mxu0 0.0
    %2444 = vmatpush1.msra.mxu0 0.0
    %2445 = vmatprep.subr.mxu0 0.0
    %2446 = vmatpush1.msra.mxu0 0.0
    %2447 = vmatprep.subr.mxu0 0.0
    %2448 = vmatpush1.msra.mxu0 0.0
    %2449 = vmatprep.subr.mxu0 0.0
    %2450 = vmatpush1.msra.mxu0 0.0
    %2451 = vmatprep.subr.mxu0 0.0
    %2452 = vmatpush1.msra.mxu0 0.0
    %2453 = vmatprep.subr.mxu0 0.0
    %2454 = vmatpush1.msra.mxu0 0.0
    %2455 = vmatprep.subr.mxu0 0.0
    %2456 = vmatpush1.msra.mxu0 0.0
    %2457 = vmatprep.subr.mxu0 0.0
    %2458 = vmatpush1.msra.mxu0 0.0
    %2459 = vmatprep.subr.mxu0 0.0
    %2460 = vmatpush1.msra.mxu0 0.0
    %2461 = vmatprep.subr.mxu0 0.0
    %2462 = vmatpush1.msra.mxu0 0.0
    %2463 = vmatprep.subr.mxu0 0.0
    %2464 = vmatpush1.msra.mxu0 0.0
    %2465 = vmatprep.subr.mxu0 0.0
    %2466 = vmatpush1.msra.mxu0 0.0
    %2467 = vmatprep.mubr.f32.mxu0 0.0
    %2468 = vmatmul.mubr.f32.gmra.mrb[0].mxu0 %v2253
    %v2469 = vpop.f32.mrb[0].mxu0
    %v2470 = vadd.f32 0.0, %v2469
    %v2471 = vpop.f32.mrb[0].mxu0
    %v2472 = vadd.f32 0.0, %v2471
    %2473 = vdwg.mxu0
    %2474 = vmatprep.subr.mxu0 0.0
    %2475 = vmatpush1.msra.mxu0 %v79
    %2476 = vmatprep.subr.mxu0 0.0
    %2477 = vmatpush1.msra.mxu0 %v86
    %2478 = vmatprep.subr.mxu0 0.0
    %2479 = vmatpush1.msra.mxu0 %v93
    %2480 = vmatprep.subr.mxu0 0.0
    %2481 = vmatpush1.msra.mxu0 %v100
    %2482 = vmatprep.subr.mxu0 0.0
    %2483 = vmatpush1.msra.mxu0 %v107
    %2484 = vmatprep.subr.mxu0 0.0
    %2485 = vmatpush1.msra.mxu0 %v114
    %2486 = vmatprep.subr.mxu0 0.0
    %2487 = vmatpush1.msra.mxu0 %v121
    %2488 = vmatprep.subr.mxu0 0.0
    %2489 = vmatpush1.msra.mxu0 %v128
    %2490 = vmatprep.subr.mxu0 0.0
    %2491 = vmatpush1.msra.mxu0 %v135
    %2492 = vmatprep.subr.mxu0 0.0
    %2493 = vmatpush1.msra.mxu0 %v142
    %2494 = vmatprep.subr.mxu0 0.0
    %2495 = vmatpush1.msra.mxu0 %v149
    %2496 = vmatprep.subr.mxu0 0.0
    %2497 = vmatpush1.msra.mxu0 %v156
    %2498 = vmatprep.subr.mxu0 0.0
    %2499 = vmatpush1.msra.mxu0 %v163
    %2500 = vmatprep.subr.mxu0 0.0
    %2501 = vmatpush1.msra.mxu0 %v170
    %2502 = vmatprep.subr.mxu0 0.0
    %2503 = vmatpush1.msra.mxu0 %v177
    %2504 = vmatprep.subr.mxu0 0.0
    %2505 = vmatpush1.msra.mxu0 %v184
    %2506 = vmatprep.subr.mxu0 0.0
    %2507 = vmatpush1.msra.mxu0 0.0
    %2508 = vmatprep.subr.mxu0 0.0
    %2509 = vmatpush1.msra.mxu0 0.0
    %2510 = vmatprep.subr.mxu0 0.0
    %2511 = vmatpush1.msra.mxu0 0.0
    %2512 = vmatprep.subr.mxu0 0.0
    %2513 = vmatpush1.msra.mxu0 0.0
    %2514 = vmatprep.subr.mxu0 0.0
    %2515 = vmatpush1.msra.mxu0 0.0
    %2516 = vmatprep.subr.mxu0 0.0
    %2517 = vmatpush1.msra.mxu0 0.0
    %2518 = vmatprep.subr.mxu0 0.0
    %2519 = vmatpush1.msra.mxu0 0.0
    %2520 = vmatprep.subr.mxu0 0.0
    %2521 = vmatpush1.msra.mxu0 0.0
    %2522 = vmatprep.subr.mxu0 0.0
    %2523 = vmatpush1.msra.mxu0 0.0
    %2524 = vmatprep.subr.mxu0 0.0
    %2525 = vmatpush1.msra.mxu0 0.0
    %2526 = vmatprep.subr.mxu0 0.0
    %2527 = vmatpush1.msra.mxu0 0.0
    %2528 = vmatprep.subr.mxu0 0.0
    %2529 = vmatpush1.msra.mxu0 0.0
    %2530 = vmatprep.subr.mxu0 0.0
    %2531 = vmatpush1.msra.mxu0 0.0
    %2532 = vmatprep.subr.mxu0 0.0
    %2533 = vmatpush1.msra.mxu0 0.0
    %2534 = vmatprep.subr.mxu0 0.0
    %2535 = vmatpush1.msra.mxu0 0.0
    %2536 = vmatprep.subr.mxu0 0.0
    %2537 = vmatpush1.msra.mxu0 0.0
    %2538 = vmatprep.mubr.f32.mxu0 0.0
    %2539 = vmatmul.mubr.f32.gmra.mrb[0].mxu0 %v2253
    %v2540 = vpop.f32.mrb[0].mxu0
    %v2541 = vadd.f32 0.0, %v2540
    %v2542 = vpop.f32.mrb[0].mxu0
    %2543 = vdwg.mxu0
    %v2544 = vmul.f32 %v2260, %v473
    %v2545 = vmul.f32 %v2260, %v477
    %v2546 = vmul.f32 %v2260, %v481
    %v2547 = vmul.f32 %v2260, %v485
    %v2548 = vadd.f32 %v2544, %v499
    %v2549 = vadd.f32 %v2545, %v503
    %v2550 = vadd.f32 %v2546, %v507
    %v2551 = vadd.f32 %v2547, %v511
    %v2552 = vadd.f32 %v2548, %v2328
    %v2553 = vadd.f32 %v2549, %v2330
    %v2554 = vadd.f32 %v2550, %v2399
    %v2555 = vadd.f32 %v2551, %v2401
    %v2556 = vxor.u32 %v2552, 2147483648
    %v2557 = vmul.f32 %v2556, 1.442695
    %v2558 = vpow.pop %v2557
    %v2559 = vadd.f32 %v2558, 1.0
    %v2560 = vrcp.pop %v2559
    %v2561 = vmul.f32 1.0, %v2560
    %v2562 = vxor.u32 %v2553, 2147483648
    %v2563 = vmul.f32 %v2562, 1.442695
    %v2564 = vpow.pop %v2563
    %v2565 = vadd.f32 %v2564, 1.0
    %v2566 = vrcp.pop %v2565
    %v2567 = vmul.f32 1.0, %v2566
    %v2568 = vtanh.pop %v2554
    %v2569 = vxor.u32 %v2555, 2147483648
    %v2570 = vmul.f32 %v2569, 1.442695
    %v2571 = vpow.pop %v2570
    %v2572 = vadd.f32 %v2571, 1.0
    %v2573 = vrcp.pop %v2572
    %v2574 = vmul.f32 1.0, %v2573
    %v2575 = vmul.f32 %v2567, %v2087
    %v2576 = vmul.f32 %v2561, %v2568
    %v2577 = vadd.f32 %v2575, %v2576
    %v2578 = vtanh.pop %v2577
    %v2579 = vmul.f32 %v2574, %v2578
    %2580 = vmatprep.subr.mxu0 %v549
    %2581 = vmatpush1.msra.mxu0 %v548
    %2582 = vmatprep.subr.mxu0 %v552
    %2583 = vmatpush1.msra.mxu0 %v551
    %2584 = vmatprep.subr.mxu0 %v555
    %2585 = vmatpush1.msra.mxu0 %v554
    %2586 = vmatprep.subr.mxu0 %v558
    %2587 = vmatpush1.msra.mxu0 %v557
    %2588 = vmatprep.subr.mxu0 %v561
    %2589 = vmatpush1.msra.mxu0 %v560
    %2590 = vmatprep.subr.mxu0 %v564
    %2591 = vmatpush1.msra.mxu0 %v563
    %2592 = vmatprep.subr.mxu0 %v567
    %2593 = vmatpush1.msra.mxu0 %v566
    %2594 = vmatprep.subr.mxu0 %v570
    %2595 = vmatpush1.msra.mxu0 %v569
    %2596 = vmatprep.subr.mxu0 %v573
    %2597 = vmatpush1.msra.mxu0 %v572
    %2598 = vmatprep.subr.mxu0 %v576
    %2599 = vmatpush1.msra.mxu0 %v575
    %2600 = vmatprep.subr.mxu0 %v579
    %2601 = vmatpush1.msra.mxu0 %v578
    %2602 = vmatprep.subr.mxu0 %v582
    %2603 = vmatpush1.msra.mxu0 %v581
    %2604 = vmatprep.subr.mxu0 %v585
    %2605 = vmatpush1.msra.mxu0 %v584
    %2606 = vmatprep.subr.mxu0 %v588
    %2607 = vmatpush1.msra.mxu0 %v587
    %2608 = vmatprep.subr.mxu0 %v591
    %2609 = vmatpush1.msra.mxu0 %v590
    %2610 = vmatprep.subr.mxu0 %v594
    %2611 = vmatpush1.msra.mxu0 %v593
    %2612 = vmatprep.subr.mxu0 0.0
    %2613 = vmatpush1.msra.mxu0 0.0
    %2614 = vmatprep.subr.mxu0 0.0
    %2615 = vmatpush1.msra.mxu0 0.0
    %2616 = vmatprep.subr.mxu0 0.0
    %2617 = vmatpush1.msra.mxu0 0.0
    %2618 = vmatprep.subr.mxu0 0.0
    %2619 = vmatpush1.msra.mxu0 0.0
    %2620 = vmatprep.subr.mxu0 0.0
    %2621 = vmatpush1.msra.mxu0 0.0
    %2622 = vmatprep.subr.mxu0 0.0
    %2623 = vmatpush1.msra.mxu0 0.0
    %2624 = vmatprep.subr.mxu0 0.0
    %2625 = vmatpush1.msra.mxu0 0.0
    %2626 = vmatprep.subr.mxu0 0.0
    %2627 = vmatpush1.msra.mxu0 0.0
    %2628 = vmatprep.subr.mxu0 0.0
    %2629 = vmatpush1.msra.mxu0 0.0
    %2630 = vmatprep.subr.mxu0 0.0
    %2631 = vmatpush1.msra.mxu0 0.0
    %2632 = vmatprep.subr.mxu0 0.0
    %2633 = vmatpush1.msra.mxu0 0.0
    %2634 = vmatprep.subr.mxu0 0.0
    %2635 = vmatpush1.msra.mxu0 0.0
    %2636 = vmatprep.subr.mxu0 0.0
    %2637 = vmatpush1.msra.mxu0 0.0
    %2638 = vmatprep.subr.mxu0 0.0
    %2639 = vmatpush1.msra.mxu0 0.0
    %2640 = vmatprep.subr.mxu0 0.0
    %2641 = vmatpush1.msra.mxu0 0.0
    %2642 = vmatprep.subr.mxu0 0.0
    %2643 = vmatpush1.msra.mxu0 0.0
    %2644 = vmatprep.mubr.f32.mxu0 0.0
    %2645 = vmatmul.mubr.f32.gmra.mrb[0].mxu0 %v2579
    %v2646 = vpop.f32.mrb[0].mxu0
    %v2647 = vadd.f32 %v601, %v2646
    %v2648 = vpop.f32.mrb[0].mxu0
    %v2649 = vadd.f32 %v605, %v2648
    %2650 = vdwg.mxu0
    %2651 = vmatprep.subr.mxu0 0.0
    %2652 = vmatpush1.msra.mxu0 %v550
    %2653 = vmatprep.subr.mxu0 0.0
    %2654 = vmatpush1.msra.mxu0 %v553
    %2655 = vmatprep.subr.mxu0 0.0
    %2656 = vmatpush1.msra.mxu0 %v556
    %2657 = vmatprep.subr.mxu0 0.0
    %2658 = vmatpush1.msra.mxu0 %v559
    %2659 = vmatprep.subr.mxu0 0.0
    %2660 = vmatpush1.msra.mxu0 %v562
    %2661 = vmatprep.subr.mxu0 0.0
    %2662 = vmatpush1.msra.mxu0 %v565
    %2663 = vmatprep.subr.mxu0 0.0
    %2664 = vmatpush1.msra.mxu0 %v568
    %2665 = vmatprep.subr.mxu0 0.0
    %2666 = vmatpush1.msra.mxu0 %v571
    %2667 = vmatprep.subr.mxu0 0.0
    %2668 = vmatpush1.msra.mxu0 %v574
    %2669 = vmatprep.subr.mxu0 0.0
    %2670 = vmatpush1.msra.mxu0 %v577
    %2671 = vmatprep.subr.mxu0 0.0
    %2672 = vmatpush1.msra.mxu0 %v580
    %2673 = vmatprep.subr.mxu0 0.0
    %2674 = vmatpush1.msra.mxu0 %v583
    %2675 = vmatprep.subr.mxu0 0.0
    %2676 = vmatpush1.msra.mxu0 %v586
    %2677 = vmatprep.subr.mxu0 0.0
    %2678 = vmatpush1.msra.mxu0 %v589
    %2679 = vmatprep.subr.mxu0 0.0
    %2680 = vmatpush1.msra.mxu0 %v592
    %2681 = vmatprep.subr.mxu0 0.0
    %2682 = vmatpush1.msra.mxu0 %v595
    %2683 = vmatprep.subr.mxu0 0.0
    %2684 = vmatpush1.msra.mxu0 0.0
    %2685 = vmatprep.subr.mxu0 0.0
    %2686 = vmatpush1.msra.mxu0 0.0
    %2687 = vmatprep.subr.mxu0 0.0
    %2688 = vmatpush1.msra.mxu0 0.0
    %2689 = vmatprep.subr.mxu0 0.0
    %2690 = vmatpush1.msra.mxu0 0.0
    %2691 = vmatprep.subr.mxu0 0.0
    %2692 = vmatpush1.msra.mxu0 0.0
    %2693 = vmatprep.subr.mxu0 0.0
    %2694 = vmatpush1.msra.mxu0 0.0
    %2695 = vmatprep.subr.mxu0 0.0
    %2696 = vmatpush1.msra.mxu0 0.0
    %2697 = vmatprep.subr.mxu0 0.0
    %2698 = vmatpush1.msra.mxu0 0.0
    %2699 = vmatprep.subr.mxu0 0.0
    %2700 = vmatpush1.msra.mxu0 0.0
    %2701 = vmatprep.subr.mxu0 0.0
    %2702 = vmatpush1.msra.mxu0 0.0
    %2703 = vmatprep.subr.mxu0 0.0
    %2704 = vmatpush1.msra.mxu0 0.0
    %2705 = vmatprep.subr.mxu0 0.0
    %2706 = vmatpush1.msra.mxu0 0.0
    %2707 = vmatprep.subr.mxu0 0.0
    %2708 = vmatpush1.msra.mxu0 0.0
    %2709 = vmatprep.subr.mxu0 0.0
    %2710 = vmatpush1.msra.mxu0 0.0
    %2711 = vmatprep.subr.mxu0 0.0
    %2712 = vmatpush1.msra.mxu0 0.0
    %2713 = vmatprep.subr.mxu0 0.0
    %2714 = vmatpush1.msra.mxu0 0.0
    %2715 = vmatprep.mubr.f32.mxu0 0.0
    %2716 = vmatmul.mubr.f32.gmra.mrb[0].mxu0 %v2579
    %v2717 = vpop.f32.mrb[0].mxu0
    %v2718 = vadd.f32 %v609, %v2717
    %v2719 = vpop.f32.mrb[0].mxu0
    %2720 = vdwg.mxu0
    %v2721 = vadd.f32 %v2647, %v2470
    %v2722 = vxor.u32 %v2721, 2147483648
    %v2723 = vmul.f32 %v2722, 1.442695
    %v2724 = vpow.pop %v2723
    %v2725 = vadd.f32 %v2724, 1.0
    %v2726 = vrcp.pop %v2725
    %v2727 = vmul.f32 1.0, %v2726
    %v2728 = vadd.f32 %v2649, %v2472
    %v2729 = vxor.u32 %v2728, 2147483648
    %v2730 = vmul.f32 %v2729, 1.442695
    %v2731 = vpow.pop %v2730
    %v2732 = vadd.f32 %v2731, 1.0
    %v2733 = vrcp.pop %v2732
    %v2734 = vmul.f32 1.0, %v2733
    %v2735 = vadd.f32 %v2541, %v773
    %v2736 = vmul.f32 %v2727, %v2735
    %v2737 = vadd.f32 %v2718, %v2736
    %v2738 = vtanh.pop %v2737
    %v2739 = vsub.f32 1.0, %v2734
    %v2740 = vmul.f32 %v2739, %v2738
    %v2741 = vmul.f32 %v2734, %v2252
    %v2742 = vadd.f32 %v2740, %v2741
    %v2743 = vadd.f32 %v2579, %v2742
    %vm2744 = vcmp.eq.s32.totalorder %v64, 5
    %v2745 = vsel %vm2744, 1, 0
    %vm2746 = vcmp.eq.s32.totalorder %v2745, 1
    %v2747 = vsel %vm2746, %v62, 0.0
    %v2748 = vsel %vm69, %v2747, 0.0
    %2749 = vadd.xlane.f32.xlu0 %v2748
    %v2750 = vpop.xlane.xlu0 %2749
    %2751 = vmatprep.subr.mxu0 %v74
    %2752 = vmatpush1.msra.mxu0 %v73
    %2753 = vmatprep.subr.mxu0 %v81
    %2754 = vmatpush1.msra.mxu0 %v80
    %2755 = vmatprep.subr.mxu0 %v88
    %2756 = vmatpush1.msra.mxu0 %v87
    %2757 = vmatprep.subr.mxu0 %v95
    %2758 = vmatpush1.msra.mxu0 %v94
    %2759 = vmatprep.subr.mxu0 %v102
    %2760 = vmatpush1.msra.mxu0 %v101
    %2761 = vmatprep.subr.mxu0 %v109
    %2762 = vmatpush1.msra.mxu0 %v108
    %2763 = vmatprep.subr.mxu0 %v116
    %2764 = vmatpush1.msra.mxu0 %v115
    %2765 = vmatprep.subr.mxu0 %v123
    %2766 = vmatpush1.msra.mxu0 %v122
    %2767 = vmatprep.subr.mxu0 %v130
    %2768 = vmatpush1.msra.mxu0 %v129
    %2769 = vmatprep.subr.mxu0 %v137
    %2770 = vmatpush1.msra.mxu0 %v136
    %2771 = vmatprep.subr.mxu0 %v144
    %2772 = vmatpush1.msra.mxu0 %v143
    %2773 = vmatprep.subr.mxu0 %v151
    %2774 = vmatpush1.msra.mxu0 %v150
    %2775 = vmatprep.subr.mxu0 %v158
    %2776 = vmatpush1.msra.mxu0 %v157
    %2777 = vmatprep.subr.mxu0 %v165
    %2778 = vmatpush1.msra.mxu0 %v164
    %2779 = vmatprep.subr.mxu0 %v172
    %2780 = vmatpush1.msra.mxu0 %v171
    %2781 = vmatprep.subr.mxu0 %v179
    %2782 = vmatpush1.msra.mxu0 %v178
    %2783 = vmatprep.subr.mxu0 0.0
    %2784 = vmatpush1.msra.mxu0 0.0
    %2785 = vmatprep.subr.mxu0 0.0
    %2786 = vmatpush1.msra.mxu0 0.0
    %2787 = vmatprep.subr.mxu0 0.0
    %2788 = vmatpush1.msra.mxu0 0.0
    %2789 = vmatprep.subr.mxu0 0.0
    %2790 = vmatpush1.msra.mxu0 0.0
    %2791 = vmatprep.subr.mxu0 0.0
    %2792 = vmatpush1.msra.mxu0 0.0
    %2793 = vmatprep.subr.mxu0 0.0
    %2794 = vmatpush1.msra.mxu0 0.0
    %2795 = vmatprep.subr.mxu0 0.0
    %2796 = vmatpush1.msra.mxu0 0.0
    %2797 = vmatprep.subr.mxu0 0.0
    %2798 = vmatpush1.msra.mxu0 0.0
    %2799 = vmatprep.subr.mxu0 0.0
    %2800 = vmatpush1.msra.mxu0 0.0
    %2801 = vmatprep.subr.mxu0 0.0
    %2802 = vmatpush1.msra.mxu0 0.0
    %2803 = vmatprep.subr.mxu0 0.0
    %2804 = vmatpush1.msra.mxu0 0.0
    %2805 = vmatprep.subr.mxu0 0.0
    %2806 = vmatpush1.msra.mxu0 0.0
    %2807 = vmatprep.subr.mxu0 0.0
    %2808 = vmatpush1.msra.mxu0 0.0
    %2809 = vmatprep.subr.mxu0 0.0
    %2810 = vmatpush1.msra.mxu0 0.0
    %2811 = vmatprep.subr.mxu0 0.0
    %2812 = vmatpush1.msra.mxu0 0.0
    %2813 = vmatprep.subr.mxu0 0.0
    %2814 = vmatpush1.msra.mxu0 0.0
    %2815 = vmatprep.mubr.f32.mxu0 0.0
    %2816 = vmatmul.mubr.f32.gmra.mrb[0].mxu0 %v2743
    %v2817 = vpop.f32.mrb[0].mxu0
    %v2818 = vadd.f32 0.0, %v2817
    %v2819 = vpop.f32.mrb[0].mxu0
    %v2820 = vadd.f32 0.0, %v2819
    %2821 = vdwg.mxu0
    %2822 = vmatprep.subr.mxu0 %v76
    %2823 = vmatpush1.msra.mxu0 %v75
    %2824 = vmatprep.subr.mxu0 %v83
    %2825 = vmatpush1.msra.mxu0 %v82
    %2826 = vmatprep.subr.mxu0 %v90
    %2827 = vmatpush1.msra.mxu0 %v89
    %2828 = vmatprep.subr.mxu0 %v97
    %2829 = vmatpush1.msra.mxu0 %v96
    %2830 = vmatprep.subr.mxu0 %v104
    %2831 = vmatpush1.msra.mxu0 %v103
    %2832 = vmatprep.subr.mxu0 %v111
    %2833 = vmatpush1.msra.mxu0 %v110
    %2834 = vmatprep.subr.mxu0 %v118
    %2835 = vmatpush1.msra.mxu0 %v117
    %2836 = vmatprep.subr.mxu0 %v125
    %2837 = vmatpush1.msra.mxu0 %v124
    %2838 = vmatprep.subr.mxu0 %v132
    %2839 = vmatpush1.msra.mxu0 %v131
    %2840 = vmatprep.subr.mxu0 %v139
    %2841 = vmatpush1.msra.mxu0 %v138
    %2842 = vmatprep.subr.mxu0 %v146
    %2843 = vmatpush1.msra.mxu0 %v145
    %2844 = vmatprep.subr.mxu0 %v153
    %2845 = vmatpush1.msra.mxu0 %v152
    %2846 = vmatprep.subr.mxu0 %v160
    %2847 = vmatpush1.msra.mxu0 %v159
    %2848 = vmatprep.subr.mxu0 %v167
    %2849 = vmatpush1.msra.mxu0 %v166
    %2850 = vmatprep.subr.mxu0 %v174
    %2851 = vmatpush1.msra.mxu0 %v173
    %2852 = vmatprep.subr.mxu0 %v181
    %2853 = vmatpush1.msra.mxu0 %v180
    %2854 = vmatprep.subr.mxu0 0.0
    %2855 = vmatpush1.msra.mxu0 0.0
    %2856 = vmatprep.subr.mxu0 0.0
    %2857 = vmatpush1.msra.mxu0 0.0
    %2858 = vmatprep.subr.mxu0 0.0
    %2859 = vmatpush1.msra.mxu0 0.0
    %2860 = vmatprep.subr.mxu0 0.0
    %2861 = vmatpush1.msra.mxu0 0.0
    %2862 = vmatprep.subr.mxu0 0.0
    %2863 = vmatpush1.msra.mxu0 0.0
    %2864 = vmatprep.subr.mxu0 0.0
    %2865 = vmatpush1.msra.mxu0 0.0
    %2866 = vmatprep.subr.mxu0 0.0
    %2867 = vmatpush1.msra.mxu0 0.0
    %2868 = vmatprep.subr.mxu0 0.0
    %2869 = vmatpush1.msra.mxu0 0.0
    %2870 = vmatprep.subr.mxu0 0.0
    %2871 = vmatpush1.msra.mxu0 0.0
    %2872 = vmatprep.subr.mxu0 0.0
    %2873 = vmatpush1.msra.mxu0 0.0
    %2874 = vmatprep.subr.mxu0 0.0
    %2875 = vmatpush1.msra.mxu0 0.0
    %2876 = vmatprep.subr.mxu0 0.0
    %2877 = vmatpush1.msra.mxu0 0.0
    %2878 = vmatprep.subr.mxu0 0.0
    %2879 = vmatpush1.msra.mxu0 0.0
    %2880 = vmatprep.subr.mxu0 0.0
    %2881 = vmatpush1.msra.mxu0 0.0
    %2882 = vmatprep.subr.mxu0 0.0
    %2883 = vmatpush1.msra.mxu0 0.0
    %2884 = vmatprep.subr.mxu0 0.0
    %2885 = vmatpush1.msra.mxu0 0.0
    %2886 = vmatprep.mubr.f32.mxu0 0.0
    %2887 = vmatmul.mubr.f32.gmra.mrb[0].mxu0 %v2743
    %v2888 = vpop.f32.mrb[0].mxu0
    %v2889 = vadd.f32 0.0, %v2888
    %v2890 = vpop.f32.mrb[0].mxu0
    %v2891 = vadd.f32 0.0, %v2890
    %2892 = vdwg.mxu0
    %2893 = vmatprep.subr.mxu0 %v78
    %2894 = vmatpush1.msra.mxu0 %v77
    %2895 = vmatprep.subr.mxu0 %v85
    %2896 = vmatpush1.msra.mxu0 %v84
    %2897 = vmatprep.subr.mxu0 %v92
    %2898 = vmatpush1.msra.mxu0 %v91
    %2899 = vmatprep.subr.mxu0 %v99
    %2900 = vmatpush1.msra.mxu0 %v98
    %2901 = vmatprep.subr.mxu0 %v106
    %2902 = vmatpush1.msra.mxu0 %v105
    %2903 = vmatprep.subr.mxu0 %v113
    %2904 = vmatpush1.msra.mxu0 %v112
    %2905 = vmatprep.subr.mxu0 %v120
    %2906 = vmatpush1.msra.mxu0 %v119
    %2907 = vmatprep.subr.mxu0 %v127
    %2908 = vmatpush1.msra.mxu0 %v126
    %2909 = vmatprep.subr.mxu0 %v134
    %2910 = vmatpush1.msra.mxu0 %v133
    %2911 = vmatprep.subr.mxu0 %v141
    %2912 = vmatpush1.msra.mxu0 %v140
    %2913 = vmatprep.subr.mxu0 %v148
    %2914 = vmatpush1.msra.mxu0 %v147
    %2915 = vmatprep.subr.mxu0 %v155
    %2916 = vmatpush1.msra.mxu0 %v154
    %2917 = vmatprep.subr.mxu0 %v162
    %2918 = vmatpush1.msra.mxu0 %v161
    %2919 = vmatprep.subr.mxu0 %v169
    %2920 = vmatpush1.msra.mxu0 %v168
    %2921 = vmatprep.subr.mxu0 %v176
    %2922 = vmatpush1.msra.mxu0 %v175
    %2923 = vmatprep.subr.mxu0 %v183
    %2924 = vmatpush1.msra.mxu0 %v182
    %2925 = vmatprep.subr.mxu0 0.0
    %2926 = vmatpush1.msra.mxu0 0.0
    %2927 = vmatprep.subr.mxu0 0.0
    %2928 = vmatpush1.msra.mxu0 0.0
    %2929 = vmatprep.subr.mxu0 0.0
    %2930 = vmatpush1.msra.mxu0 0.0
    %2931 = vmatprep.subr.mxu0 0.0
    %2932 = vmatpush1.msra.mxu0 0.0
    %2933 = vmatprep.subr.mxu0 0.0
    %2934 = vmatpush1.msra.mxu0 0.0
    %2935 = vmatprep.subr.mxu0 0.0
    %2936 = vmatpush1.msra.mxu0 0.0
    %2937 = vmatprep.subr.mxu0 0.0
    %2938 = vmatpush1.msra.mxu0 0.0
    %2939 = vmatprep.subr.mxu0 0.0
    %2940 = vmatpush1.msra.mxu0 0.0
    %2941 = vmatprep.subr.mxu0 0.0
    %2942 = vmatpush1.msra.mxu0 0.0
    %2943 = vmatprep.subr.mxu0 0.0
    %2944 = vmatpush1.msra.mxu0 0.0
    %2945 = vmatprep.subr.mxu0 0.0
    %2946 = vmatpush1.msra.mxu0 0.0
    %2947 = vmatprep.subr.mxu0 0.0
    %2948 = vmatpush1.msra.mxu0 0.0
    %2949 = vmatprep.subr.mxu0 0.0
    %2950 = vmatpush1.msra.mxu0 0.0
    %2951 = vmatprep.subr.mxu0 0.0
    %2952 = vmatpush1.msra.mxu0 0.0
    %2953 = vmatprep.subr.mxu0 0.0
    %2954 = vmatpush1.msra.mxu0 0.0
    %2955 = vmatprep.subr.mxu0 0.0
    %2956 = vmatpush1.msra.mxu0 0.0
    %2957 = vmatprep.mubr.f32.mxu0 0.0
    %2958 = vmatmul.mubr.f32.gmra.mrb[0].mxu0 %v2743
    %v2959 = vpop.f32.mrb[0].mxu0
    %v2960 = vadd.f32 0.0, %v2959
    %v2961 = vpop.f32.mrb[0].mxu0
    %v2962 = vadd.f32 0.0, %v2961
    %2963 = vdwg.mxu0
    %2964 = vmatprep.subr.mxu0 0.0
    %2965 = vmatpush1.msra.mxu0 %v79
    %2966 = vmatprep.subr.mxu0 0.0
    %2967 = vmatpush1.msra.mxu0 %v86
    %2968 = vmatprep.subr.mxu0 0.0
    %2969 = vmatpush1.msra.mxu0 %v93
    %2970 = vmatprep.subr.mxu0 0.0
    %2971 = vmatpush1.msra.mxu0 %v100
    %2972 = vmatprep.subr.mxu0 0.0
    %2973 = vmatpush1.msra.mxu0 %v107
    %2974 = vmatprep.subr.mxu0 0.0
    %2975 = vmatpush1.msra.mxu0 %v114
    %2976 = vmatprep.subr.mxu0 0.0
    %2977 = vmatpush1.msra.mxu0 %v121
    %2978 = vmatprep.subr.mxu0 0.0
    %2979 = vmatpush1.msra.mxu0 %v128
    %2980 = vmatprep.subr.mxu0 0.0
    %2981 = vmatpush1.msra.mxu0 %v135
    %2982 = vmatprep.subr.mxu0 0.0
    %2983 = vmatpush1.msra.mxu0 %v142
    %2984 = vmatprep.subr.mxu0 0.0
    %2985 = vmatpush1.msra.mxu0 %v149
    %2986 = vmatprep.subr.mxu0 0.0
    %2987 = vmatpush1.msra.mxu0 %v156
    %2988 = vmatprep.subr.mxu0 0.0
    %2989 = vmatpush1.msra.mxu0 %v163
    %2990 = vmatprep.subr.mxu0 0.0
    %2991 = vmatpush1.msra.mxu0 %v170
    %2992 = vmatprep.subr.mxu0 0.0
    %2993 = vmatpush1.msra.mxu0 %v177
    %2994 = vmatprep.subr.mxu0 0.0
    %2995 = vmatpush1.msra.mxu0 %v184
    %2996 = vmatprep.subr.mxu0 0.0
    %2997 = vmatpush1.msra.mxu0 0.0
    %2998 = vmatprep.subr.mxu0 0.0
    %2999 = vmatpush1.msra.mxu0 0.0
    %3000 = vmatprep.subr.mxu0 0.0
    %3001 = vmatpush1.msra.mxu0 0.0
    %3002 = vmatprep.subr.mxu0 0.0
    %3003 = vmatpush1.msra.mxu0 0.0
    %3004 = vmatprep.subr.mxu0 0.0
    %3005 = vmatpush1.msra.mxu0 0.0
    %3006 = vmatprep.subr.mxu0 0.0
    %3007 = vmatpush1.msra.mxu0 0.0
    %3008 = vmatprep.subr.mxu0 0.0
    %3009 = vmatpush1.msra.mxu0 0.0
    %3010 = vmatprep.subr.mxu0 0.0
    %3011 = vmatpush1.msra.mxu0 0.0
    %3012 = vmatprep.subr.mxu0 0.0
    %3013 = vmatpush1.msra.mxu0 0.0
    %3014 = vmatprep.subr.mxu0 0.0
    %3015 = vmatpush1.msra.mxu0 0.0
    %3016 = vmatprep.subr.mxu0 0.0
    %3017 = vmatpush1.msra.mxu0 0.0
    %3018 = vmatprep.subr.mxu0 0.0
    %3019 = vmatpush1.msra.mxu0 0.0
    %3020 = vmatprep.subr.mxu0 0.0
    %3021 = vmatpush1.msra.mxu0 0.0
    %3022 = vmatprep.subr.mxu0 0.0
    %3023 = vmatpush1.msra.mxu0 0.0
    %3024 = vmatprep.subr.mxu0 0.0
    %3025 = vmatpush1.msra.mxu0 0.0
    %3026 = vmatprep.subr.mxu0 0.0
    %3027 = vmatpush1.msra.mxu0 0.0
    %3028 = vmatprep.mubr.f32.mxu0 0.0
    %3029 = vmatmul.mubr.f32.gmra.mrb[0].mxu0 %v2743
    %v3030 = vpop.f32.mrb[0].mxu0
    %v3031 = vadd.f32 0.0, %v3030
    %v3032 = vpop.f32.mrb[0].mxu0
    %3033 = vdwg.mxu0
    %v3034 = vmul.f32 %v2750, %v473
    %v3035 = vmul.f32 %v2750, %v477
    %v3036 = vmul.f32 %v2750, %v481
    %v3037 = vmul.f32 %v2750, %v485
    %v3038 = vadd.f32 %v3034, %v499
    %v3039 = vadd.f32 %v3035, %v503
    %v3040 = vadd.f32 %v3036, %v507
    %v3041 = vadd.f32 %v3037, %v511
    %v3042 = vadd.f32 %v3038, %v2818
    %v3043 = vadd.f32 %v3039, %v2820
    %v3044 = vadd.f32 %v3040, %v2889
    %v3045 = vadd.f32 %v3041, %v2891
    %v3046 = vxor.u32 %v3042, 2147483648
    %v3047 = vmul.f32 %v3046, 1.442695
    %v3048 = vpow.pop %v3047
    %v3049 = vadd.f32 %v3048, 1.0
    %v3050 = vrcp.pop %v3049
    %v3051 = vmul.f32 1.0, %v3050
    %v3052 = vxor.u32 %v3043, 2147483648
    %v3053 = vmul.f32 %v3052, 1.442695
    %v3054 = vpow.pop %v3053
    %v3055 = vadd.f32 %v3054, 1.0
    %v3056 = vrcp.pop %v3055
    %v3057 = vmul.f32 1.0, %v3056
    %v3058 = vtanh.pop %v3044
    %v3059 = vxor.u32 %v3045, 2147483648
    %v3060 = vmul.f32 %v3059, 1.442695
    %v3061 = vpow.pop %v3060
    %v3062 = vadd.f32 %v3061, 1.0
    %v3063 = vrcp.pop %v3062
    %v3064 = vmul.f32 1.0, %v3063
    %v3065 = vmul.f32 %v3057, %v2577
    %v3066 = vmul.f32 %v3051, %v3058
    %v3067 = vadd.f32 %v3065, %v3066
    %v3068 = vtanh.pop %v3067
    %v3069 = vmul.f32 %v3064, %v3068
    %3070 = vmatprep.subr.mxu0 %v549
    %3071 = vmatpush1.msra.mxu0 %v548
    %3072 = vmatprep.subr.mxu0 %v552
    %3073 = vmatpush1.msra.mxu0 %v551
    %3074 = vmatprep.subr.mxu0 %v555
    %3075 = vmatpush1.msra.mxu0 %v554
    %3076 = vmatprep.subr.mxu0 %v558
    %3077 = vmatpush1.msra.mxu0 %v557
    %3078 = vmatprep.subr.mxu0 %v561
    %3079 = vmatpush1.msra.mxu0 %v560
    %3080 = vmatprep.subr.mxu0 %v564
    %3081 = vmatpush1.msra.mxu0 %v563
    %3082 = vmatprep.subr.mxu0 %v567
    %3083 = vmatpush1.msra.mxu0 %v566
    %3084 = vmatprep.subr.mxu0 %v570
    %3085 = vmatpush1.msra.mxu0 %v569
    %3086 = vmatprep.subr.mxu0 %v573
    %3087 = vmatpush1.msra.mxu0 %v572
    %3088 = vmatprep.subr.mxu0 %v576
    %3089 = vmatpush1.msra.mxu0 %v575
    %3090 = vmatprep.subr.mxu0 %v579
    %3091 = vmatpush1.msra.mxu0 %v578
    %3092 = vmatprep.subr.mxu0 %v582
    %3093 = vmatpush1.msra.mxu0 %v581
    %3094 = vmatprep.subr.mxu0 %v585
    %3095 = vmatpush1.msra.mxu0 %v584
    %3096 = vmatprep.subr.mxu0 %v588
    %3097 = vmatpush1.msra.mxu0 %v587
    %3098 = vmatprep.subr.mxu0 %v591
    %3099 = vmatpush1.msra.mxu0 %v590
    %3100 = vmatprep.subr.mxu0 %v594
    %3101 = vmatpush1.msra.mxu0 %v593
    %3102 = vmatprep.subr.mxu0 0.0
    %3103 = vmatpush1.msra.mxu0 0.0
    %3104 = vmatprep.subr.mxu0 0.0
    %3105 = vmatpush1.msra.mxu0 0.0
    %3106 = vmatprep.subr.mxu0 0.0
    %3107 = vmatpush1.msra.mxu0 0.0
    %3108 = vmatprep.subr.mxu0 0.0
    %3109 = vmatpush1.msra.mxu0 0.0
    %3110 = vmatprep.subr.mxu0 0.0
    %3111 = vmatpush1.msra.mxu0 0.0
    %3112 = vmatprep.subr.mxu0 0.0
    %3113 = vmatpush1.msra.mxu0 0.0
    %3114 = vmatprep.subr.mxu0 0.0
    %3115 = vmatpush1.msra.mxu0 0.0
    %3116 = vmatprep.subr.mxu0 0.0
    %3117 = vmatpush1.msra.mxu0 0.0
    %3118 = vmatprep.subr.mxu0 0.0
    %3119 = vmatpush1.msra.mxu0 0.0
    %3120 = vmatprep.subr.mxu0 0.0
    %3121 = vmatpush1.msra.mxu0 0.0
    %3122 = vmatprep.subr.mxu0 0.0
    %3123 = vmatpush1.msra.mxu0 0.0
    %3124 = vmatprep.subr.mxu0 0.0
    %3125 = vmatpush1.msra.mxu0 0.0
    %3126 = vmatprep.subr.mxu0 0.0
    %3127 = vmatpush1.msra.mxu0 0.0
    %3128 = vmatprep.subr.mxu0 0.0
    %3129 = vmatpush1.msra.mxu0 0.0
    %3130 = vmatprep.subr.mxu0 0.0
    %3131 = vmatpush1.msra.mxu0 0.0
    %3132 = vmatprep.subr.mxu0 0.0
    %3133 = vmatpush1.msra.mxu0 0.0
    %3134 = vmatprep.mubr.f32.mxu0 0.0
    %3135 = vmatmul.mubr.f32.gmra.mrb[0].mxu0 %v3069
    %v3136 = vpop.f32.mrb[0].mxu0
    %v3137 = vadd.f32 %v601, %v3136
    %v3138 = vpop.f32.mrb[0].mxu0
    %v3139 = vadd.f32 %v605, %v3138
    %3140 = vdwg.mxu0
    %3141 = vmatprep.subr.mxu0 0.0
    %3142 = vmatpush1.msra.mxu0 %v550
    %3143 = vmatprep.subr.mxu0 0.0
    %3144 = vmatpush1.msra.mxu0 %v553
    %3145 = vmatprep.subr.mxu0 0.0
    %3146 = vmatpush1.msra.mxu0 %v556
    %3147 = vmatprep.subr.mxu0 0.0
    %3148 = vmatpush1.msra.mxu0 %v559
    %3149 = vmatprep.subr.mxu0 0.0
    %3150 = vmatpush1.msra.mxu0 %v562
    %3151 = vmatprep.subr.mxu0 0.0
    %3152 = vmatpush1.msra.mxu0 %v565
    %3153 = vmatprep.subr.mxu0 0.0
    %3154 = vmatpush1.msra.mxu0 %v568
    %3155 = vmatprep.subr.mxu0 0.0
    %3156 = vmatpush1.msra.mxu0 %v571
    %3157 = vmatprep.subr.mxu0 0.0
    %3158 = vmatpush1.msra.mxu0 %v574
    %3159 = vmatprep.subr.mxu0 0.0
    %3160 = vmatpush1.msra.mxu0 %v577
    %3161 = vmatprep.subr.mxu0 0.0
    %3162 = vmatpush1.msra.mxu0 %v580
    %3163 = vmatprep.subr.mxu0 0.0
    %3164 = vmatpush1.msra.mxu0 %v583
    %3165 = vmatprep.subr.mxu0 0.0
    %3166 = vmatpush1.msra.mxu0 %v586
    %3167 = vmatprep.subr.mxu0 0.0
    %3168 = vmatpush1.msra.mxu0 %v589
    %3169 = vmatprep.subr.mxu0 0.0
    %3170 = vmatpush1.msra.mxu0 %v592
    %3171 = vmatprep.subr.mxu0 0.0
    %3172 = vmatpush1.msra.mxu0 %v595
    %3173 = vmatprep.subr.mxu0 0.0
    %3174 = vmatpush1.msra.mxu0 0.0
    %3175 = vmatprep.subr.mxu0 0.0
    %3176 = vmatpush1.msra.mxu0 0.0
    %3177 = vmatprep.subr.mxu0 0.0
    %3178 = vmatpush1.msra.mxu0 0.0
    %3179 = vmatprep.subr.mxu0 0.0
    %3180 = vmatpush1.msra.mxu0 0.0
    %3181 = vmatprep.subr.mxu0 0.0
    %3182 = vmatpush1.msra.mxu0 0.0
    %3183 = vmatprep.subr.mxu0 0.0
    %3184 = vmatpush1.msra.mxu0 0.0
    %3185 = vmatprep.subr.mxu0 0.0
    %3186 = vmatpush1.msra.mxu0 0.0
    %3187 = vmatprep.subr.mxu0 0.0
    %3188 = vmatpush1.msra.mxu0 0.0
    %3189 = vmatprep.subr.mxu0 0.0
    %3190 = vmatpush1.msra.mxu0 0.0
    %3191 = vmatprep.subr.mxu0 0.0
    %3192 = vmatpush1.msra.mxu0 0.0
    %3193 = vmatprep.subr.mxu0 0.0
    %3194 = vmatpush1.msra.mxu0 0.0
    %3195 = vmatprep.subr.mxu0 0.0
    %3196 = vmatpush1.msra.mxu0 0.0
    %3197 = vmatprep.subr.mxu0 0.0
    %3198 = vmatpush1.msra.mxu0 0.0
    %3199 = vmatprep.subr.mxu0 0.0
    %3200 = vmatpush1.msra.mxu0 0.0
    %3201 = vmatprep.subr.mxu0 0.0
    %3202 = vmatpush1.msra.mxu0 0.0
    %3203 = vmatprep.subr.mxu0 0.0
    %3204 = vmatpush1.msra.mxu0 0.0
    %3205 = vmatprep.mubr.f32.mxu0 0.0
    %3206 = vmatmul.mubr.f32.gmra.mrb[0].mxu0 %v3069
    %v3207 = vpop.f32.mrb[0].mxu0
    %v3208 = vadd.f32 %v609, %v3207
    %v3209 = vpop.f32.mrb[0].mxu0
    %3210 = vdwg.mxu0
    %v3211 = vadd.f32 %v3137, %v2960
    %v3212 = vxor.u32 %v3211, 2147483648
    %v3213 = vmul.f32 %v3212, 1.442695
    %v3214 = vpow.pop %v3213
    %v3215 = vadd.f32 %v3214, 1.0
    %v3216 = vrcp.pop %v3215
    %v3217 = vmul.f32 1.0, %v3216
    %v3218 = vadd.f32 %v3139, %v2962
    %v3219 = vxor.u32 %v3218, 2147483648
    %v3220 = vmul.f32 %v3219, 1.442695
    %v3221 = vpow.pop %v3220
    %v3222 = vadd.f32 %v3221, 1.0
    %v3223 = vrcp.pop %v3222
    %v3224 = vmul.f32 1.0, %v3223
    %v3225 = vadd.f32 %v3031, %v773
    %v3226 = vmul.f32 %v3217, %v3225
    %v3227 = vadd.f32 %v3208, %v3226
    %v3228 = vtanh.pop %v3227
    %v3229 = vsub.f32 1.0, %v3224
    %v3230 = vmul.f32 %v3229, %v3228
    %v3231 = vmul.f32 %v3224, %v2742
    %v3232 = vadd.f32 %v3230, %v3231
    %v3233 = vadd.f32 %v3069, %v3232
    %vm3234 = vcmp.eq.s32.totalorder %v64, 6
    %v3235 = vsel %vm3234, 1, 0
    %vm3236 = vcmp.eq.s32.totalorder %v3235, 1
    %v3237 = vsel %vm3236, %v62, 0.0
    %v3238 = vsel %vm69, %v3237, 0.0
    %3239 = vadd.xlane.f32.xlu0 %v3238
    %v3240 = vpop.xlane.xlu0 %3239
    %3241 = vmatprep.subr.mxu0 %v74
    %3242 = vmatpush1.msra.mxu0 %v73
    %3243 = vmatprep.subr.mxu0 %v81
    %3244 = vmatpush1.msra.mxu0 %v80
    %3245 = vmatprep.subr.mxu0 %v88
    %3246 = vmatpush1.msra.mxu0 %v87
    %3247 = vmatprep.subr.mxu0 %v95
    %3248 = vmatpush1.msra.mxu0 %v94
    %3249 = vmatprep.subr.mxu0 %v102
    %3250 = vmatpush1.msra.mxu0 %v101
    %3251 = vmatprep.subr.mxu0 %v109
    %3252 = vmatpush1.msra.mxu0 %v108
    %3253 = vmatprep.subr.mxu0 %v116
    %3254 = vmatpush1.msra.mxu0 %v115
    %3255 = vmatprep.subr.mxu0 %v123
    %3256 = vmatpush1.msra.mxu0 %v122
    %3257 = vmatprep.subr.mxu0 %v130
    %3258 = vmatpush1.msra.mxu0 %v129
    %3259 = vmatprep.subr.mxu0 %v137
    %3260 = vmatpush1.msra.mxu0 %v136
    %3261 = vmatprep.subr.mxu0 %v144
    %3262 = vmatpush1.msra.mxu0 %v143
    %3263 = vmatprep.subr.mxu0 %v151
    %3264 = vmatpush1.msra.mxu0 %v150
    %3265 = vmatprep.subr.mxu0 %v158
    %3266 = vmatpush1.msra.mxu0 %v157
    %3267 = vmatprep.subr.mxu0 %v165
    %3268 = vmatpush1.msra.mxu0 %v164
    %3269 = vmatprep.subr.mxu0 %v172
    %3270 = vmatpush1.msra.mxu0 %v171
    %3271 = vmatprep.subr.mxu0 %v179
    %3272 = vmatpush1.msra.mxu0 %v178
    %3273 = vmatprep.subr.mxu0 0.0
    %3274 = vmatpush1.msra.mxu0 0.0
    %3275 = vmatprep.subr.mxu0 0.0
    %3276 = vmatpush1.msra.mxu0 0.0
    %3277 = vmatprep.subr.mxu0 0.0
    %3278 = vmatpush1.msra.mxu0 0.0
    %3279 = vmatprep.subr.mxu0 0.0
    %3280 = vmatpush1.msra.mxu0 0.0
    %3281 = vmatprep.subr.mxu0 0.0
    %3282 = vmatpush1.msra.mxu0 0.0
    %3283 = vmatprep.subr.mxu0 0.0
    %3284 = vmatpush1.msra.mxu0 0.0
    %3285 = vmatprep.subr.mxu0 0.0
    %3286 = vmatpush1.msra.mxu0 0.0
    %3287 = vmatprep.subr.mxu0 0.0
    %3288 = vmatpush1.msra.mxu0 0.0
    %3289 = vmatprep.subr.mxu0 0.0
    %3290 = vmatpush1.msra.mxu0 0.0
    %3291 = vmatprep.subr.mxu0 0.0
    %3292 = vmatpush1.msra.mxu0 0.0
    %3293 = vmatprep.subr.mxu0 0.0
    %3294 = vmatpush1.msra.mxu0 0.0
    %3295 = vmatprep.subr.mxu0 0.0
    %3296 = vmatpush1.msra.mxu0 0.0
    %3297 = vmatprep.subr.mxu0 0.0
    %3298 = vmatpush1.msra.mxu0 0.0
    %3299 = vmatprep.subr.mxu0 0.0
    %3300 = vmatpush1.msra.mxu0 0.0
    %3301 = vmatprep.subr.mxu0 0.0
    %3302 = vmatpush1.msra.mxu0 0.0
    %3303 = vmatprep.subr.mxu0 0.0
    %3304 = vmatpush1.msra.mxu0 0.0
    %3305 = vmatprep.mubr.f32.mxu0 0.0
    %3306 = vmatmul.mubr.f32.gmra.mrb[0].mxu0 %v3233
    %v3307 = vpop.f32.mrb[0].mxu0
    %v3308 = vadd.f32 0.0, %v3307
    %v3309 = vpop.f32.mrb[0].mxu0
    %v3310 = vadd.f32 0.0, %v3309
    %3311 = vdwg.mxu0
    %3312 = vmatprep.subr.mxu0 %v76
    %3313 = vmatpush1.msra.mxu0 %v75
    %3314 = vmatprep.subr.mxu0 %v83
    %3315 = vmatpush1.msra.mxu0 %v82
    %3316 = vmatprep.subr.mxu0 %v90
    %3317 = vmatpush1.msra.mxu0 %v89
    %3318 = vmatprep.subr.mxu0 %v97
    %3319 = vmatpush1.msra.mxu0 %v96
    %3320 = vmatprep.subr.mxu0 %v104
    %3321 = vmatpush1.msra.mxu0 %v103
    %3322 = vmatprep.subr.mxu0 %v111
    %3323 = vmatpush1.msra.mxu0 %v110
    %3324 = vmatprep.subr.mxu0 %v118
    %3325 = vmatpush1.msra.mxu0 %v117
    %3326 = vmatprep.subr.mxu0 %v125
    %3327 = vmatpush1.msra.mxu0 %v124
    %3328 = vmatprep.subr.mxu0 %v132
    %3329 = vmatpush1.msra.mxu0 %v131
    %3330 = vmatprep.subr.mxu0 %v139
    %3331 = vmatpush1.msra.mxu0 %v138
    %3332 = vmatprep.subr.mxu0 %v146
    %3333 = vmatpush1.msra.mxu0 %v145
    %3334 = vmatprep.subr.mxu0 %v153
    %3335 = vmatpush1.msra.mxu0 %v152
    %3336 = vmatprep.subr.mxu0 %v160
    %3337 = vmatpush1.msra.mxu0 %v159
    %3338 = vmatprep.subr.mxu0 %v167
    %3339 = vmatpush1.msra.mxu0 %v166
    %3340 = vmatprep.subr.mxu0 %v174
    %3341 = vmatpush1.msra.mxu0 %v173
    %3342 = vmatprep.subr.mxu0 %v181
    %3343 = vmatpush1.msra.mxu0 %v180
    %3344 = vmatprep.subr.mxu0 0.0
    %3345 = vmatpush1.msra.mxu0 0.0
    %3346 = vmatprep.subr.mxu0 0.0
    %3347 = vmatpush1.msra.mxu0 0.0
    %3348 = vmatprep.subr.mxu0 0.0
    %3349 = vmatpush1.msra.mxu0 0.0
    %3350 = vmatprep.subr.mxu0 0.0
    %3351 = vmatpush1.msra.mxu0 0.0
    %3352 = vmatprep.subr.mxu0 0.0
    %3353 = vmatpush1.msra.mxu0 0.0
    %3354 = vmatprep.subr.mxu0 0.0
    %3355 = vmatpush1.msra.mxu0 0.0
    %3356 = vmatprep.subr.mxu0 0.0
    %3357 = vmatpush1.msra.mxu0 0.0
    %3358 = vmatprep.subr.mxu0 0.0
    %3359 = vmatpush1.msra.mxu0 0.0
    %3360 = vmatprep.subr.mxu0 0.0
    %3361 = vmatpush1.msra.mxu0 0.0
    %3362 = vmatprep.subr.mxu0 0.0
    %3363 = vmatpush1.msra.mxu0 0.0
    %3364 = vmatprep.subr.mxu0 0.0
    %3365 = vmatpush1.msra.mxu0 0.0
    %3366 = vmatprep.subr.mxu0 0.0
    %3367 = vmatpush1.msra.mxu0 0.0
    %3368 = vmatprep.subr.mxu0 0.0
    %3369 = vmatpush1.msra.mxu0 0.0
    %3370 = vmatprep.subr.mxu0 0.0
    %3371 = vmatpush1.msra.mxu0 0.0
    %3372 = vmatprep.subr.mxu0 0.0
    %3373 = vmatpush1.msra.mxu0 0.0
    %3374 = vmatprep.subr.mxu0 0.0
    %3375 = vmatpush1.msra.mxu0 0.0
    %3376 = vmatprep.mubr.f32.mxu0 0.0
    %3377 = vmatmul.mubr.f32.gmra.mrb[0].mxu0 %v3233
    %v3378 = vpop.f32.mrb[0].mxu0
    %v3379 = vadd.f32 0.0, %v3378
    %v3380 = vpop.f32.mrb[0].mxu0
    %v3381 = vadd.f32 0.0, %v3380
    %3382 = vdwg.mxu0
    %3383 = vmatprep.subr.mxu0 %v78
    %3384 = vmatpush1.msra.mxu0 %v77
    %3385 = vmatprep.subr.mxu0 %v85
    %3386 = vmatpush1.msra.mxu0 %v84
    %3387 = vmatprep.subr.mxu0 %v92
    %3388 = vmatpush1.msra.mxu0 %v91
    %3389 = vmatprep.subr.mxu0 %v99
    %3390 = vmatpush1.msra.mxu0 %v98
    %3391 = vmatprep.subr.mxu0 %v106
    %3392 = vmatpush1.msra.mxu0 %v105
    %3393 = vmatprep.subr.mxu0 %v113
    %3394 = vmatpush1.msra.mxu0 %v112
    %3395 = vmatprep.subr.mxu0 %v120
    %3396 = vmatpush1.msra.mxu0 %v119
    %3397 = vmatprep.subr.mxu0 %v127
    %3398 = vmatpush1.msra.mxu0 %v126
    %3399 = vmatprep.subr.mxu0 %v134
    %3400 = vmatpush1.msra.mxu0 %v133
    %3401 = vmatprep.subr.mxu0 %v141
    %3402 = vmatpush1.msra.mxu0 %v140
    %3403 = vmatprep.subr.mxu0 %v148
    %3404 = vmatpush1.msra.mxu0 %v147
    %3405 = vmatprep.subr.mxu0 %v155
    %3406 = vmatpush1.msra.mxu0 %v154
    %3407 = vmatprep.subr.mxu0 %v162
    %3408 = vmatpush1.msra.mxu0 %v161
    %3409 = vmatprep.subr.mxu0 %v169
    %3410 = vmatpush1.msra.mxu0 %v168
    %3411 = vmatprep.subr.mxu0 %v176
    %3412 = vmatpush1.msra.mxu0 %v175
    %3413 = vmatprep.subr.mxu0 %v183
    %3414 = vmatpush1.msra.mxu0 %v182
    %3415 = vmatprep.subr.mxu0 0.0
    %3416 = vmatpush1.msra.mxu0 0.0
    %3417 = vmatprep.subr.mxu0 0.0
    %3418 = vmatpush1.msra.mxu0 0.0
    %3419 = vmatprep.subr.mxu0 0.0
    %3420 = vmatpush1.msra.mxu0 0.0
    %3421 = vmatprep.subr.mxu0 0.0
    %3422 = vmatpush1.msra.mxu0 0.0
    %3423 = vmatprep.subr.mxu0 0.0
    %3424 = vmatpush1.msra.mxu0 0.0
    %3425 = vmatprep.subr.mxu0 0.0
    %3426 = vmatpush1.msra.mxu0 0.0
    %3427 = vmatprep.subr.mxu0 0.0
    %3428 = vmatpush1.msra.mxu0 0.0
    %3429 = vmatprep.subr.mxu0 0.0
    %3430 = vmatpush1.msra.mxu0 0.0
    %3431 = vmatprep.subr.mxu0 0.0
    %3432 = vmatpush1.msra.mxu0 0.0
    %3433 = vmatprep.subr.mxu0 0.0
    %3434 = vmatpush1.msra.mxu0 0.0
    %3435 = vmatprep.subr.mxu0 0.0
    %3436 = vmatpush1.msra.mxu0 0.0
    %3437 = vmatprep.subr.mxu0 0.0
    %3438 = vmatpush1.msra.mxu0 0.0
    %3439 = vmatprep.subr.mxu0 0.0
    %3440 = vmatpush1.msra.mxu0 0.0
    %3441 = vmatprep.subr.mxu0 0.0
    %3442 = vmatpush1.msra.mxu0 0.0
    %3443 = vmatprep.subr.mxu0 0.0
    %3444 = vmatpush1.msra.mxu0 0.0
    %3445 = vmatprep.subr.mxu0 0.0
    %3446 = vmatpush1.msra.mxu0 0.0
    %3447 = vmatprep.mubr.f32.mxu0 0.0
    %3448 = vmatmul.mubr.f32.gmra.mrb[0].mxu0 %v3233
    %v3449 = vpop.f32.mrb[0].mxu0
    %v3450 = vadd.f32 0.0, %v3449
    %v3451 = vpop.f32.mrb[0].mxu0
    %v3452 = vadd.f32 0.0, %v3451
    %3453 = vdwg.mxu0
    %3454 = vmatprep.subr.mxu0 0.0
    %3455 = vmatpush1.msra.mxu0 %v79
    %3456 = vmatprep.subr.mxu0 0.0
    %3457 = vmatpush1.msra.mxu0 %v86
    %3458 = vmatprep.subr.mxu0 0.0
    %3459 = vmatpush1.msra.mxu0 %v93
    %3460 = vmatprep.subr.mxu0 0.0
    %3461 = vmatpush1.msra.mxu0 %v100
    %3462 = vmatprep.subr.mxu0 0.0
    %3463 = vmatpush1.msra.mxu0 %v107
    %3464 = vmatprep.subr.mxu0 0.0
    %3465 = vmatpush1.msra.mxu0 %v114
    %3466 = vmatprep.subr.mxu0 0.0
    %3467 = vmatpush1.msra.mxu0 %v121
    %3468 = vmatprep.subr.mxu0 0.0
    %3469 = vmatpush1.msra.mxu0 %v128
    %3470 = vmatprep.subr.mxu0 0.0
    %3471 = vmatpush1.msra.mxu0 %v135
    %3472 = vmatprep.subr.mxu0 0.0
    %3473 = vmatpush1.msra.mxu0 %v142
    %3474 = vmatprep.subr.mxu0 0.0
    %3475 = vmatpush1.msra.mxu0 %v149
    %3476 = vmatprep.subr.mxu0 0.0
    %3477 = vmatpush1.msra.mxu0 %v156
    %3478 = vmatprep.subr.mxu0 0.0
    %3479 = vmatpush1.msra.mxu0 %v163
    %3480 = vmatprep.subr.mxu0 0.0
    %3481 = vmatpush1.msra.mxu0 %v170
    %3482 = vmatprep.subr.mxu0 0.0
    %3483 = vmatpush1.msra.mxu0 %v177
    %3484 = vmatprep.subr.mxu0 0.0
    %3485 = vmatpush1.msra.mxu0 %v184
    %3486 = vmatprep.subr.mxu0 0.0
    %3487 = vmatpush1.msra.mxu0 0.0
    %3488 = vmatprep.subr.mxu0 0.0
    %3489 = vmatpush1.msra.mxu0 0.0
    %3490 = vmatprep.subr.mxu0 0.0
    %3491 = vmatpush1.msra.mxu0 0.0
    %3492 = vmatprep.subr.mxu0 0.0
    %3493 = vmatpush1.msra.mxu0 0.0
    %3494 = vmatprep.subr.mxu0 0.0
    %3495 = vmatpush1.msra.mxu0 0.0
    %3496 = vmatprep.subr.mxu0 0.0
    %3497 = vmatpush1.msra.mxu0 0.0
    %3498 = vmatprep.subr.mxu0 0.0
    %3499 = vmatpush1.msra.mxu0 0.0
    %3500 = vmatprep.subr.mxu0 0.0
    %3501 = vmatpush1.msra.mxu0 0.0
    %3502 = vmatprep.subr.mxu0 0.0
    %3503 = vmatpush1.msra.mxu0 0.0
    %3504 = vmatprep.subr.mxu0 0.0
    %3505 = vmatpush1.msra.mxu0 0.0
    %3506 = vmatprep.subr.mxu0 0.0
    %3507 = vmatpush1.msra.mxu0 0.0
    %3508 = vmatprep.subr.mxu0 0.0
    %3509 = vmatpush1.msra.mxu0 0.0
    %3510 = vmatprep.subr.mxu0 0.0
    %3511 = vmatpush1.msra.mxu0 0.0
    %3512 = vmatprep.subr.mxu0 0.0
    %3513 = vmatpush1.msra.mxu0 0.0
    %3514 = vmatprep.subr.mxu0 0.0
    %3515 = vmatpush1.msra.mxu0 0.0
    %3516 = vmatprep.subr.mxu0 0.0
    %3517 = vmatpush1.msra.mxu0 0.0
    %3518 = vmatprep.mubr.f32.mxu0 0.0
    %3519 = vmatmul.mubr.f32.gmra.mrb[0].mxu0 %v3233
    %v3520 = vpop.f32.mrb[0].mxu0
    %v3521 = vadd.f32 0.0, %v3520
    %v3522 = vpop.f32.mrb[0].mxu0
    %3523 = vdwg.mxu0
    %v3524 = vmul.f32 %v3240, %v473
    %v3525 = vmul.f32 %v3240, %v477
    %v3526 = vmul.f32 %v3240, %v481
    %v3527 = vmul.f32 %v3240, %v485
    %v3528 = vadd.f32 %v3524, %v499
    %v3529 = vadd.f32 %v3525, %v503
    %v3530 = vadd.f32 %v3526, %v507
    %v3531 = vadd.f32 %v3527, %v511
    %v3532 = vadd.f32 %v3528, %v3308
    %v3533 = vadd.f32 %v3529, %v3310
    %v3534 = vadd.f32 %v3530, %v3379
    %v3535 = vadd.f32 %v3531, %v3381
    %v3536 = vxor.u32 %v3532, 2147483648
    %v3537 = vmul.f32 %v3536, 1.442695
    %v3538 = vpow.pop %v3537
    %v3539 = vadd.f32 %v3538, 1.0
    %v3540 = vrcp.pop %v3539
    %v3541 = vmul.f32 1.0, %v3540
    %v3542 = vxor.u32 %v3533, 2147483648
    %v3543 = vmul.f32 %v3542, 1.442695
    %v3544 = vpow.pop %v3543
    %v3545 = vadd.f32 %v3544, 1.0
    %v3546 = vrcp.pop %v3545
    %v3547 = vmul.f32 1.0, %v3546
    %v3548 = vtanh.pop %v3534
    %v3549 = vxor.u32 %v3535, 2147483648
    %v3550 = vmul.f32 %v3549, 1.442695
    %v3551 = vpow.pop %v3550
    %v3552 = vadd.f32 %v3551, 1.0
    %v3553 = vrcp.pop %v3552
    %v3554 = vmul.f32 1.0, %v3553
    %v3555 = vmul.f32 %v3547, %v3067
    %v3556 = vmul.f32 %v3541, %v3548
    %v3557 = vadd.f32 %v3555, %v3556
    %v3558 = vtanh.pop %v3557
    %v3559 = vmul.f32 %v3554, %v3558
    %3560 = vmatprep.subr.mxu0 %v549
    %3561 = vmatpush1.msra.mxu0 %v548
    %3562 = vmatprep.subr.mxu0 %v552
    %3563 = vmatpush1.msra.mxu0 %v551
    %3564 = vmatprep.subr.mxu0 %v555
    %3565 = vmatpush1.msra.mxu0 %v554
    %3566 = vmatprep.subr.mxu0 %v558
    %3567 = vmatpush1.msra.mxu0 %v557
    %3568 = vmatprep.subr.mxu0 %v561
    %3569 = vmatpush1.msra.mxu0 %v560
    %3570 = vmatprep.subr.mxu0 %v564
    %3571 = vmatpush1.msra.mxu0 %v563
    %3572 = vmatprep.subr.mxu0 %v567
    %3573 = vmatpush1.msra.mxu0 %v566
    %3574 = vmatprep.subr.mxu0 %v570
    %3575 = vmatpush1.msra.mxu0 %v569
    %3576 = vmatprep.subr.mxu0 %v573
    %3577 = vmatpush1.msra.mxu0 %v572
    %3578 = vmatprep.subr.mxu0 %v576
    %3579 = vmatpush1.msra.mxu0 %v575
    %3580 = vmatprep.subr.mxu0 %v579
    %3581 = vmatpush1.msra.mxu0 %v578
    %3582 = vmatprep.subr.mxu0 %v582
    %3583 = vmatpush1.msra.mxu0 %v581
    %3584 = vmatprep.subr.mxu0 %v585
    %3585 = vmatpush1.msra.mxu0 %v584
    %3586 = vmatprep.subr.mxu0 %v588
    %3587 = vmatpush1.msra.mxu0 %v587
    %3588 = vmatprep.subr.mxu0 %v591
    %3589 = vmatpush1.msra.mxu0 %v590
    %3590 = vmatprep.subr.mxu0 %v594
    %3591 = vmatpush1.msra.mxu0 %v593
    %3592 = vmatprep.subr.mxu0 0.0
    %3593 = vmatpush1.msra.mxu0 0.0
    %3594 = vmatprep.subr.mxu0 0.0
    %3595 = vmatpush1.msra.mxu0 0.0
    %3596 = vmatprep.subr.mxu0 0.0
    %3597 = vmatpush1.msra.mxu0 0.0
    %3598 = vmatprep.subr.mxu0 0.0
    %3599 = vmatpush1.msra.mxu0 0.0
    %3600 = vmatprep.subr.mxu0 0.0
    %3601 = vmatpush1.msra.mxu0 0.0
    %3602 = vmatprep.subr.mxu0 0.0
    %3603 = vmatpush1.msra.mxu0 0.0
    %3604 = vmatprep.subr.mxu0 0.0
    %3605 = vmatpush1.msra.mxu0 0.0
    %3606 = vmatprep.subr.mxu0 0.0
    %3607 = vmatpush1.msra.mxu0 0.0
    %3608 = vmatprep.subr.mxu0 0.0
    %3609 = vmatpush1.msra.mxu0 0.0
    %3610 = vmatprep.subr.mxu0 0.0
    %3611 = vmatpush1.msra.mxu0 0.0
    %3612 = vmatprep.subr.mxu0 0.0
    %3613 = vmatpush1.msra.mxu0 0.0
    %3614 = vmatprep.subr.mxu0 0.0
    %3615 = vmatpush1.msra.mxu0 0.0
    %3616 = vmatprep.subr.mxu0 0.0
    %3617 = vmatpush1.msra.mxu0 0.0
    %3618 = vmatprep.subr.mxu0 0.0
    %3619 = vmatpush1.msra.mxu0 0.0
    %3620 = vmatprep.subr.mxu0 0.0
    %3621 = vmatpush1.msra.mxu0 0.0
    %3622 = vmatprep.subr.mxu0 0.0
    %3623 = vmatpush1.msra.mxu0 0.0
    %3624 = vmatprep.mubr.f32.mxu0 0.0
    %3625 = vmatmul.mubr.f32.gmra.mrb[0].mxu0 %v3559
    %v3626 = vpop.f32.mrb[0].mxu0
    %v3627 = vadd.f32 %v601, %v3626
    %v3628 = vpop.f32.mrb[0].mxu0
    %v3629 = vadd.f32 %v605, %v3628
    %3630 = vdwg.mxu0
    %3631 = vmatprep.subr.mxu0 0.0
    %3632 = vmatpush1.msra.mxu0 %v550
    %3633 = vmatprep.subr.mxu0 0.0
    %3634 = vmatpush1.msra.mxu0 %v553
    %3635 = vmatprep.subr.mxu0 0.0
    %3636 = vmatpush1.msra.mxu0 %v556
    %3637 = vmatprep.subr.mxu0 0.0
    %3638 = vmatpush1.msra.mxu0 %v559
    %3639 = vmatprep.subr.mxu0 0.0
    %3640 = vmatpush1.msra.mxu0 %v562
    %3641 = vmatprep.subr.mxu0 0.0
    %3642 = vmatpush1.msra.mxu0 %v565
    %3643 = vmatprep.subr.mxu0 0.0
    %3644 = vmatpush1.msra.mxu0 %v568
    %3645 = vmatprep.subr.mxu0 0.0
    %3646 = vmatpush1.msra.mxu0 %v571
    %3647 = vmatprep.subr.mxu0 0.0
    %3648 = vmatpush1.msra.mxu0 %v574
    %3649 = vmatprep.subr.mxu0 0.0
    %3650 = vmatpush1.msra.mxu0 %v577
    %3651 = vmatprep.subr.mxu0 0.0
    %3652 = vmatpush1.msra.mxu0 %v580
    %3653 = vmatprep.subr.mxu0 0.0
    %3654 = vmatpush1.msra.mxu0 %v583
    %3655 = vmatprep.subr.mxu0 0.0
    %3656 = vmatpush1.msra.mxu0 %v586
    %3657 = vmatprep.subr.mxu0 0.0
    %3658 = vmatpush1.msra.mxu0 %v589
    %3659 = vmatprep.subr.mxu0 0.0
    %3660 = vmatpush1.msra.mxu0 %v592
    %3661 = vmatprep.subr.mxu0 0.0
    %3662 = vmatpush1.msra.mxu0 %v595
    %3663 = vmatprep.subr.mxu0 0.0
    %3664 = vmatpush1.msra.mxu0 0.0
    %3665 = vmatprep.subr.mxu0 0.0
    %3666 = vmatpush1.msra.mxu0 0.0
    %3667 = vmatprep.subr.mxu0 0.0
    %3668 = vmatpush1.msra.mxu0 0.0
    %3669 = vmatprep.subr.mxu0 0.0
    %3670 = vmatpush1.msra.mxu0 0.0
    %3671 = vmatprep.subr.mxu0 0.0
    %3672 = vmatpush1.msra.mxu0 0.0
    %3673 = vmatprep.subr.mxu0 0.0
    %3674 = vmatpush1.msra.mxu0 0.0
    %3675 = vmatprep.subr.mxu0 0.0
    %3676 = vmatpush1.msra.mxu0 0.0
    %3677 = vmatprep.subr.mxu0 0.0
    %3678 = vmatpush1.msra.mxu0 0.0
    %3679 = vmatprep.subr.mxu0 0.0
    %3680 = vmatpush1.msra.mxu0 0.0
    %3681 = vmatprep.subr.mxu0 0.0
    %3682 = vmatpush1.msra.mxu0 0.0
    %3683 = vmatprep.subr.mxu0 0.0
    %3684 = vmatpush1.msra.mxu0 0.0
    %3685 = vmatprep.subr.mxu0 0.0
    %3686 = vmatpush1.msra.mxu0 0.0
    %3687 = vmatprep.subr.mxu0 0.0
    %3688 = vmatpush1.msra.mxu0 0.0
    %3689 = vmatprep.subr.mxu0 0.0
    %3690 = vmatpush1.msra.mxu0 0.0
    %3691 = vmatprep.subr.mxu0 0.0
    %3692 = vmatpush1.msra.mxu0 0.0
    %3693 = vmatprep.subr.mxu0 0.0
    %3694 = vmatpush1.msra.mxu0 0.0
    %3695 = vmatprep.mubr.f32.mxu0 0.0
    %3696 = vmatmul.mubr.f32.gmra.mrb[0].mxu0 %v3559
    %v3697 = vpop.f32.mrb[0].mxu0
    %v3698 = vadd.f32 %v609, %v3697
    %v3699 = vpop.f32.mrb[0].mxu0
    %3700 = vdwg.mxu0
    %v3701 = vadd.f32 %v3627, %v3450
    %v3702 = vxor.u32 %v3701, 2147483648
    %v3703 = vmul.f32 %v3702, 1.442695
    %v3704 = vpow.pop %v3703
    %v3705 = vadd.f32 %v3704, 1.0
    %v3706 = vrcp.pop %v3705
    %v3707 = vmul.f32 1.0, %v3706
    %v3708 = vadd.f32 %v3629, %v3452
    %v3709 = vxor.u32 %v3708, 2147483648
    %v3710 = vmul.f32 %v3709, 1.442695
    %v3711 = vpow.pop %v3710
    %v3712 = vadd.f32 %v3711, 1.0
    %v3713 = vrcp.pop %v3712
    %v3714 = vmul.f32 1.0, %v3713
    %v3715 = vadd.f32 %v3521, %v773
    %v3716 = vmul.f32 %v3707, %v3715
    %v3717 = vadd.f32 %v3698, %v3716
    %v3718 = vtanh.pop %v3717
    %v3719 = vsub.f32 1.0, %v3714
    %v3720 = vmul.f32 %v3719, %v3718
    %v3721 = vmul.f32 %v3714, %v3232
    %v3722 = vadd.f32 %v3720, %v3721
    %v3723 = vadd.f32 %v3559, %v3722
    %vm3724 = vcmp.eq.s32.totalorder %v64, 7
    %v3725 = vsel %vm3724, 1, 0
    %vm3726 = vcmp.eq.s32.totalorder %v3725, 1
    %v3727 = vsel %vm3726, %v62, 0.0
    %v3728 = vsel %vm69, %v3727, 0.0
    %3729 = vadd.xlane.f32.xlu0 %v3728
    %v3730 = vpop.xlane.xlu0 %3729
    %3731 = vmatprep.subr.mxu0 %v74
    %3732 = vmatpush1.msra.mxu0 %v73
    %3733 = vmatprep.subr.mxu0 %v81
    %3734 = vmatpush1.msra.mxu0 %v80
    %3735 = vmatprep.subr.mxu0 %v88
    %3736 = vmatpush1.msra.mxu0 %v87
    %3737 = vmatprep.subr.mxu0 %v95
    %3738 = vmatpush1.msra.mxu0 %v94
    %3739 = vmatprep.subr.mxu0 %v102
    %3740 = vmatpush1.msra.mxu0 %v101
    %3741 = vmatprep.subr.mxu0 %v109
    %3742 = vmatpush1.msra.mxu0 %v108
    %3743 = vmatprep.subr.mxu0 %v116
    %3744 = vmatpush1.msra.mxu0 %v115
    %3745 = vmatprep.subr.mxu0 %v123
    %3746 = vmatpush1.msra.mxu0 %v122
    %3747 = vmatprep.subr.mxu0 %v130
    %3748 = vmatpush1.msra.mxu0 %v129
    %3749 = vmatprep.subr.mxu0 %v137
    %3750 = vmatpush1.msra.mxu0 %v136
    %3751 = vmatprep.subr.mxu0 %v144
    %3752 = vmatpush1.msra.mxu0 %v143
    %3753 = vmatprep.subr.mxu0 %v151
    %3754 = vmatpush1.msra.mxu0 %v150
    %3755 = vmatprep.subr.mxu0 %v158
    %3756 = vmatpush1.msra.mxu0 %v157
    %3757 = vmatprep.subr.mxu0 %v165
    %3758 = vmatpush1.msra.mxu0 %v164
    %3759 = vmatprep.subr.mxu0 %v172
    %3760 = vmatpush1.msra.mxu0 %v171
    %3761 = vmatprep.subr.mxu0 %v179
    %3762 = vmatpush1.msra.mxu0 %v178
    %3763 = vmatprep.subr.mxu0 0.0
    %3764 = vmatpush1.msra.mxu0 0.0
    %3765 = vmatprep.subr.mxu0 0.0
    %3766 = vmatpush1.msra.mxu0 0.0
    %3767 = vmatprep.subr.mxu0 0.0
    %3768 = vmatpush1.msra.mxu0 0.0
    %3769 = vmatprep.subr.mxu0 0.0
    %3770 = vmatpush1.msra.mxu0 0.0
    %3771 = vmatprep.subr.mxu0 0.0
    %3772 = vmatpush1.msra.mxu0 0.0
    %3773 = vmatprep.subr.mxu0 0.0
    %3774 = vmatpush1.msra.mxu0 0.0
    %3775 = vmatprep.subr.mxu0 0.0
    %3776 = vmatpush1.msra.mxu0 0.0
    %3777 = vmatprep.subr.mxu0 0.0
    %3778 = vmatpush1.msra.mxu0 0.0
    %3779 = vmatprep.subr.mxu0 0.0
    %3780 = vmatpush1.msra.mxu0 0.0
    %3781 = vmatprep.subr.mxu0 0.0
    %3782 = vmatpush1.msra.mxu0 0.0
    %3783 = vmatprep.subr.mxu0 0.0
    %3784 = vmatpush1.msra.mxu0 0.0
    %3785 = vmatprep.subr.mxu0 0.0
    %3786 = vmatpush1.msra.mxu0 0.0
    %3787 = vmatprep.subr.mxu0 0.0
    %3788 = vmatpush1.msra.mxu0 0.0
    %3789 = vmatprep.subr.mxu0 0.0
    %3790 = vmatpush1.msra.mxu0 0.0
    %3791 = vmatprep.subr.mxu0 0.0
    %3792 = vmatpush1.msra.mxu0 0.0
    %3793 = vmatprep.subr.mxu0 0.0
    %3794 = vmatpush1.msra.mxu0 0.0
    %3795 = vmatprep.mubr.f32.mxu0 0.0
    %3796 = vmatmul.mubr.f32.gmra.mrb[0].mxu0 %v3723
    %v3797 = vpop.f32.mrb[0].mxu0
    %v3798 = vadd.f32 0.0, %v3797
    %v3799 = vpop.f32.mrb[0].mxu0
    %v3800 = vadd.f32 0.0, %v3799
    %3801 = vdwg.mxu0
    %3802 = vmatprep.subr.mxu0 %v76
    %3803 = vmatpush1.msra.mxu0 %v75
    %3804 = vmatprep.subr.mxu0 %v83
    %3805 = vmatpush1.msra.mxu0 %v82
    %3806 = vmatprep.subr.mxu0 %v90
    %3807 = vmatpush1.msra.mxu0 %v89
    %3808 = vmatprep.subr.mxu0 %v97
    %3809 = vmatpush1.msra.mxu0 %v96
    %3810 = vmatprep.subr.mxu0 %v104
    %3811 = vmatpush1.msra.mxu0 %v103
    %3812 = vmatprep.subr.mxu0 %v111
    %3813 = vmatpush1.msra.mxu0 %v110
    %3814 = vmatprep.subr.mxu0 %v118
    %3815 = vmatpush1.msra.mxu0 %v117
    %3816 = vmatprep.subr.mxu0 %v125
    %3817 = vmatpush1.msra.mxu0 %v124
    %3818 = vmatprep.subr.mxu0 %v132
    %3819 = vmatpush1.msra.mxu0 %v131
    %3820 = vmatprep.subr.mxu0 %v139
    %3821 = vmatpush1.msra.mxu0 %v138
    %3822 = vmatprep.subr.mxu0 %v146
    %3823 = vmatpush1.msra.mxu0 %v145
    %3824 = vmatprep.subr.mxu0 %v153
    %3825 = vmatpush1.msra.mxu0 %v152
    %3826 = vmatprep.subr.mxu0 %v160
    %3827 = vmatpush1.msra.mxu0 %v159
    %3828 = vmatprep.subr.mxu0 %v167
    %3829 = vmatpush1.msra.mxu0 %v166
    %3830 = vmatprep.subr.mxu0 %v174
    %3831 = vmatpush1.msra.mxu0 %v173
    %3832 = vmatprep.subr.mxu0 %v181
    %3833 = vmatpush1.msra.mxu0 %v180
    %3834 = vmatprep.subr.mxu0 0.0
    %3835 = vmatpush1.msra.mxu0 0.0
    %3836 = vmatprep.subr.mxu0 0.0
    %3837 = vmatpush1.msra.mxu0 0.0
    %3838 = vmatprep.subr.mxu0 0.0
    %3839 = vmatpush1.msra.mxu0 0.0
    %3840 = vmatprep.subr.mxu0 0.0
    %3841 = vmatpush1.msra.mxu0 0.0
    %3842 = vmatprep.subr.mxu0 0.0
    %3843 = vmatpush1.msra.mxu0 0.0
    %3844 = vmatprep.subr.mxu0 0.0
    %3845 = vmatpush1.msra.mxu0 0.0
    %3846 = vmatprep.subr.mxu0 0.0
    %3847 = vmatpush1.msra.mxu0 0.0
    %3848 = vmatprep.subr.mxu0 0.0
    %3849 = vmatpush1.msra.mxu0 0.0
    %3850 = vmatprep.subr.mxu0 0.0
    %3851 = vmatpush1.msra.mxu0 0.0
    %3852 = vmatprep.subr.mxu0 0.0
    %3853 = vmatpush1.msra.mxu0 0.0
    %3854 = vmatprep.subr.mxu0 0.0
    %3855 = vmatpush1.msra.mxu0 0.0
    %3856 = vmatprep.subr.mxu0 0.0
    %3857 = vmatpush1.msra.mxu0 0.0
    %3858 = vmatprep.subr.mxu0 0.0
    %3859 = vmatpush1.msra.mxu0 0.0
    %3860 = vmatprep.subr.mxu0 0.0
    %3861 = vmatpush1.msra.mxu0 0.0
    %3862 = vmatprep.subr.mxu0 0.0
    %3863 = vmatpush1.msra.mxu0 0.0
    %3864 = vmatprep.subr.mxu0 0.0
    %3865 = vmatpush1.msra.mxu0 0.0
    %3866 = vmatprep.mubr.f32.mxu0 0.0
    %3867 = vmatmul.mubr.f32.gmra.mrb[0].mxu0 %v3723
    %v3868 = vpop.f32.mrb[0].mxu0
    %v3869 = vadd.f32 0.0, %v3868
    %v3870 = vpop.f32.mrb[0].mxu0
    %v3871 = vadd.f32 0.0, %v3870
    %3872 = vdwg.mxu0
    %3873 = vmatprep.subr.mxu0 %v78
    %3874 = vmatpush1.msra.mxu0 %v77
    %3875 = vmatprep.subr.mxu0 %v85
    %3876 = vmatpush1.msra.mxu0 %v84
    %3877 = vmatprep.subr.mxu0 %v92
    %3878 = vmatpush1.msra.mxu0 %v91
    %3879 = vmatprep.subr.mxu0 %v99
    %3880 = vmatpush1.msra.mxu0 %v98
    %3881 = vmatprep.subr.mxu0 %v106
    %3882 = vmatpush1.msra.mxu0 %v105
    %3883 = vmatprep.subr.mxu0 %v113
    %3884 = vmatpush1.msra.mxu0 %v112
    %3885 = vmatprep.subr.mxu0 %v120
    %3886 = vmatpush1.msra.mxu0 %v119
    %3887 = vmatprep.subr.mxu0 %v127
    %3888 = vmatpush1.msra.mxu0 %v126
    %3889 = vmatprep.subr.mxu0 %v134
    %3890 = vmatpush1.msra.mxu0 %v133
    %3891 = vmatprep.subr.mxu0 %v141
    %3892 = vmatpush1.msra.mxu0 %v140
    %3893 = vmatprep.subr.mxu0 %v148
    %3894 = vmatpush1.msra.mxu0 %v147
    %3895 = vmatprep.subr.mxu0 %v155
    %3896 = vmatpush1.msra.mxu0 %v154
    %3897 = vmatprep.subr.mxu0 %v162
    %3898 = vmatpush1.msra.mxu0 %v161
    %3899 = vmatprep.subr.mxu0 %v169
    %3900 = vmatpush1.msra.mxu0 %v168
    %3901 = vmatprep.subr.mxu0 %v176
    %3902 = vmatpush1.msra.mxu0 %v175
    %3903 = vmatprep.subr.mxu0 %v183
    %3904 = vmatpush1.msra.mxu0 %v182
    %3905 = vmatprep.subr.mxu0 0.0
    %3906 = vmatpush1.msra.mxu0 0.0
    %3907 = vmatprep.subr.mxu0 0.0
    %3908 = vmatpush1.msra.mxu0 0.0
    %3909 = vmatprep.subr.mxu0 0.0
    %3910 = vmatpush1.msra.mxu0 0.0
    %3911 = vmatprep.subr.mxu0 0.0
    %3912 = vmatpush1.msra.mxu0 0.0
    %3913 = vmatprep.subr.mxu0 0.0
    %3914 = vmatpush1.msra.mxu0 0.0
    %3915 = vmatprep.subr.mxu0 0.0
    %3916 = vmatpush1.msra.mxu0 0.0
    %3917 = vmatprep.subr.mxu0 0.0
    %3918 = vmatpush1.msra.mxu0 0.0
    %3919 = vmatprep.subr.mxu0 0.0
    %3920 = vmatpush1.msra.mxu0 0.0
    %3921 = vmatprep.subr.mxu0 0.0
    %3922 = vmatpush1.msra.mxu0 0.0
    %3923 = vmatprep.subr.mxu0 0.0
    %3924 = vmatpush1.msra.mxu0 0.0
    %3925 = vmatprep.subr.mxu0 0.0
    %3926 = vmatpush1.msra.mxu0 0.0
    %3927 = vmatprep.subr.mxu0 0.0
    %3928 = vmatpush1.msra.mxu0 0.0
    %3929 = vmatprep.subr.mxu0 0.0
    %3930 = vmatpush1.msra.mxu0 0.0
    %3931 = vmatprep.subr.mxu0 0.0
    %3932 = vmatpush1.msra.mxu0 0.0
    %3933 = vmatprep.subr.mxu0 0.0
    %3934 = vmatpush1.msra.mxu0 0.0
    %3935 = vmatprep.subr.mxu0 0.0
    %3936 = vmatpush1.msra.mxu0 0.0
    %3937 = vmatprep.mubr.f32.mxu0 0.0
    %3938 = vmatmul.mubr.f32.gmra.mrb[0].mxu0 %v3723
    %v3939 = vpop.f32.mrb[0].mxu0
    %v3940 = vadd.f32 0.0, %v3939
    %v3941 = vpop.f32.mrb[0].mxu0
    %v3942 = vadd.f32 0.0, %v3941
    %3943 = vdwg.mxu0
    %3944 = vmatprep.subr.mxu0 0.0
    %3945 = vmatpush1.msra.mxu0 %v79
    %3946 = vmatprep.subr.mxu0 0.0
    %3947 = vmatpush1.msra.mxu0 %v86
    %3948 = vmatprep.subr.mxu0 0.0
    %3949 = vmatpush1.msra.mxu0 %v93
    %3950 = vmatprep.subr.mxu0 0.0
    %3951 = vmatpush1.msra.mxu0 %v100
    %3952 = vmatprep.subr.mxu0 0.0
    %3953 = vmatpush1.msra.mxu0 %v107
    %3954 = vmatprep.subr.mxu0 0.0
    %3955 = vmatpush1.msra.mxu0 %v114
    %3956 = vmatprep.subr.mxu0 0.0
    %3957 = vmatpush1.msra.mxu0 %v121
    %3958 = vmatprep.subr.mxu0 0.0
    %3959 = vmatpush1.msra.mxu0 %v128
    %3960 = vmatprep.subr.mxu0 0.0
    %3961 = vmatpush1.msra.mxu0 %v135
    %3962 = vmatprep.subr.mxu0 0.0
    %3963 = vmatpush1.msra.mxu0 %v142
    %3964 = vmatprep.subr.mxu0 0.0
    %3965 = vmatpush1.msra.mxu0 %v149
    %3966 = vmatprep.subr.mxu0 0.0
    %3967 = vmatpush1.msra.mxu0 %v156
    %3968 = vmatprep.subr.mxu0 0.0
    %3969 = vmatpush1.msra.mxu0 %v163
    %3970 = vmatprep.subr.mxu0 0.0
    %3971 = vmatpush1.msra.mxu0 %v170
    %3972 = vmatprep.subr.mxu0 0.0
    %3973 = vmatpush1.msra.mxu0 %v177
    %3974 = vmatprep.subr.mxu0 0.0
    %3975 = vmatpush1.msra.mxu0 %v184
    %3976 = vmatprep.subr.mxu0 0.0
    %3977 = vmatpush1.msra.mxu0 0.0
    %3978 = vmatprep.subr.mxu0 0.0
    %3979 = vmatpush1.msra.mxu0 0.0
    %3980 = vmatprep.subr.mxu0 0.0
    %3981 = vmatpush1.msra.mxu0 0.0
    %3982 = vmatprep.subr.mxu0 0.0
    %3983 = vmatpush1.msra.mxu0 0.0
    %3984 = vmatprep.subr.mxu0 0.0
    %3985 = vmatpush1.msra.mxu0 0.0
    %3986 = vmatprep.subr.mxu0 0.0
    %3987 = vmatpush1.msra.mxu0 0.0
    %3988 = vmatprep.subr.mxu0 0.0
    %3989 = vmatpush1.msra.mxu0 0.0
    %3990 = vmatprep.subr.mxu0 0.0
    %3991 = vmatpush1.msra.mxu0 0.0
    %3992 = vmatprep.subr.mxu0 0.0
    %3993 = vmatpush1.msra.mxu0 0.0
    %3994 = vmatprep.subr.mxu0 0.0
    %3995 = vmatpush1.msra.mxu0 0.0
    %3996 = vmatprep.subr.mxu0 0.0
    %3997 = vmatpush1.msra.mxu0 0.0
    %3998 = vmatprep.subr.mxu0 0.0
    %3999 = vmatpush1.msra.mxu0 0.0
    %4000 = vmatprep.subr.mxu0 0.0
    %4001 = vmatpush1.msra.mxu0 0.0
    %4002 = vmatprep.subr.mxu0 0.0
    %4003 = vmatpush1.msra.mxu0 0.0
    %4004 = vmatprep.subr.mxu0 0.0
    %4005 = vmatpush1.msra.mxu0 0.0
    %4006 = vmatprep.subr.mxu0 0.0
    %4007 = vmatpush1.msra.mxu0 0.0
    %4008 = vmatprep.mubr.f32.mxu0 0.0
    %4009 = vmatmul.mubr.f32.gmra.mrb[0].mxu0 %v3723
    %v4010 = vpop.f32.mrb[0].mxu0
    %v4011 = vadd.f32 0.0, %v4010
    %v4012 = vpop.f32.mrb[0].mxu0
    %4013 = vdwg.mxu0
    %v4014 = vmul.f32 %v3730, %v473
    %v4015 = vmul.f32 %v3730, %v477
    %v4016 = vmul.f32 %v3730, %v481
    %v4017 = vmul.f32 %v3730, %v485
    %v4018 = vadd.f32 %v4014, %v499
    %v4019 = vadd.f32 %v4015, %v503
    %v4020 = vadd.f32 %v4016, %v507
    %v4021 = vadd.f32 %v4017, %v511
    %v4022 = vadd.f32 %v4018, %v3798
    %v4023 = vadd.f32 %v4019, %v3800
    %v4024 = vadd.f32 %v4020, %v3869
    %v4025 = vadd.f32 %v4021, %v3871
    %v4026 = vxor.u32 %v4022, 2147483648
    %v4027 = vmul.f32 %v4026, 1.442695
    %v4028 = vpow.pop %v4027
    %v4029 = vadd.f32 %v4028, 1.0
    %v4030 = vrcp.pop %v4029
    %v4031 = vmul.f32 1.0, %v4030
    %v4032 = vxor.u32 %v4023, 2147483648
    %v4033 = vmul.f32 %v4032, 1.442695
    %v4034 = vpow.pop %v4033
    %v4035 = vadd.f32 %v4034, 1.0
    %v4036 = vrcp.pop %v4035
    %v4037 = vmul.f32 1.0, %v4036
    %v4038 = vtanh.pop %v4024
    %v4039 = vxor.u32 %v4025, 2147483648
    %v4040 = vmul.f32 %v4039, 1.442695
    %v4041 = vpow.pop %v4040
    %v4042 = vadd.f32 %v4041, 1.0
    %v4043 = vrcp.pop %v4042
    %v4044 = vmul.f32 1.0, %v4043
    %v4045 = vmul.f32 %v4037, %v3557
    %v4046 = vmul.f32 %v4031, %v4038
    %v4047 = vadd.f32 %v4045, %v4046
    %v4048 = vtanh.pop %v4047
    %v4049 = vmul.f32 %v4044, %v4048
    %4050 = vmatprep.subr.mxu0 %v549
    %4051 = vmatpush1.msra.mxu0 %v548
    %4052 = vmatprep.subr.mxu0 %v552
    %4053 = vmatpush1.msra.mxu0 %v551
    %4054 = vmatprep.subr.mxu0 %v555
    %4055 = vmatpush1.msra.mxu0 %v554
    %4056 = vmatprep.subr.mxu0 %v558
    %4057 = vmatpush1.msra.mxu0 %v557
    %4058 = vmatprep.subr.mxu0 %v561
    %4059 = vmatpush1.msra.mxu0 %v560
    %4060 = vmatprep.subr.mxu0 %v564
    %4061 = vmatpush1.msra.mxu0 %v563
    %4062 = vmatprep.subr.mxu0 %v567
    %4063 = vmatpush1.msra.mxu0 %v566
    %4064 = vmatprep.subr.mxu0 %v570
    %4065 = vmatpush1.msra.mxu0 %v569
    %4066 = vmatprep.subr.mxu0 %v573
    %4067 = vmatpush1.msra.mxu0 %v572
    %4068 = vmatprep.subr.mxu0 %v576
    %4069 = vmatpush1.msra.mxu0 %v575
    %4070 = vmatprep.subr.mxu0 %v579
    %4071 = vmatpush1.msra.mxu0 %v578
    %4072 = vmatprep.subr.mxu0 %v582
    %4073 = vmatpush1.msra.mxu0 %v581
    %4074 = vmatprep.subr.mxu0 %v585
    %4075 = vmatpush1.msra.mxu0 %v584
    %4076 = vmatprep.subr.mxu0 %v588
    %4077 = vmatpush1.msra.mxu0 %v587
    %4078 = vmatprep.subr.mxu0 %v591
    %4079 = vmatpush1.msra.mxu0 %v590
    %4080 = vmatprep.subr.mxu0 %v594
    %4081 = vmatpush1.msra.mxu0 %v593
    %4082 = vmatprep.subr.mxu0 0.0
    %4083 = vmatpush1.msra.mxu0 0.0
    %4084 = vmatprep.subr.mxu0 0.0
    %4085 = vmatpush1.msra.mxu0 0.0
    %4086 = vmatprep.subr.mxu0 0.0
    %4087 = vmatpush1.msra.mxu0 0.0
    %4088 = vmatprep.subr.mxu0 0.0
    %4089 = vmatpush1.msra.mxu0 0.0
    %4090 = vmatprep.subr.mxu0 0.0
    %4091 = vmatpush1.msra.mxu0 0.0
    %4092 = vmatprep.subr.mxu0 0.0
    %4093 = vmatpush1.msra.mxu0 0.0
    %4094 = vmatprep.subr.mxu0 0.0
    %4095 = vmatpush1.msra.mxu0 0.0
    %4096 = vmatprep.subr.mxu0 0.0
    %4097 = vmatpush1.msra.mxu0 0.0
    %4098 = vmatprep.subr.mxu0 0.0
    %4099 = vmatpush1.msra.mxu0 0.0
    %4100 = vmatprep.subr.mxu0 0.0
    %4101 = vmatpush1.msra.mxu0 0.0
    %4102 = vmatprep.subr.mxu0 0.0
    %4103 = vmatpush1.msra.mxu0 0.0
    %4104 = vmatprep.subr.mxu0 0.0
    %4105 = vmatpush1.msra.mxu0 0.0
    %4106 = vmatprep.subr.mxu0 0.0
    %4107 = vmatpush1.msra.mxu0 0.0
    %4108 = vmatprep.subr.mxu0 0.0
    %4109 = vmatpush1.msra.mxu0 0.0
    %4110 = vmatprep.subr.mxu0 0.0
    %4111 = vmatpush1.msra.mxu0 0.0
    %4112 = vmatprep.subr.mxu0 0.0
    %4113 = vmatpush1.msra.mxu0 0.0
    %4114 = vmatprep.mubr.f32.mxu0 0.0
    %4115 = vmatmul.mubr.f32.gmra.mrb[0].mxu0 %v4049
    %v4116 = vpop.f32.mrb[0].mxu0
    %v4117 = vadd.f32 %v601, %v4116
    %v4118 = vpop.f32.mrb[0].mxu0
    %v4119 = vadd.f32 %v605, %v4118
    %4120 = vdwg.mxu0
    %4121 = vmatprep.subr.mxu0 0.0
    %4122 = vmatpush1.msra.mxu0 %v550
    %4123 = vmatprep.subr.mxu0 0.0
    %4124 = vmatpush1.msra.mxu0 %v553
    %4125 = vmatprep.subr.mxu0 0.0
    %4126 = vmatpush1.msra.mxu0 %v556
    %4127 = vmatprep.subr.mxu0 0.0
    %4128 = vmatpush1.msra.mxu0 %v559
    %4129 = vmatprep.subr.mxu0 0.0
    %4130 = vmatpush1.msra.mxu0 %v562
    %4131 = vmatprep.subr.mxu0 0.0
    %4132 = vmatpush1.msra.mxu0 %v565
    %4133 = vmatprep.subr.mxu0 0.0
    %4134 = vmatpush1.msra.mxu0 %v568
    %4135 = vmatprep.subr.mxu0 0.0
    %4136 = vmatpush1.msra.mxu0 %v571
    %4137 = vmatprep.subr.mxu0 0.0
    %4138 = vmatpush1.msra.mxu0 %v574
    %4139 = vmatprep.subr.mxu0 0.0
    %4140 = vmatpush1.msra.mxu0 %v577
    %4141 = vmatprep.subr.mxu0 0.0
    %4142 = vmatpush1.msra.mxu0 %v580
    %4143 = vmatprep.subr.mxu0 0.0
    %4144 = vmatpush1.msra.mxu0 %v583
    %4145 = vmatprep.subr.mxu0 0.0
    %4146 = vmatpush1.msra.mxu0 %v586
    %4147 = vmatprep.subr.mxu0 0.0
    %4148 = vmatpush1.msra.mxu0 %v589
    %4149 = vmatprep.subr.mxu0 0.0
    %4150 = vmatpush1.msra.mxu0 %v592
    %4151 = vmatprep.subr.mxu0 0.0
    %4152 = vmatpush1.msra.mxu0 %v595
    %4153 = vmatprep.subr.mxu0 0.0
    %4154 = vmatpush1.msra.mxu0 0.0
    %4155 = vmatprep.subr.mxu0 0.0
    %4156 = vmatpush1.msra.mxu0 0.0
    %4157 = vmatprep.subr.mxu0 0.0
    %4158 = vmatpush1.msra.mxu0 0.0
    %4159 = vmatprep.subr.mxu0 0.0
    %4160 = vmatpush1.msra.mxu0 0.0
    %4161 = vmatprep.subr.mxu0 0.0
    %4162 = vmatpush1.msra.mxu0 0.0
    %4163 = vmatprep.subr.mxu0 0.0
    %4164 = vmatpush1.msra.mxu0 0.0
    %4165 = vmatprep.subr.mxu0 0.0
    %4166 = vmatpush1.msra.mxu0 0.0
    %4167 = vmatprep.subr.mxu0 0.0
    %4168 = vmatpush1.msra.mxu0 0.0
    %4169 = vmatprep.subr.mxu0 0.0
    %4170 = vmatpush1.msra.mxu0 0.0
    %4171 = vmatprep.subr.mxu0 0.0
    %4172 = vmatpush1.msra.mxu0 0.0
    %4173 = vmatprep.subr.mxu0 0.0
    %4174 = vmatpush1.msra.mxu0 0.0
    %4175 = vmatprep.subr.mxu0 0.0
    %4176 = vmatpush1.msra.mxu0 0.0
    %4177 = vmatprep.subr.mxu0 0.0
    %4178 = vmatpush1.msra.mxu0 0.0
    %4179 = vmatprep.subr.mxu0 0.0
    %4180 = vmatpush1.msra.mxu0 0.0
    %4181 = vmatprep.subr.mxu0 0.0
    %4182 = vmatpush1.msra.mxu0 0.0
    %4183 = vmatprep.subr.mxu0 0.0
    %4184 = vmatpush1.msra.mxu0 0.0
    %4185 = vmatprep.mubr.f32.mxu0 0.0
    %4186 = vmatmul.mubr.f32.gmra.mrb[0].mxu0 %v4049
    %v4187 = vpop.f32.mrb[0].mxu0
    %v4188 = vadd.f32 %v609, %v4187
    %v4189 = vpop.f32.mrb[0].mxu0
    %4190 = vdwg.mxu0
    %v4191 = vadd.f32 %v4117, %v3940
    %v4192 = vxor.u32 %v4191, 2147483648
    %v4193 = vmul.f32 %v4192, 1.442695
    %v4194 = vpow.pop %v4193
    %v4195 = vadd.f32 %v4194, 1.0
    %v4196 = vrcp.pop %v4195
    %v4197 = vmul.f32 1.0, %v4196
    %v4198 = vadd.f32 %v4119, %v3942
    %v4199 = vxor.u32 %v4198, 2147483648
    %v4200 = vmul.f32 %v4199, 1.442695
    %v4201 = vpow.pop %v4200
    %v4202 = vadd.f32 %v4201, 1.0
    %v4203 = vrcp.pop %v4202
    %v4204 = vmul.f32 1.0, %v4203
    %v4205 = vadd.f32 %v4011, %v773
    %v4206 = vmul.f32 %v4197, %v4205
    %v4207 = vadd.f32 %v4188, %v4206
    %v4208 = vtanh.pop %v4207
    %v4209 = vsub.f32 1.0, %v4204
    %v4210 = vmul.f32 %v4209, %v4208
    %v4211 = vmul.f32 %v4204, %v3722
    %v4212 = vadd.f32 %v4210, %v4211
    %v4213 = vadd.f32 %v4049, %v4212
    %v4214 = vld [vmem:[%s7] sm:$0xff]
    %v4215 = vld [vmem:[%s7 + $0x8] sm:$0xff]
    %v4216 = vld [vmem:[%s7 + $0x10] sm:$0xff]
    %v4217 = vld [vmem:[%s7 + $0x18] sm:$0xff]
    %v4218 = vld [vmem:[%s7 + $0x20] sm:$0xff]
    %v4219 = vld [vmem:[%s7 + $0x28] sm:$0xff]
    %v4220 = vld [vmem:[%s7 + $0x30] sm:$0xff]
    %v4221 = vld [vmem:[%s7 + $0x38] sm:$0xff]
    %v4222 = vld [vmem:[%s7 + $0x40] sm:$0xff]
    %v4223 = vld [vmem:[%s7 + $0x48] sm:$0xff]
    %v4224 = vld [vmem:[%s7 + $0x50] sm:$0xff]
    %v4225 = vld [vmem:[%s7 + $0x58] sm:$0xff]
    %v4226 = vld [vmem:[%s7 + $0x60] sm:$0xff]
    %v4227 = vld [vmem:[%s7 + $0x68] sm:$0xff]
    %v4228 = vld [vmem:[%s7 + $0x70] sm:$0xff]
    %v4229 = vld [vmem:[%s7 + $0x78] sm:$0xff]
    %v4230 = vld [vmem:[#allocation2] sm:$0x1]
    %v4232 = vlaneseq
    %v4233 = vshrl.u32 %v4232, 7
    %v4234 = vsub.s32 0, %v4233
    %v4235 = vrot.slane %v4230, %v4234
    %4237 = vmatprep.subr.mxu0 0.0
    %4238 = vmatpush1.msra.mxu0 %v4214
    %4239 = vmatprep.subr.mxu0 0.0
    %4240 = vmatpush1.msra.mxu0 %v4215
    %4241 = vmatprep.subr.mxu0 0.0
    %4242 = vmatpush1.msra.mxu0 %v4216
    %4243 = vmatprep.subr.mxu0 0.0
    %4244 = vmatpush1.msra.mxu0 %v4217
    %4245 = vmatprep.subr.mxu0 0.0
    %4246 = vmatpush1.msra.mxu0 %v4218
    %4247 = vmatprep.subr.mxu0 0.0
    %4248 = vmatpush1.msra.mxu0 %v4219
    %4249 = vmatprep.subr.mxu0 0.0
    %4250 = vmatpush1.msra.mxu0 %v4220
    %4251 = vmatprep.subr.mxu0 0.0
    %4252 = vmatpush1.msra.mxu0 %v4221
    %4253 = vmatprep.subr.mxu0 0.0
    %4254 = vmatpush1.msra.mxu0 %v4222
    %4255 = vmatprep.subr.mxu0 0.0
    %4256 = vmatpush1.msra.mxu0 %v4223
    %4257 = vmatprep.subr.mxu0 0.0
    %4258 = vmatpush1.msra.mxu0 %v4224
    %4259 = vmatprep.subr.mxu0 0.0
    %4260 = vmatpush1.msra.mxu0 %v4225
    %4261 = vmatprep.subr.mxu0 0.0
    %4262 = vmatpush1.msra.mxu0 %v4226
    %4263 = vmatprep.subr.mxu0 0.0
    %4264 = vmatpush1.msra.mxu0 %v4227
    %4265 = vmatprep.subr.mxu0 0.0
    %4266 = vmatpush1.msra.mxu0 %v4228
    %4267 = vmatprep.subr.mxu0 0.0
    %4268 = vmatpush1.msra.mxu0 %v4229
    %4269 = vmatprep.subr.mxu0 0.0
    %4270 = vmatpush1.msra.mxu0 0.0
    %4271 = vmatprep.subr.mxu0 0.0
    %4272 = vmatpush1.msra.mxu0 0.0
    %4273 = vmatprep.subr.mxu0 0.0
    %4274 = vmatpush1.msra.mxu0 0.0
    %4275 = vmatprep.subr.mxu0 0.0
    %4276 = vmatpush1.msra.mxu0 0.0
    %4277 = vmatprep.subr.mxu0 0.0
    %4278 = vmatpush1.msra.mxu0 0.0
    %4279 = vmatprep.subr.mxu0 0.0
    %4280 = vmatpush1.msra.mxu0 0.0
    %4281 = vmatprep.subr.mxu0 0.0
    %4282 = vmatpush1.msra.mxu0 0.0
    %4283 = vmatprep.subr.mxu0 0.0
    %4284 = vmatpush1.msra.mxu0 0.0
    %4285 = vmatprep.subr.mxu0 0.0
    %4286 = vmatpush1.msra.mxu0 0.0
    %4287 = vmatprep.subr.mxu0 0.0
    %4288 = vmatpush1.msra.mxu0 0.0
    %4289 = vmatprep.subr.mxu0 0.0
    %4290 = vmatpush1.msra.mxu0 0.0
    %4291 = vmatprep.subr.mxu0 0.0
    %4292 = vmatpush1.msra.mxu0 0.0
    %4293 = vmatprep.subr.mxu0 0.0
    %4294 = vmatpush1.msra.mxu0 0.0
    %4295 = vmatprep.subr.mxu0 0.0
    %4296 = vmatpush1.msra.mxu0 0.0
    %4297 = vmatprep.subr.mxu0 0.0
    %4298 = vmatpush1.msra.mxu0 0.0
    %4299 = vmatprep.subr.mxu0 0.0
    %4300 = vmatpush1.msra.mxu0 0.0
    %4301 = vmatprep.mubr.f32.mxu0 0.0
    %4302 = vmatmul.mubr.f32.gmra.mrb[0].mxu0 %v4213
    %v4303 = vpop.f32.mrb[0].mxu0
    %v4304 = vadd.f32 %v4235, %v4303
    %v4305 = vpop.f32.mrb[0].mxu0
    %4306 = vdwg.mxu0
    %vm4307 = vcmask 1024
    %4308 = vst.msk [vmem:[%s9] sm:$0x3] %vm4307, %v4304
    // Predicated region
    $region46: #{tpu_custom_call.1} parent=1 // pred_check
      _
    $region47: #{tpu_custom_call.1} parent=1 // pred_check_branch
      %4310 = sbr.rel (0) target = $region49
    $region48: #{tpu_custom_call.1} parent=1 // pred_region
      _
    $region49: #{tpu_custom_call.1} parent=1 // pred_fallthru
      _
    // Predicated region
    $region50: #{tpu_custom_call.1} parent=1 // pred_check
      _
    $region51: #{tpu_custom_call.1} parent=1 // pred_check_branch
      %4312 = sbr.rel (0) target = $region53
    $region52: #{tpu_custom_call.1} parent=1 // pred_region
      _
    $region53: #{tpu_custom_call.1} parent=1 // pred_fallthru
      _
    %4313 = vsyncpa [#allocation4], 1
    %4314 = vsyncpa [#allocation6], 1

</llo_original>
